<compile_context>
chip_gen: v6e
topology: v6e:2x2x1
jax: 0.10.0
libtpu: 0.0.40
codegen_flags: <defaults>
</compile_context>

<pallas_src>
import functools
import math

import jax
import jax.numpy as jnp
from jax.experimental import pallas as pl
from jax.experimental.pallas import tpu as pltpu


# --------------------------------------------------------------------------
# In-kernel helpers (f32 math)
# --------------------------------------------------------------------------

def _ln(x, g, b, eps):
    mu = jnp.mean(x, axis=-1, keepdims=True)
    var = jnp.mean((x - mu) * (x - mu), axis=-1, keepdims=True)
    return (x - mu) * jax.lax.rsqrt(var + eps) * g + b


def _gelu(x):
    # TODO(synk): tanh-approx GELU (HF BERT uses exact erf-GELU; tiny systematic diff).
    c = math.sqrt(2.0 / math.pi)
    return 0.5 * x * (1.0 + jnp.tanh(c * (x + 0.044715 * x * x * x)))


def _replicated_spec(shape):
    """Full-array spec for weights: constant block across the batch grid.

    Single-buffered (no point double-buffering a block whose index never changes);
    falls back to the default spec if this JAX build lacks pipeline_mode/Buffered.
    """
    idx = lambda b: (0,) * len(shape)
    try:
        return pl.BlockSpec(shape, idx, pipeline_mode=pl.Buffered(1))
    except Exception:  # pragma: no cover - older jax without pipeline_mode support
        return pl.BlockSpec(shape, idx)


# --------------------------------------------------------------------------
# Fused encoder-layer kernel
# --------------------------------------------------------------------------

def _encoder_layer_kernel(x_ref, mask_ref, *refs, n_heads, eps, apply_input_ln):
    if apply_input_ln:
        ln0g_ref, ln0b_ref = refs[0], refs[1]
        refs = refs[2:]
    (wqkv_ref, bqkv_ref, wo_ref, bo_ref, ln1g_ref, ln1b_ref,
     w1_ref, b1_ref, w2_ref, b2_ref, ln2g_ref, ln2b_ref, o_ref) = refs

    S, H = x_ref.shape[1], x_ref.shape[2]
    dH = H // n_heads
    scale = 1.0 / math.sqrt(dH)

    x32 = x_ref[0].astype(jnp.float32)                       # [S, H] f32 working copy
    if apply_input_ln:
        # embedding LayerNorm fused into the first layer's kernel
        x32 = _ln(x32, ln0g_ref[...], ln0b_ref[...], eps)
    x_mm = x32.astype(jnp.bfloat16)

    # ---- fused QKV projection: one MXU pass, bf16 operands, f32 accumulation ----
    qkv = jnp.dot(x_mm, wqkv_ref[...],
                  preferred_element_type=jnp.float32) + bqkv_ref[...]
    q_bf = (qkv[:, 0:H] * scale).astype(jnp.bfloat16)        # fold 1/sqrt(dH) into q once
    k_bf = qkv[:, H:2 * H].astype(jnp.bfloat16)
    v_bf = qkv[:, 2 * H:3 * H].astype(jnp.bfloat16)

    # hoisted out of the unrolled head loop (no per-head broadcast_in_dim)
    mask_b = jnp.broadcast_to(mask_ref[0], (S, S))           # [S, S] additive mask, f32

    wo = wo_ref[...]                                          # [H, H] bf16, loaded once

    # ---- per-head attention, output projection folded into the head loop ----
    attn = None
    for h in range(n_heads):
        sl = slice(h * dH, (h + 1) * dH)
        s = jax.lax.dot_general(q_bf[:, sl], k_bf[:, sl], (((1,), (1,)), ((), ())),
                                preferred_element_type=jnp.float32)      # bf16 MXU path
        s = s + mask_b
        p = jnp.exp(s - jnp.max(s, axis=-1, keepdims=True))
        p = p * pl.reciprocal(jnp.sum(p, axis=-1, keepdims=True), approx=True)  # EUP slot
        ctx_h = jnp.dot(p.astype(jnp.bfloat16), v_bf[:, sl],
                        preferred_element_type=jnp.float32)              # bf16 MXU path
        contrib = jnp.dot(ctx_h.astype(jnp.bfloat16), wo[sl, :],
                          preferred_element_type=jnp.float32)            # no concat needed
        attn = contrib if attn is None else attn + contrib

    # ---- residual + LN1 ----
    h1 = _ln(attn + bo_ref[...] + x32, ln1g_ref[...], ln1b_ref[...], eps)

    # ---- feed-forward: FF1 + GELU + FF2 + residual + LN2 ----
    ff = jnp.dot(h1.astype(jnp.bfloat16), w1_ref[...],
                 preferred_element_type=jnp.float32) + b1_ref[...]
    ff = _gelu(ff)
    ff = jnp.dot(ff.astype(jnp.bfloat16), w2_ref[...],
                 preferred_element_type=jnp.float32) + b2_ref[...]
    o_ref[0] = _ln(ff + h1, ln2g_ref[...], ln2b_ref[...], eps).astype(o_ref.dtype)


def encoder_layer(x, mask_add, lp, *, n_heads, input_ln=None, eps=1e-12):
    """x: [B, S, H] bf16; mask_add: [B, 1, S] f32; lp: prepared (fused/bf16) params.

    Returns bf16 [B, S, H]. `input_ln=(gamma, beta)` applies the embedding LayerNorm
    inside the kernel (layer 0 only)."""
    B, S, H = x.shape

    ln0_inputs, ln0_specs = [], []
    if input_ln is not None:
        ln0_inputs = list(input_ln)
        ln0_specs = [_replicated_spec(a.shape) for a in input_ln]

    weights = [lp["wqkv"], lp["bqkv"], lp["wo"], lp["bo"],
               lp["ln1_g"], lp["ln1_b"], lp["w1"], lp["b1"],
               lp["w2"], lp["b2"], lp["ln2_g"], lp["ln2_b"]]

    kernel = functools.partial(_encoder_layer_kernel, n_heads=n_heads, eps=eps,
                               apply_input_ln=input_ln is not None)
    return pl.pallas_call(
        kernel,
        out_shape=jax.ShapeDtypeStruct((B, S, H), jnp.bfloat16),
        grid=(B,),
        in_specs=[pl.BlockSpec((1, S, H), lambda b: (b, 0, 0)),   # x (one batch slice)
                  pl.BlockSpec((1, 1, S), lambda b: (b, 0, 0))]   # additive mask
                 + ln0_specs
                 + [_replicated_spec(a.shape) for a in weights],
        out_specs=pl.BlockSpec((1, S, H), lambda b: (b, 0, 0)),
        compiler_params=pltpu.CompilerParams(
            dimension_semantics=("parallel",),
            vmem_limit_bytes=64 * 1024 * 1024),
    )(x, mask_add, *ln0_inputs, *weights)


# --------------------------------------------------------------------------
# Fused [CLS] extraction + pooler + classifier kernel
# --------------------------------------------------------------------------

def _pooler_classifier_kernel(x_ref, wp_ref, bp_ref, wfc_ref, bfc_ref, o_ref):
    h_cls = x_ref[...][:, 0, :].astype(jnp.bfloat16)          # [B, H]  ([CLS] token)
    pooled = jnp.tanh(jnp.dot(h_cls, wp_ref[...],
                              preferred_element_type=jnp.float32) + bp_ref[...])
    o_ref[...] = jnp.dot(pooled.astype(jnp.bfloat16), wfc_ref[...],
                         preferred_element_type=jnp.float32) + bfc_ref[...]


def pooler_classifier(x, wp, bp, wfc_pad, bfc_pad):
    B = x.shape[0]
    CPAD = wfc_pad.shape[1]
    return pl.pallas_call(
        _pooler_classifier_kernel,
        out_shape=jax.ShapeDtypeStruct((B, CPAD), jnp.float32),
        in_specs=[pl.BlockSpec(memory_space=pltpu.MemorySpace.VMEM)] * 5,
        out_specs=pl.BlockSpec(memory_space=pltpu.MemorySpace.VMEM),
    )(x, wp, bp, wfc_pad, bfc_pad)


# --------------------------------------------------------------------------
# Model: synthetic "bert-base-like" (small) + classifier head
# --------------------------------------------------------------------------

def init_params(key, *, vocab, max_pos, hidden, n_layers, n_heads, inter, num_classes):
    def nrm(k, shape):
        return jax.random.normal(k, shape, dtype=jnp.float32) * 0.02

    keys = jax.random.split(key, 4 + n_layers)
    params = {
        "word_emb": nrm(keys[0], (vocab, hidden)),
        "pos_emb": nrm(keys[1], (max_pos, hidden)),
        "type_emb": nrm(keys[2], (2, hidden)),
        "emb_ln_g": jnp.ones((hidden,), jnp.float32),
        "emb_ln_b": jnp.zeros((hidden,), jnp.float32),
        "layers": [],
    }
    for i in range(n_layers):
        lk = jax.random.split(keys[3 + i], 6)
        params["layers"].append({
            "wq": nrm(lk[0], (hidden, hidden)), "bq": jnp.zeros((hidden,), jnp.float32),
            "wk": nrm(lk[1], (hidden, hidden)), "bk": jnp.zeros((hidden,), jnp.float32),
            "wv": nrm(lk[2], (hidden, hidden)), "bv": jnp.zeros((hidden,), jnp.float32),
            "wo": nrm(lk[3], (hidden, hidden)), "bo": jnp.zeros((hidden,), jnp.float32),
            "ln1_g": jnp.ones((hidden,), jnp.float32), "ln1_b": jnp.zeros((hidden,), jnp.float32),
            "w1": nrm(lk[4], (hidden, inter)), "b1": jnp.zeros((inter,), jnp.float32),
            "w2": nrm(lk[5], (inter, hidden)), "b2": jnp.zeros((hidden,), jnp.float32),
            "ln2_g": jnp.ones((hidden,), jnp.float32), "ln2_b": jnp.zeros((hidden,), jnp.float32),
        })
    pk1, pk2 = jax.random.split(keys[-1])
    params["pool_w"] = nrm(pk1, (hidden, hidden))
    params["pool_b"] = jnp.zeros((hidden,), jnp.float32)
    params["fc_w"] = nrm(pk2, (hidden, num_classes))
    params["fc_b"] = jnp.zeros((num_classes,), jnp.float32)
    return params


def prepare_params(params, lane_pad=128):
    """Fuse Q|K|V weights into [H,3H], cast matmul weights to bf16 (f32 accumulation
    stays inside the kernels), reshape biases / LN params to lane-major 2D, and
    zero-pad the classifier to a 128-lane-dense output."""
    H = params["word_emb"].shape[1]
    prep = {
        "word_emb": params["word_emb"],
        "pos_emb": params["pos_emb"],
        "type_emb": params["type_emb"],
        "emb_ln_g": params["emb_ln_g"].reshape(1, H),
        "emb_ln_b": params["emb_ln_b"].reshape(1, H),
        "layers": [],
    }
    for l in params["layers"]:
        wqkv = jnp.concatenate([l["wq"], l["wk"], l["wv"]], axis=1)   # [H, 3H]
        bqkv = jnp.concatenate([l["bq"], l["bk"], l["bv"]], axis=0)   # [3H]
        prep["layers"].append({
            "wqkv": wqkv.astype(jnp.bfloat16), "bqkv": bqkv.reshape(1, -1),
            "wo": l["wo"].astype(jnp.bfloat16), "bo": l["bo"].reshape(1, -1),
            "ln1_g": l["ln1_g"].reshape(1, -1), "ln1_b": l["ln1_b"].reshape(1, -1),
            "w1": l["w1"].astype(jnp.bfloat16), "b1": l["b1"].reshape(1, -1),
            "w2": l["w2"].astype(jnp.bfloat16), "b2": l["b2"].reshape(1, -1),
            "ln2_g": l["ln2_g"].reshape(1, -1), "ln2_b": l["ln2_b"].reshape(1, -1),
        })
    prep["pool_w"] = params["pool_w"].astype(jnp.bfloat16)
    prep["pool_b"] = params["pool_b"].reshape(1, -1)
    C = params["fc_w"].shape[1]
    cpad = ((C + lane_pad - 1) // lane_pad) * lane_pad
    fc_w_pad = jnp.zeros((H, cpad), jnp.float32).at[:, :C].set(params["fc_w"])
    fc_b_pad = jnp.zeros((cpad,), jnp.float32).at[:C].set(params["fc_b"])
    prep["fc_w"] = fc_w_pad.astype(jnp.bfloat16)
    prep["fc_b"] = fc_b_pad.reshape(1, -1)
    return prep


def bert_classifier_forward(prep, input_ids, attention_mask, *, n_heads, num_classes):
    B, S = input_ids.shape

    # ---- embeddings (gathers are glue; stay in plain JAX), emitted in bf16 ----
    # TODO(synk): token_type_ids assumed all-zero (segment 0), matching the reference
    # module's bert(input_ids, attention_mask) call with default token types.
    x = (prep["word_emb"][input_ids]
         + prep["pos_emb"][:S][None, :, :]
         + prep["type_emb"][0][None, None, :]).astype(jnp.bfloat16)     # [B, S, H]

    # additive attention mask: 0 keep / -10000 masked, broadcast over heads & queries
    mask_add = ((1.0 - attention_mask.astype(jnp.float32)) * -10000.0)[:, None, :]  # [B,1,S]

    # ---- transformer encoder: one fused pallas_call per layer ----
    # (embedding LayerNorm fused into layer 0; bf16 activations between layers)
    for i, lp in enumerate(prep["layers"]):
        input_ln = (prep["emb_ln_g"], prep["emb_ln_b"]) if i == 0 else None
        x = encoder_layer(x, mask_add, lp, n_heads=n_heads, input_ln=input_ln)

    # ---- [CLS] extraction + pooler (tanh) + classifier head, fused, lane-padded ----
    logits_pad = pooler_classifier(x, prep["pool_w"], prep["pool_b"],
                                   prep["fc_w"], prep["fc_b"])
    return logits_pad[:, :num_classes]


# --------------------------------------------------------------------------
# Main
# --------------------------------------------------------------------------

if __name__ == "__main__":
    B, S = 2, 8
    cfg = dict(vocab=100, max_pos=16, hidden=32, n_layers=2, n_heads=4, inter=64)
    num_classes = 3

    params = init_params(jax.random.PRNGKey(0), num_classes=num_classes, **cfg)
    prep = prepare_params(params)

    k_ids, _ = jax.random.split(jax.random.PRNGKey(0))
    input_ids = jax.random.randint(k_ids, (B, S), 0, cfg["vocab"], dtype=jnp.int32)
    attention_mask = jnp.array([[1, 1, 1, 1, 1, 1, 0, 0],
                                [1, 1, 1, 1, 1, 1, 1, 1]], dtype=jnp.int32)

    fwd = jax.jit(functools.partial(bert_classifier_forward,
                                    n_heads=cfg["n_heads"], num_classes=num_classes))
    logits = jax.block_until_ready(fwd(prep, input_ids, attention_mask))

    assert logits.shape == (B, num_classes)
    assert bool(jnp.all(jnp.isfinite(logits)))
    print("KERNEL_OK")
</pallas_src>

<mosaic_0001>
module attributes {stable_mosaic.version = 11 : i64} {
  func.func @_pooler_classifier_kernel(%arg0: memref<2x8x32xbf16, #tpu.memory_space<vmem>>, %arg1: memref<32x32xbf16, #tpu.memory_space<vmem>>, %arg2: memref<1x32xf32, #tpu.memory_space<vmem>>, %arg3: memref<32x128xbf16, #tpu.memory_space<vmem>>, %arg4: memref<1x128xf32, #tpu.memory_space<vmem>>, %arg5: memref<2x128xf32, #tpu.memory_space<vmem>>) attributes {dimension_semantics = [], scalar_prefetch = 0 : i64, scratch_operands = 0 : i64, tpu.core_type = #tpu.core_type<tc>} {
    %c0 = arith.constant 0 : index
    %c0_0 = arith.constant 0 : index
    %c0_1 = arith.constant 0 : index
    %0 = vector.load %arg0[%c0, %c0_0, %c0_1] : memref<2x8x32xbf16, #tpu.memory_space<vmem>>, vector<2x8x32xbf16>
    %1 = vector.extract_strided_slice %0 {offsets = [0, 0, 0], sizes = [2, 1, 32], strides = [1, 1, 1]} : vector<2x8x32xbf16> to vector<2x1x32xbf16>
    %2 = vector.shape_cast %1 : vector<2x1x32xbf16> to vector<2x32xbf16>
    %c0_2 = arith.constant 0 : index
    %c0_3 = arith.constant 0 : index
    %3 = vector.load %arg1[%c0_2, %c0_3] : memref<32x32xbf16, #tpu.memory_space<vmem>>, vector<32x32xbf16>
    %cst = arith.constant dense<0.000000e+00> : vector<2x32xf32>
    %4 = tpu.matmul %2, %3, %cst {dimension_numbers = #tpu.dot_dimension_numbers<[1], [0], [0], [1], [0, 0, 1, 1], [], []>} : vector<2x32xbf16>, vector<32x32xbf16>, vector<2x32xf32> -> vector<2x32xf32>
    %c0_4 = arith.constant 0 : index
    %c0_5 = arith.constant 0 : index
    %5 = vector.load %arg2[%c0_4, %c0_5] : memref<1x32xf32, #tpu.memory_space<vmem>>, vector<1x32xf32>
    %6 = vector.broadcast %5 : vector<1x32xf32> to vector<2x32xf32>
    %7 = arith.addf %4, %6 : vector<2x32xf32>
    %8 = math.tanh %7 : vector<2x32xf32>
    %9 = arith.truncf %8 : vector<2x32xf32> to vector<2x32xbf16>
    %c0_6 = arith.constant 0 : index
    %c0_7 = arith.constant 0 : index
    %10 = vector.load %arg3[%c0_6, %c0_7] : memref<32x128xbf16, #tpu.memory_space<vmem>>, vector<32x128xbf16>
    %cst_8 = arith.constant dense<0.000000e+00> : vector<2x128xf32>
    %11 = tpu.matmul %9, %10, %cst_8 {dimension_numbers = #tpu.dot_dimension_numbers<[1], [0], [0], [1], [0, 0, 1, 1], [], []>} : vector<2x32xbf16>, vector<32x128xbf16>, vector<2x128xf32> -> vector<2x128xf32>
    %c0_9 = arith.constant 0 : index
    %c0_10 = arith.constant 0 : index
    %12 = vector.load %arg4[%c0_9, %c0_10] : memref<1x128xf32, #tpu.memory_space<vmem>>, vector<1x128xf32>
    %13 = vector.broadcast %12 : vector<1x128xf32> to vector<2x128xf32>
    %14 = arith.addf %11, %13 : vector<2x128xf32>
    %c0_11 = arith.constant 0 : index
    %c0_12 = arith.constant 0 : index
    %15 = vector.load %arg5[%c0_11, %c0_12] : memref<2x128xf32, #tpu.memory_space<vmem>>, vector<2x128xf32>
    tpu.vector_store %arg5[%c0_11, %c0_12], %14 {strides = array<i32>} : memref<2x128xf32, #tpu.memory_space<vmem>>, vector<2x128xf32>,
    return
  }
}

module attributes {stable_mosaic.version = 11 : i64} {
  func.func @_encoder_layer_kernel(%arg0: i32, %arg1: memref<1x8x32xbf16, #tpu.memory_space<vmem>>, %arg2: memref<1x1x8xf32, #tpu.memory_space<vmem>>, %arg3: memref<1x32xf32, #tpu.memory_space<vmem>>, %arg4: memref<1x32xf32, #tpu.memory_space<vmem>>, %arg5: memref<32x96xbf16, #tpu.memory_space<vmem>>, %arg6: memref<1x96xf32, #tpu.memory_space<vmem>>, %arg7: memref<32x32xbf16, #tpu.memory_space<vmem>>, %arg8: memref<1x32xf32, #tpu.memory_space<vmem>>, %arg9: memref<1x32xf32, #tpu.memory_space<vmem>>, %arg10: memref<1x32xf32, #tpu.memory_space<vmem>>, %arg11: memref<32x64xbf16, #tpu.memory_space<vmem>>, %arg12: memref<1x64xf32, #tpu.memory_space<vmem>>, %arg13: memref<64x32xbf16, #tpu.memory_space<vmem>>, %arg14: memref<1x32xf32, #tpu.memory_space<vmem>>, %arg15: memref<1x32xf32, #tpu.memory_space<vmem>>, %arg16: memref<1x32xf32, #tpu.memory_space<vmem>>, %arg17: memref<1x8x32xbf16, #tpu.memory_space<vmem>>) attributes {dimension_semantics = [#tpu.dimension_semantics<parallel>], iteration_bounds = array<i64: 2>, scalar_prefetch = 0 : i64, scratch_operands = 0 : i64, tpu.core_type = #tpu.core_type<tc>, window_params = [{transform_indices = @transform_0, window_bounds = array<i64: 1, 8, 32>}, {transform_indices = @transform_1, window_bounds = array<i64: 1, 1, 8>}, {pipeline_mode = #tpu.pipeline_mode<synchronous>, transform_indices = @transform_2, window_bounds = array<i64: 1, 32>}, {pipeline_mode = #tpu.pipeline_mode<synchronous>, transform_indices = @transform_3, window_bounds = array<i64: 1, 32>}, {pipeline_mode = #tpu.pipeline_mode<synchronous>, transform_indices = @transform_4, window_bounds = array<i64: 32, 96>}, {pipeline_mode = #tpu.pipeline_mode<synchronous>, transform_indices = @transform_5, window_bounds = array<i64: 1, 96>}, {pipeline_mode = #tpu.pipeline_mode<synchronous>, transform_indices = @transform_6, window_bounds = array<i64: 32, 32>}, {pipeline_mode = #tpu.pipeline_mode<synchronous>, transform_indices = @transform_7, window_bounds = array<i64: 1, 32>}, {pipeline_mode = #tpu.pipeline_mode<synchronous>, transform_indices = @transform_8, window_bounds = array<i64: 1, 32>}, {pipeline_mode = #tpu.pipeline_mode<synchronous>, transform_indices = @transform_9, window_bounds = array<i64: 1, 32>}, {pipeline_mode = #tpu.pipeline_mode<synchronous>, transform_indices = @transform_10, window_bounds = array<i64: 32, 64>}, {pipeline_mode = #tpu.pipeline_mode<synchronous>, transform_indices = @transform_11, window_bounds = array<i64: 1, 64>}, {pipeline_mode = #tpu.pipeline_mode<synchronous>, transform_indices = @transform_12, window_bounds = array<i64: 64, 32>}, {pipeline_mode = #tpu.pipeline_mode<synchronous>, transform_indices = @transform_13, window_bounds = array<i64: 1, 32>}, {pipeline_mode = #tpu.pipeline_mode<synchronous>, transform_indices = @transform_14, window_bounds = array<i64: 1, 32>}, {pipeline_mode = #tpu.pipeline_mode<synchronous>, transform_indices = @transform_15, window_bounds = array<i64: 1, 32>}, {transform_indices = @transform_16, window_bounds = array<i64: 1, 8, 32>}]} {
    %c0 = arith.constant 0 : index
    %c0_0 = arith.constant 0 : index
    %c0_1 = arith.constant 0 : index
    %0 = vector.load %arg1[%c0, %c0_0, %c0_1] : memref<1x8x32xbf16, #tpu.memory_space<vmem>>, vector<1x8x32xbf16>
    %1 = vector.shape_cast %0 : vector<1x8x32xbf16> to vector<8x32xbf16>
    %2 = arith.extf %1 : vector<8x32xbf16> to vector<8x32xf32>
    %c0_2 = arith.constant 0 : index
    %c0_3 = arith.constant 0 : index
    %3 = vector.load %arg3[%c0_2, %c0_3] : memref<1x32xf32, #tpu.memory_space<vmem>>, vector<1x32xf32>
    %c0_4 = arith.constant 0 : index
    %c0_5 = arith.constant 0 : index
    %4 = vector.load %arg4[%c0_4, %c0_5] : memref<1x32xf32, #tpu.memory_space<vmem>>, vector<1x32xf32>
    %cst = arith.constant dense<0.000000e+00> : vector<8xf32>
    %5 = vector.multi_reduction <add>, %2, %cst [1] : vector<8x32xf32> to vector<8xf32>
    %6 = vector.shape_cast %5 : vector<8xf32> to vector<8x1xf32>
    %cst_6 = arith.constant 3.200000e+01 : f32
    %7 = vector.broadcast %cst_6 : f32 to vector<8x1xf32>
    %8 = arith.divf %6, %7 : vector<8x1xf32>
    %9 = vector.broadcast %8 : vector<8x1xf32> to vector<8x32xf32>
    %10 = arith.subf %2, %9 : vector<8x32xf32>
    %11 = vector.broadcast %8 : vector<8x1xf32> to vector<8x32xf32>
    %12 = arith.subf %2, %11 : vector<8x32xf32>
    %13 = arith.mulf %10, %12 : vector<8x32xf32>
    %cst_7 = arith.constant dense<0.000000e+00> : vector<8xf32>
    %14 = vector.multi_reduction <add>, %13, %cst_7 [1] : vector<8x32xf32> to vector<8xf32>
    %15 = vector.shape_cast %14 : vector<8xf32> to vector<8x1xf32>
    %cst_8 = arith.constant 3.200000e+01 : f32
    %16 = vector.broadcast %cst_8 : f32 to vector<8x1xf32>
    %17 = arith.divf %15, %16 : vector<8x1xf32>
    %18 = vector.broadcast %8 : vector<8x1xf32> to vector<8x32xf32>
    %19 = arith.subf %2, %18 : vector<8x32xf32>
    %cst_9 = arith.constant 9.99999996E-13 : f32
    %20 = vector.broadcast %cst_9 : f32 to vector<8x1xf32>
    %21 = arith.addf %17, %20 : vector<8x1xf32>
    %22 = math.rsqrt %21 : vector<8x1xf32>
    %23 = vector.broadcast %22 : vector<8x1xf32> to vector<8x32xf32>
    %24 = arith.mulf %19, %23 : vector<8x32xf32>
    %25 = vector.broadcast %3 : vector<1x32xf32> to vector<8x32xf32>
    %26 = arith.mulf %24, %25 : vector<8x32xf32>
    %27 = vector.broadcast %4 : vector<1x32xf32> to vector<8x32xf32>
    %28 = arith.addf %26, %27 : vector<8x32xf32>
    %29 = arith.truncf %28 : vector<8x32xf32> to vector<8x32xbf16>
    %c0_10 = arith.constant 0 : index
    %c0_11 = arith.constant 0 : index
    %30 = vector.load %arg5[%c0_10, %c0_11] : memref<32x96xbf16, #tpu.memory_space<vmem>>, vector<32x96xbf16>
    %cst_12 = arith.constant dense<0.000000e+00> : vector<8x96xf32>
    %31 = tpu.matmul %29, %30, %cst_12 {dimension_numbers = #tpu.dot_dimension_numbers<[1], [0], [0], [1], [0, 0, 1, 1], [], []>} : vector<8x32xbf16>, vector<32x96xbf16>, vector<8x96xf32> -> vector<8x96xf32>
    %c0_13 = arith.constant 0 : index
    %c0_14 = arith.constant 0 : index
    %32 = vector.load %arg6[%c0_13, %c0_14] : memref<1x96xf32, #tpu.memory_space<vmem>>, vector<1x96xf32>
    %33 = vector.broadcast %32 : vector<1x96xf32> to vector<8x96xf32>
    %34 = arith.addf %31, %33 : vector<8x96xf32>
    %35 = vector.extract_strided_slice %34 {offsets = [0, 0], sizes = [8, 32], strides = [1, 1]} : vector<8x96xf32> to vector<8x32xf32>
    %cst_15 = arith.constant 0.353553385 : f32
    %36 = vector.broadcast %cst_15 : f32 to vector<8x32xf32>
    %37 = arith.mulf %35, %36 : vector<8x32xf32>
    %38 = arith.truncf %37 : vector<8x32xf32> to vector<8x32xbf16>
    %39 = vector.extract_strided_slice %34 {offsets = [0, 32], sizes = [8, 32], strides = [1, 1]} : vector<8x96xf32> to vector<8x32xf32>
    %40 = arith.truncf %39 : vector<8x32xf32> to vector<8x32xbf16>
    %41 = vector.extract_strided_slice %34 {offsets = [0, 64], sizes = [8, 32], strides = [1, 1]} : vector<8x96xf32> to vector<8x32xf32>
    %42 = arith.truncf %41 : vector<8x32xf32> to vector<8x32xbf16>
    %c0_16 = arith.constant 0 : index
    %c0_17 = arith.constant 0 : index
    %c0_18 = arith.constant 0 : index
    %43 = vector.load %arg2[%c0_16, %c0_17, %c0_18] : memref<1x1x8xf32, #tpu.memory_space<vmem>>, vector<1x1x8xf32>
    %44 = vector.shape_cast %43 : vector<1x1x8xf32> to vector<1x8xf32>
    %45 = vector.shape_cast %44 : vector<1x8xf32> to vector<1x8xf32>
    %46 = vector.broadcast %45 : vector<1x8xf32> to vector<8x8xf32>
    %c0_19 = arith.constant 0 : index
    %c0_20 = arith.constant 0 : index
    %47 = vector.load %arg7[%c0_19, %c0_20] : memref<32x32xbf16, #tpu.memory_space<vmem>>, vector<32x32xbf16>
    %48 = vector.extract_strided_slice %38 {offsets = [0, 0], sizes = [8, 8], strides = [1, 1]} : vector<8x32xbf16> to vector<8x8xbf16>
    %49 = vector.extract_strided_slice %40 {offsets = [0, 0], sizes = [8, 8], strides = [1, 1]} : vector<8x32xbf16> to vector<8x8xbf16>
    %cst_21 = arith.constant dense<0.000000e+00> : vector<8x8xf32>
    %50 = tpu.matmul %48, %49, %cst_21 {dimension_numbers = #tpu.dot_dimension_numbers<[1], [1], [0], [0], [0, 0, 1, 0], [], []>} : vector<8x8xbf16>, vector<8x8xbf16>, vector<8x8xf32> -> vector<8x8xf32>
    %51 = arith.addf %50, %46 : vector<8x8xf32>
    %cst_22 = arith.constant dense<0xFF800000> : vector<8xf32>
    %52 = vector.multi_reduction <maximumf>, %51, %cst_22 [1] : vector<8x8xf32> to vector<8xf32>
    %53 = vector.shape_cast %52 : vector<8xf32> to vector<8x1xf32>
    %54 = vector.broadcast %53 : vector<8x1xf32> to vector<8x8xf32>
    %55 = arith.subf %51, %54 : vector<8x8xf32>
    %56 = math.exp %55 : vector<8x8xf32>
    %cst_23 = arith.constant dense<0.000000e+00> : vector<8xf32>
    %57 = vector.multi_reduction <add>, %56, %cst_23 [1] : vector<8x8xf32> to vector<8xf32>
    %58 = vector.shape_cast %57 : vector<8xf32> to vector<8x1xf32>
    %59 = tpu.reciprocal %58 {approx = true} : vector<8x1xf32> -> vector<8x1xf32>
    %60 = vector.broadcast %59 : vector<8x1xf32> to vector<8x8xf32>
    %61 = arith.mulf %56, %60 : vector<8x8xf32>
    %62 = arith.truncf %61 : vector<8x8xf32> to vector<8x8xbf16>
    %63 = vector.extract_strided_slice %42 {offsets = [0, 0], sizes = [8, 8], strides = [1, 1]} : vector<8x32xbf16> to vector<8x8xbf16>
    %cst_24 = arith.constant dense<0.000000e+00> : vector<8x8xf32>
    %64 = tpu.matmul %62, %63, %cst_24 {dimension_numbers = #tpu.dot_dimension_numbers<[1], [0], [0], [1], [0, 0, 1, 1], [], []>} : vector<8x8xbf16>, vector<8x8xbf16>, vector<8x8xf32> -> vector<8x8xf32>
    %65 = arith.truncf %64 : vector<8x8xf32> to vector<8x8xbf16>
    %66 = vector.extract_strided_slice %47 {offsets = [0, 0], sizes = [8, 32], strides = [1, 1]} : vector<32x32xbf16> to vector<8x32xbf16>
    %cst_25 = arith.constant dense<0.000000e+00> : vector<8x32xf32>
    %67 = tpu.matmul %65, %66, %cst_25 {dimension_numbers = #tpu.dot_dimension_numbers<[1], [0], [0], [1], [0, 0, 1, 1], [], []>} : vector<8x8xbf16>, vector<8x32xbf16>, vector<8x32xf32> -> vector<8x32xf32>
    %68 = vector.extract_strided_slice %38 {offsets = [0, 8], sizes = [8, 8], strides = [1, 1]} : vector<8x32xbf16> to vector<8x8xbf16>
    %69 = vector.extract_strided_slice %40 {offsets = [0, 8], sizes = [8, 8], strides = [1, 1]} : vector<8x32xbf16> to vector<8x8xbf16>
    %cst_26 = arith.constant dense<0.000000e+00> : vector<8x8xf32>
    %70 = tpu.matmul %68, %69, %cst_26 {dimension_numbers = #tpu.dot_dimension_numbers<[1], [1], [0], [0], [0, 0, 1, 0], [], []>} : vector<8x8xbf16>, vector<8x8xbf16>, vector<8x8xf32> -> vector<8x8xf32>
    %71 = arith.addf %70, %46 : vector<8x8xf32>
    %cst_27 = arith.constant dense<0xFF800000> : vector<8xf32>
    %72 = vector.multi_reduction <maximumf>, %71, %cst_27 [1] : vector<8x8xf32> to vector<8xf32>
    %73 = vector.shape_cast %72 : vector<8xf32> to vector<8x1xf32>
    %74 = vector.broadcast %73 : vector<8x1xf32> to vector<8x8xf32>
    %75 = arith.subf %71, %74 : vector<8x8xf32>
    %76 = math.exp %75 : vector<8x8xf32>
    %cst_28 = arith.constant dense<0.000000e+00> : vector<8xf32>
    %77 = vector.multi_reduction <add>, %76, %cst_28 [1] : vector<8x8xf32> to vector<8xf32>
    %78 = vector.shape_cast %77 : vector<8xf32> to vector<8x1xf32>
    %79 = tpu.reciprocal %78 {approx = true} : vector<8x1xf32> -> vector<8x1xf32>
    %80 = vector.broadcast %79 : vector<8x1xf32> to vector<8x8xf32>
    %81 = arith.mulf %76, %80 : vector<8x8xf32>
    %82 = arith.truncf %81 : vector<8x8xf32> to vector<8x8xbf16>
    %83 = vector.extract_strided_slice %42 {offsets = [0, 8], sizes = [8, 8], strides = [1, 1]} : vector<8x32xbf16> to vector<8x8xbf16>
    %cst_29 = arith.constant dense<0.000000e+00> : vector<8x8xf32>
    %84 = tpu.matmul %82, %83, %cst_29 {dimension_numbers = #tpu.dot_dimension_numbers<[1], [0], [0], [1], [0, 0, 1, 1], [], []>} : vector<8x8xbf16>, vector<8x8xbf16>, vector<8x8xf32> -> vector<8x8xf32>
    %85 = arith.truncf %84 : vector<8x8xf32> to vector<8x8xbf16>
    %86 = vector.extract_strided_slice %47 {offsets = [8, 0], sizes = [8, 32], strides = [1, 1]} : vector<32x32xbf16> to vector<8x32xbf16>
    %cst_30 = arith.constant dense<0.000000e+00> : vector<8x32xf32>
    %87 = tpu.matmul %85, %86, %cst_30 {dimension_numbers = #tpu.dot_dimension_numbers<[1], [0], [0], [1], [0, 0, 1, 1], [], []>} : vector<8x8xbf16>, vector<8x32xbf16>, vector<8x32xf32> -> vector<8x32xf32>
    %88 = arith.addf %67, %87 : vector<8x32xf32>
    %89 = vector.extract_strided_slice %38 {offsets = [0, 16], sizes = [8, 8], strides = [1, 1]} : vector<8x32xbf16> to vector<8x8xbf16>
    %90 = vector.extract_strided_slice %40 {offsets = [0, 16], sizes = [8, 8], strides = [1, 1]} : vector<8x32xbf16> to vector<8x8xbf16>
    %cst_31 = arith.constant dense<0.000000e+00> : vector<8x8xf32>
    %91 = tpu.matmul %89, %90, %cst_31 {dimension_numbers = #tpu.dot_dimension_numbers<[1], [1], [0], [0], [0, 0, 1, 0], [], []>} : vector<8x8xbf16>, vector<8x8xbf16>, vector<8x8xf32> -> vector<8x8xf32>
    %92 = arith.addf %91, %46 : vector<8x8xf32>
    %cst_32 = arith.constant dense<0xFF800000> : vector<8xf32>
    %93 = vector.multi_reduction <maximumf>, %92, %cst_32 [1] : vector<8x8xf32> to vector<8xf32>
    %94 = vector.shape_cast %93 : vector<8xf32> to vector<8x1xf32>
    %95 = vector.broadcast %94 : vector<8x1xf32> to vector<8x8xf32>
    %96 = arith.subf %92, %95 : vector<8x8xf32>
    %97 = math.exp %96 : vector<8x8xf32>
    %cst_33 = arith.constant dense<0.000000e+00> : vector<8xf32>
    %98 = vector.multi_reduction <add>, %97, %cst_33 [1] : vector<8x8xf32> to vector<8xf32>
    %99 = vector.shape_cast %98 : vector<8xf32> to vector<8x1xf32>
    %100 = tpu.reciprocal %99 {approx = true} : vector<8x1xf32> -> vector<8x1xf32>
    %101 = vector.broadcast %100 : vector<8x1xf32> to vector<8x8xf32>
    %102 = arith.mulf %97, %101 : vector<8x8xf32>
    %103 = arith.truncf %102 : vector<8x8xf32> to vector<8x8xbf16>
    %104 = vector.extract_strided_slice %42 {offsets = [0, 16], sizes = [8, 8], strides = [1, 1]} : vector<8x32xbf16> to vector<8x8xbf16>
    %cst_34 = arith.constant dense<0.000000e+00> : vector<8x8xf32>
    %105 = tpu.matmul %103, %104, %cst_34 {dimension_numbers = #tpu.dot_dimension_numbers<[1], [0], [0], [1], [0, 0, 1, 1], [], []>} : vector<8x8xbf16>, vector<8x8xbf16>, vector<8x8xf32> -> vector<8x8xf32>
    %106 = arith.truncf %105 : vector<8x8xf32> to vector<8x8xbf16>
    %107 = vector.extract_strided_slice %47 {offsets = [16, 0], sizes = [8, 32], strides = [1, 1]} : vector<32x32xbf16> to vector<8x32xbf16>
    %cst_35 = arith.constant dense<0.000000e+00> : vector<8x32xf32>
    %108 = tpu.matmul %106, %107, %cst_35 {dimension_numbers = #tpu.dot_dimension_numbers<[1], [0], [0], [1], [0, 0, 1, 1], [], []>} : vector<8x8xbf16>, vector<8x32xbf16>, vector<8x32xf32> -> vector<8x32xf32>
    %109 = arith.addf %88, %108 : vector<8x32xf32>
    %110 = vector.extract_strided_slice %38 {offsets = [0, 24], sizes = [8, 8], strides = [1, 1]} : vector<8x32xbf16> to vector<8x8xbf16>
    %111 = vector.extract_strided_slice %40 {offsets = [0, 24], sizes = [8, 8], strides = [1, 1]} : vector<8x32xbf16> to vector<8x8xbf16>
    %cst_36 = arith.constant dense<0.000000e+00> : vector<8x8xf32>
    %112 = tpu.matmul %110, %111, %cst_36 {dimension_numbers = #tpu.dot_dimension_numbers<[1], [1], [0], [0], [0, 0, 1, 0], [], []>} : vector<8x8xbf16>, vector<8x8xbf16>, vector<8x8xf32> -> vector<8x8xf32>
    %113 = arith.addf %112, %46 : vector<8x8xf32>
    %cst_37 = arith.constant dense<0xFF800000> : vector<8xf32>
    %114 = vector.multi_reduction <maximumf>, %113, %cst_37 [1] : vector<8x8xf32> to vector<8xf32>
    %115 = vector.shape_cast %114 : vector<8xf32> to vector<8x1xf32>
    %116 = vector.broadcast %115 : vector<8x1xf32> to vector<8x8xf32>
    %117 = arith.subf %113, %116 : vector<8x8xf32>
    %118 = math.exp %117 : vector<8x8xf32>
    %cst_38 = arith.constant dense<0.000000e+00> : vector<8xf32>
    %119 = vector.multi_reduction <add>, %118, %cst_38 [1] : vector<8x8xf32> to vector<8xf32>
    %120 = vector.shape_cast %119 : vector<8xf32> to vector<8x1xf32>
    %121 = tpu.reciprocal %120 {approx = true} : vector<8x1xf32> -> vector<8x1xf32>
    %122 = vector.broadcast %121 : vector<8x1xf32> to vector<8x8xf32>
    %123 = arith.mulf %118, %122 : vector<8x8xf32>
    %124 = arith.truncf %123 : vector<8x8xf32> to vector<8x8xbf16>
    %125 = vector.extract_strided_slice %42 {offsets = [0, 24], sizes = [8, 8], strides = [1, 1]} : vector<8x32xbf16> to vector<8x8xbf16>
    %cst_39 = arith.constant dense<0.000000e+00> : vector<8x8xf32>
    %126 = tpu.matmul %124, %125, %cst_39 {dimension_numbers = #tpu.dot_dimension_numbers<[1], [0], [0], [1], [0, 0, 1, 1], [], []>} : vector<8x8xbf16>, vector<8x8xbf16>, vector<8x8xf32> -> vector<8x8xf32>
    %127 = arith.truncf %126 : vector<8x8xf32> to vector<8x8xbf16>
    %128 = vector.extract_strided_slice %47 {offsets = [24, 0], sizes = [8, 32], strides = [1, 1]} : vector<32x32xbf16> to vector<8x32xbf16>
    %cst_40 = arith.constant dense<0.000000e+00> : vector<8x32xf32>
    %129 = tpu.matmul %127, %128, %cst_40 {dimension_numbers = #tpu.dot_dimension_numbers<[1], [0], [0], [1], [0, 0, 1, 1], [], []>} : vector<8x8xbf16>, vector<8x32xbf16>, vector<8x32xf32> -> vector<8x32xf32>
    %130 = arith.addf %109, %129 : vector<8x32xf32>
    %c0_41 = arith.constant 0 : index
    %c0_42 = arith.constant 0 : index
    %131 = vector.load %arg8[%c0_41, %c0_42] : memref<1x32xf32, #tpu.memory_space<vmem>>, vector<1x32xf32>
    %132 = vector.broadcast %131 : vector<1x32xf32> to vector<8x32xf32>
    %133 = arith.addf %130, %132 : vector<8x32xf32>
    %134 = arith.addf %133, %28 : vector<8x32xf32>
    %c0_43 = arith.constant 0 : index
    %c0_44 = arith.constant 0 : index
    %135 = vector.load %arg9[%c0_43, %c0_44] : memref<1x32xf32, #tpu.memory_space<vmem>>, vector<1x32xf32>
    %c0_45 = arith.constant 0 : index
    %c0_46 = arith.constant 0 : index
    %136 = vector.load %arg10[%c0_45, %c0_46] : memref<1x32xf32, #tpu.memory_space<vmem>>, vector<1x32xf32>
    %cst_47 = arith.constant dense<0.000000e+00> : vector<8xf32>
    %137 = vector.multi_reduction <add>, %134, %cst_47 [1] : vector<8x32xf32> to vector<8xf32>
    %138 = vector.shape_cast %137 : vector<8xf32> to vector<8x1xf32>
    %cst_48 = arith.constant 3.200000e+01 : f32
    %139 = vector.broadcast %cst_48 : f32 to vector<8x1xf32>
    %140 = arith.divf %138, %139 : vector<8x1xf32>
    %141 = vector.broadcast %140 : vector<8x1xf32> to vector<8x32xf32>
    %142 = arith.subf %134, %141 : vector<8x32xf32>
    %143 = vector.broadcast %140 : vector<8x1xf32> to vector<8x32xf32>
    %144 = arith.subf %134, %143 : vector<8x32xf32>
    %145 = arith.mulf %142, %144 : vector<8x32xf32>
    %cst_49 = arith.constant dense<0.000000e+00> : vector<8xf32>
    %146 = vector.multi_reduction <add>, %145, %cst_49 [1] : vector<8x32xf32> to vector<8xf32>
    %147 = vector.shape_cast %146 : vector<8xf32> to vector<8x1xf32>
    %cst_50 = arith.constant 3.200000e+01 : f32
    %148 = vector.broadcast %cst_50 : f32 to vector<8x1xf32>
    %149 = arith.divf %147, %148 : vector<8x1xf32>
    %150 = vector.broadcast %140 : vector<8x1xf32> to vector<8x32xf32>
    %151 = arith.subf %134, %150 : vector<8x32xf32>
    %cst_51 = arith.constant 9.99999996E-13 : f32
    %152 = vector.broadcast %cst_51 : f32 to vector<8x1xf32>
    %153 = arith.addf %149, %152 : vector<8x1xf32>
    %154 = math.rsqrt %153 : vector<8x1xf32>
    %155 = vector.broadcast %154 : vector<8x1xf32> to vector<8x32xf32>
    %156 = arith.mulf %151, %155 : vector<8x32xf32>
    %157 = vector.broadcast %135 : vector<1x32xf32> to vector<8x32xf32>
    %158 = arith.mulf %156, %157 : vector<8x32xf32>
    %159 = vector.broadcast %136 : vector<1x32xf32> to vector<8x32xf32>
    %160 = arith.addf %158, %159 : vector<8x32xf32>
    %161 = arith.truncf %160 : vector<8x32xf32> to vector<8x32xbf16>
    %c0_52 = arith.constant 0 : index
    %c0_53 = arith.constant 0 : index
    %162 = vector.load %arg11[%c0_52, %c0_53] : memref<32x64xbf16, #tpu.memory_space<vmem>>, vector<32x64xbf16>
    %cst_54 = arith.constant dense<0.000000e+00> : vector<8x64xf32>
    %163 = tpu.matmul %161, %162, %cst_54 {dimension_numbers = #tpu.dot_dimension_numbers<[1], [0], [0], [1], [0, 0, 1, 1], [], []>} : vector<8x32xbf16>, vector<32x64xbf16>, vector<8x64xf32> -> vector<8x64xf32>
    %c0_55 = arith.constant 0 : index
    %c0_56 = arith.constant 0 : index
    %164 = vector.load %arg12[%c0_55, %c0_56] : memref<1x64xf32, #tpu.memory_space<vmem>>, vector<1x64xf32>
    %165 = vector.broadcast %164 : vector<1x64xf32> to vector<8x64xf32>
    %166 = arith.addf %163, %165 : vector<8x64xf32>
    %cst_57 = arith.constant 5.000000e-01 : f32
    %167 = vector.broadcast %cst_57 : f32 to vector<8x64xf32>
    %168 = arith.mulf %167, %166 : vector<8x64xf32>
    %cst_58 = arith.constant 4.471500e-02 : f32
    %169 = vector.broadcast %cst_58 : f32 to vector<8x64xf32>
    %170 = arith.mulf %169, %166 : vector<8x64xf32>
    %171 = arith.mulf %170, %166 : vector<8x64xf32>
    %172 = arith.mulf %171, %166 : vector<8x64xf32>
    %173 = arith.addf %166, %172 : vector<8x64xf32>
    %cst_59 = arith.constant 0.797884583 : f32
    %174 = vector.broadcast %cst_59 : f32 to vector<8x64xf32>
    %175 = arith.mulf %174, %173 : vector<8x64xf32>
    %176 = math.tanh %175 : vector<8x64xf32>
    %cst_60 = arith.constant 1.000000e+00 : f32
    %177 = vector.broadcast %cst_60 : f32 to vector<8x64xf32>
    %178 = arith.addf %177, %176 : vector<8x64xf32>
    %179 = arith.mulf %168, %178 : vector<8x64xf32>
    %180 = arith.truncf %179 : vector<8x64xf32> to vector<8x64xbf16>
    %c0_61 = arith.constant 0 : index
    %c0_62 = arith.constant 0 : index
    %181 = vector.load %arg13[%c0_61, %c0_62] : memref<64x32xbf16, #tpu.memory_space<vmem>>, vector<64x32xbf16>
    %cst_63 = arith.constant dense<0.000000e+00> : vector<8x32xf32>
    %182 = tpu.matmul %180, %181, %cst_63 {dimension_numbers = #tpu.dot_dimension_numbers<[1], [0], [0], [1], [0, 0, 1, 1], [], []>} : vector<8x64xbf16>, vector<64x32xbf16>, vector<8x32xf32> -> vector<8x32xf32>
    %c0_64 = arith.constant 0 : index
    %c0_65 = arith.constant 0 : index
    %183 = vector.load %arg14[%c0_64, %c0_65] : memref<1x32xf32, #tpu.memory_space<vmem>>, vector<1x32xf32>
    %184 = vector.broadcast %183 : vector<1x32xf32> to vector<8x32xf32>
    %185 = arith.addf %182, %184 : vector<8x32xf32>
    %186 = arith.addf %185, %160 : vector<8x32xf32>
    %c0_66 = arith.constant 0 : index
    %c0_67 = arith.constant 0 : index
    %187 = vector.load %arg15[%c0_66, %c0_67] : memref<1x32xf32, #tpu.memory_space<vmem>>, vector<1x32xf32>
    %c0_68 = arith.constant 0 : index
    %c0_69 = arith.constant 0 : index
    %188 = vector.load %arg16[%c0_68, %c0_69] : memref<1x32xf32, #tpu.memory_space<vmem>>, vector<1x32xf32>
    %cst_70 = arith.constant dense<0.000000e+00> : vector<8xf32>
    %189 = vector.multi_reduction <add>, %186, %cst_70 [1] : vector<8x32xf32> to vector<8xf32>
    %190 = vector.shape_cast %189 : vector<8xf32> to vector<8x1xf32>
    %cst_71 = arith.constant 3.200000e+01 : f32
    %191 = vector.broadcast %cst_71 : f32 to vector<8x1xf32>
    %192 = arith.divf %190, %191 : vector<8x1xf32>
    %193 = vector.broadcast %192 : vector<8x1xf32> to vector<8x32xf32>
    %194 = arith.subf %186, %193 : vector<8x32xf32>
    %195 = vector.broadcast %192 : vector<8x1xf32> to vector<8x32xf32>
    %196 = arith.subf %186, %195 : vector<8x32xf32>
    %197 = arith.mulf %194, %196 : vector<8x32xf32>
    %cst_72 = arith.constant dense<0.000000e+00> : vector<8xf32>
    %198 = vector.multi_reduction <add>, %197, %cst_72 [1] : vector<8x32xf32> to vector<8xf32>
    %199 = vector.shape_cast %198 : vector<8xf32> to vector<8x1xf32>
    %cst_73 = arith.constant 3.200000e+01 : f32
    %200 = vector.broadcast %cst_73 : f32 to vector<8x1xf32>
    %201 = arith.divf %199, %200 : vector<8x1xf32>
    %202 = vector.broadcast %192 : vector<8x1xf32> to vector<8x32xf32>
    %203 = arith.subf %186, %202 : vector<8x32xf32>
    %cst_74 = arith.constant 9.99999996E-13 : f32
    %204 = vector.broadcast %cst_74 : f32 to vector<8x1xf32>
    %205 = arith.addf %201, %204 : vector<8x1xf32>
    %206 = math.rsqrt %205 : vector<8x1xf32>
    %207 = vector.broadcast %206 : vector<8x1xf32> to vector<8x32xf32>
    %208 = arith.mulf %203, %207 : vector<8x32xf32>
    %209 = vector.broadcast %187 : vector<1x32xf32> to vector<8x32xf32>
    %210 = arith.mulf %208, %209 : vector<8x32xf32>
    %211 = vector.broadcast %188 : vector<1x32xf32> to vector<8x32xf32>
    %212 = arith.addf %210, %211 : vector<8x32xf32>
    %213 = arith.truncf %212 : vector<8x32xf32> to vector<8x32xbf16>
    %c0_75 = arith.constant 0 : index
    %c0_76 = arith.constant 0 : index
    %c0_77 = arith.constant 0 : index
    %214 = vector.load %arg17[%c0_75, %c0_76, %c0_77] : memref<1x8x32xbf16, #tpu.memory_space<vmem>>, vector<1x8x32xbf16>
    %215 = vector.shape_cast %214 : vector<1x8x32xbf16> to vector<8x32xbf16>
    %216 = vector.shape_cast %213 : vector<8x32xbf16> to vector<1x8x32xbf16>
    tpu.vector_store %arg17[%c0_75, %c0_76, %c0_77], %216 {strides = array<i32>} : memref<1x8x32xbf16, #tpu.memory_space<vmem>>, vector<1x8x32xbf16>,
    return
  }
  func.func @transform_0(%arg0: i32) -> (i32, i32, i32) {
    %c0_i32 = arith.constant 0 : i32
    %c0_i32_0 = arith.constant 0 : i32
    %c0_i32_1 = arith.constant 0 : i32
    return %arg0, %c0_i32, %c0_i32_0 : i32, i32, i32
  }
  func.func @transform_1(%arg0: i32) -> (i32, i32, i32) {
    %c0_i32 = arith.constant 0 : i32
    %c0_i32_0 = arith.constant 0 : i32
    %c0_i32_1 = arith.constant 0 : i32
    return %arg0, %c0_i32, %c0_i32_0 : i32, i32, i32
  }
  func.func @transform_2(%arg0: i32) -> (i32, i32) {
    %c0_i32 = arith.constant 0 : i32
    %c0_i32_0 = arith.constant 0 : i32
    %c0_i32_1 = arith.constant 0 : i32
    return %c0_i32, %c0_i32_0 : i32, i32
  }
  func.func @transform_3(%arg0: i32) -> (i32, i32) {
    %c0_i32 = arith.constant 0 : i32
    %c0_i32_0 = arith.constant 0 : i32
    %c0_i32_1 = arith.constant 0 : i32
    return %c0_i32, %c0_i32_0 : i32, i32
  }
  func.func @transform_4(%arg0: i32) -> (i32, i32) {
    %c0_i32 = arith.constant 0 : i32
    %c0_i32_0 = arith.constant 0 : i32
    %c0_i32_1 = arith.constant 0 : i32
    return %c0_i32, %c0_i32_0 : i32, i32
  }
  func.func @transform_5(%arg0: i32) -> (i32, i32) {
    %c0_i32 = arith.constant 0 : i32
    %c0_i32_0 = arith.constant 0 : i32
    %c0_i32_1 = arith.constant 0 : i32
    return %c0_i32, %c0_i32_0 : i32, i32
  }
  func.func @transform_6(%arg0: i32) -> (i32, i32) {
    %c0_i32 = arith.constant 0 : i32
    %c0_i32_0 = arith.constant 0 : i32
    %c0_i32_1 = arith.constant 0 : i32
    return %c0_i32, %c0_i32_0 : i32, i32
  }
  func.func @transform_7(%arg0: i32) -> (i32, i32) {
    %c0_i32 = arith.constant 0 : i32
    %c0_i32_0 = arith.constant 0 : i32
    %c0_i32_1 = arith.constant 0 : i32
    return %c0_i32, %c0_i32_0 : i32, i32
  }
  func.func @transform_8(%arg0: i32) -> (i32, i32) {
    %c0_i32 = arith.constant 0 : i32
    %c0_i32_0 = arith.constant 0 : i32
    %c0_i32_1 = arith.constant 0 : i32
    return %c0_i32, %c0_i32_0 : i32, i32
  }
  func.func @transform_9(%arg0: i32) -> (i32, i32) {
    %c0_i32 = arith.constant 0 : i32
    %c0_i32_0 = arith.constant 0 : i32
    %c0_i32_1 = arith.constant 0 : i32
    return %c0_i32, %c0_i32_0 : i32, i32
  }
  func.func @transform_10(%arg0: i32) -> (i32, i32) {
    %c0_i32 = arith.constant 0 : i32
    %c0_i32_0 = arith.constant 0 : i32
    %c0_i32_1 = arith.constant 0 : i32
    return %c0_i32, %c0_i32_0 : i32, i32
  }
  func.func @transform_11(%arg0: i32) -> (i32, i32) {
    %c0_i32 = arith.constant 0 : i32
    %c0_i32_0 = arith.constant 0 : i32
    %c0_i32_1 = arith.constant 0 : i32
    return %c0_i32, %c0_i32_0 : i32, i32
  }
  func.func @transform_12(%arg0: i32) -> (i32, i32) {
    %c0_i32 = arith.constant 0 : i32
    %c0_i32_0 = arith.constant 0 : i32
    %c0_i32_1 = arith.constant 0 : i32
    return %c0_i32, %c0_i32_0 : i32, i32
  }
  func.func @transform_13(%arg0: i32) -> (i32, i32) {
    %c0_i32 = arith.constant 0 : i32
    %c0_i32_0 = arith.constant 0 : i32
    %c0_i32_1 = arith.constant 0 : i32
    return %c0_i32, %c0_i32_0 : i32, i32
  }
  func.func @transform_14(%arg0: i32) -> (i32, i32) {
    %c0_i32 = arith.constant 0 : i32
    %c0_i32_0 = arith.constant 0 : i32
    %c0_i32_1 = arith.constant 0 : i32
    return %c0_i32, %c0_i32_0 : i32, i32
  }
  func.func @transform_15(%arg0: i32) -> (i32, i32) {
    %c0_i32 = arith.constant 0 : i32
    %c0_i32_0 = arith.constant 0 : i32
    %c0_i32_1 = arith.constant 0 : i32
    return %c0_i32, %c0_i32_0 : i32, i32
  }
  func.func @transform_16(%arg0: i32) -> (i32, i32, i32) {
    %c0_i32 = arith.constant 0 : i32
    %c0_i32_0 = arith.constant 0 : i32
    %c0_i32_1 = arith.constant 0 : i32
    return %arg0, %c0_i32, %c0_i32_0 : i32, i32, i32
  }
}

module attributes {stable_mosaic.version = 11 : i64} {
  func.func @_encoder_layer_kernel(%arg0: i32, %arg1: memref<1x8x32xbf16, #tpu.memory_space<vmem>>, %arg2: memref<1x1x8xf32, #tpu.memory_space<vmem>>, %arg3: memref<32x96xbf16, #tpu.memory_space<vmem>>, %arg4: memref<1x96xf32, #tpu.memory_space<vmem>>, %arg5: memref<32x32xbf16, #tpu.memory_space<vmem>>, %arg6: memref<1x32xf32, #tpu.memory_space<vmem>>, %arg7: memref<1x32xf32, #tpu.memory_space<vmem>>, %arg8: memref<1x32xf32, #tpu.memory_space<vmem>>, %arg9: memref<32x64xbf16, #tpu.memory_space<vmem>>, %arg10: memref<1x64xf32, #tpu.memory_space<vmem>>, %arg11: memref<64x32xbf16, #tpu.memory_space<vmem>>, %arg12: memref<1x32xf32, #tpu.memory_space<vmem>>, %arg13: memref<1x32xf32, #tpu.memory_space<vmem>>, %arg14: memref<1x32xf32, #tpu.memory_space<vmem>>, %arg15: memref<1x8x32xbf16, #tpu.memory_space<vmem>>) attributes {dimension_semantics = [#tpu.dimension_semantics<parallel>], iteration_bounds = array<i64: 2>, scalar_prefetch = 0 : i64, scratch_operands = 0 : i64, tpu.core_type = #tpu.core_type<tc>, window_params = [{transform_indices = @transform_0, window_bounds = array<i64: 1, 8, 32>}, {transform_indices = @transform_1, window_bounds = array<i64: 1, 1, 8>}, {pipeline_mode = #tpu.pipeline_mode<synchronous>, transform_indices = @transform_2, window_bounds = array<i64: 32, 96>}, {pipeline_mode = #tpu.pipeline_mode<synchronous>, transform_indices = @transform_3, window_bounds = array<i64: 1, 96>}, {pipeline_mode = #tpu.pipeline_mode<synchronous>, transform_indices = @transform_4, window_bounds = array<i64: 32, 32>}, {pipeline_mode = #tpu.pipeline_mode<synchronous>, transform_indices = @transform_5, window_bounds = array<i64: 1, 32>}, {pipeline_mode = #tpu.pipeline_mode<synchronous>, transform_indices = @transform_6, window_bounds = array<i64: 1, 32>}, {pipeline_mode = #tpu.pipeline_mode<synchronous>, transform_indices = @transform_7, window_bounds = array<i64: 1, 32>}, {pipeline_mode = #tpu.pipeline_mode<synchronous>, transform_indices = @transform_8, window_bounds = array<i64: 32, 64>}, {pipeline_mode = #tpu.pipeline_mode<synchronous>, transform_indices = @transform_9, window_bounds = array<i64: 1, 64>}, {pipeline_mode = #tpu.pipeline_mode<synchronous>, transform_indices = @transform_10, window_bounds = array<i64: 64, 32>}, {pipeline_mode = #tpu.pipeline_mode<synchronous>, transform_indices = @transform_11, window_bounds = array<i64: 1, 32>}, {pipeline_mode = #tpu.pipeline_mode<synchronous>, transform_indices = @transform_12, window_bounds = array<i64: 1, 32>}, {pipeline_mode = #tpu.pipeline_mode<synchronous>, transform_indices = @transform_13, window_bounds = array<i64: 1, 32>}, {transform_indices = @transform_14, window_bounds = array<i64: 1, 8, 32>}]} {
    %c0 = arith.constant 0 : index
    %c0_0 = arith.constant 0 : index
    %c0_1 = arith.constant 0 : index
    %0 = vector.load %arg1[%c0, %c0_0, %c0_1] : memref<1x8x32xbf16, #tpu.memory_space<vmem>>, vector<1x8x32xbf16>
    %1 = vector.shape_cast %0 : vector<1x8x32xbf16> to vector<8x32xbf16>
    %2 = arith.extf %1 : vector<8x32xbf16> to vector<8x32xf32>
    %3 = arith.truncf %2 : vector<8x32xf32> to vector<8x32xbf16>
    %c0_2 = arith.constant 0 : index
    %c0_3 = arith.constant 0 : index
    %4 = vector.load %arg3[%c0_2, %c0_3] : memref<32x96xbf16, #tpu.memory_space<vmem>>, vector<32x96xbf16>
    %cst = arith.constant dense<0.000000e+00> : vector<8x96xf32>
    %5 = tpu.matmul %3, %4, %cst {dimension_numbers = #tpu.dot_dimension_numbers<[1], [0], [0], [1], [0, 0, 1, 1], [], []>} : vector<8x32xbf16>, vector<32x96xbf16>, vector<8x96xf32> -> vector<8x96xf32>
    %c0_4 = arith.constant 0 : index
    %c0_5 = arith.constant 0 : index
    %6 = vector.load %arg4[%c0_4, %c0_5] : memref<1x96xf32, #tpu.memory_space<vmem>>, vector<1x96xf32>
    %7 = vector.broadcast %6 : vector<1x96xf32> to vector<8x96xf32>
    %8 = arith.addf %5, %7 : vector<8x96xf32>
    %9 = vector.extract_strided_slice %8 {offsets = [0, 0], sizes = [8, 32], strides = [1, 1]} : vector<8x96xf32> to vector<8x32xf32>
    %cst_6 = arith.constant 0.353553385 : f32
    %10 = vector.broadcast %cst_6 : f32 to vector<8x32xf32>
    %11 = arith.mulf %9, %10 : vector<8x32xf32>
    %12 = arith.truncf %11 : vector<8x32xf32> to vector<8x32xbf16>
    %13 = vector.extract_strided_slice %8 {offsets = [0, 32], sizes = [8, 32], strides = [1, 1]} : vector<8x96xf32> to vector<8x32xf32>
    %14 = arith.truncf %13 : vector<8x32xf32> to vector<8x32xbf16>
    %15 = vector.extract_strided_slice %8 {offsets = [0, 64], sizes = [8, 32], strides = [1, 1]} : vector<8x96xf32> to vector<8x32xf32>
    %16 = arith.truncf %15 : vector<8x32xf32> to vector<8x32xbf16>
    %c0_7 = arith.constant 0 : index
    %c0_8 = arith.constant 0 : index
    %c0_9 = arith.constant 0 : index
    %17 = vector.load %arg2[%c0_7, %c0_8, %c0_9] : memref<1x1x8xf32, #tpu.memory_space<vmem>>, vector<1x1x8xf32>
    %18 = vector.shape_cast %17 : vector<1x1x8xf32> to vector<1x8xf32>
    %19 = vector.shape_cast %18 : vector<1x8xf32> to vector<1x8xf32>
    %20 = vector.broadcast %19 : vector<1x8xf32> to vector<8x8xf32>
    %c0_10 = arith.constant 0 : index
    %c0_11 = arith.constant 0 : index
    %21 = vector.load %arg5[%c0_10, %c0_11] : memref<32x32xbf16, #tpu.memory_space<vmem>>, vector<32x32xbf16>
    %22 = vector.extract_strided_slice %12 {offsets = [0, 0], sizes = [8, 8], strides = [1, 1]} : vector<8x32xbf16> to vector<8x8xbf16>
    %23 = vector.extract_strided_slice %14 {offsets = [0, 0], sizes = [8, 8], strides = [1, 1]} : vector<8x32xbf16> to vector<8x8xbf16>
    %cst_12 = arith.constant dense<0.000000e+00> : vector<8x8xf32>
    %24 = tpu.matmul %22, %23, %cst_12 {dimension_numbers = #tpu.dot_dimension_numbers<[1], [1], [0], [0], [0, 0, 1, 0], [], []>} : vector<8x8xbf16>, vector<8x8xbf16>, vector<8x8xf32> -> vector<8x8xf32>
    %25 = arith.addf %24, %20 : vector<8x8xf32>
    %cst_13 = arith.constant dense<0xFF800000> : vector<8xf32>
    %26 = vector.multi_reduction <maximumf>, %25, %cst_13 [1] : vector<8x8xf32> to vector<8xf32>
    %27 = vector.shape_cast %26 : vector<8xf32> to vector<8x1xf32>
    %28 = vector.broadcast %27 : vector<8x1xf32> to vector<8x8xf32>
    %29 = arith.subf %25, %28 : vector<8x8xf32>
    %30 = math.exp %29 : vector<8x8xf32>
    %cst_14 = arith.constant dense<0.000000e+00> : vector<8xf32>
    %31 = vector.multi_reduction <add>, %30, %cst_14 [1] : vector<8x8xf32> to vector<8xf32>
    %32 = vector.shape_cast %31 : vector<8xf32> to vector<8x1xf32>
    %33 = tpu.reciprocal %32 {approx = true} : vector<8x1xf32> -> vector<8x1xf32>
    %34 = vector.broadcast %33 : vector<8x1xf32> to vector<8x8xf32>
    %35 = arith.mulf %30, %34 : vector<8x8xf32>
    %36 = arith.truncf %35 : vector<8x8xf32> to vector<8x8xbf16>
    %37 = vector.extract_strided_slice %16 {offsets = [0, 0], sizes = [8, 8], strides = [1, 1]} : vector<8x32xbf16> to vector<8x8xbf16>
    %cst_15 = arith.constant dense<0.000000e+00> : vector<8x8xf32>
    %38 = tpu.matmul %36, %37, %cst_15 {dimension_numbers = #tpu.dot_dimension_numbers<[1], [0], [0], [1], [0, 0, 1, 1], [], []>} : vector<8x8xbf16>, vector<8x8xbf16>, vector<8x8xf32> -> vector<8x8xf32>
    %39 = arith.truncf %38 : vector<8x8xf32> to vector<8x8xbf16>
    %40 = vector.extract_strided_slice %21 {offsets = [0, 0], sizes = [8, 32], strides = [1, 1]} : vector<32x32xbf16> to vector<8x32xbf16>
    %cst_16 = arith.constant dense<0.000000e+00> : vector<8x32xf32>
    %41 = tpu.matmul %39, %40, %cst_16 {dimension_numbers = #tpu.dot_dimension_numbers<[1], [0], [0], [1], [0, 0, 1, 1], [], []>} : vector<8x8xbf16>, vector<8x32xbf16>, vector<8x32xf32> -> vector<8x32xf32>
    %42 = vector.extract_strided_slice %12 {offsets = [0, 8], sizes = [8, 8], strides = [1, 1]} : vector<8x32xbf16> to vector<8x8xbf16>
    %43 = vector.extract_strided_slice %14 {offsets = [0, 8], sizes = [8, 8], strides = [1, 1]} : vector<8x32xbf16> to vector<8x8xbf16>
    %cst_17 = arith.constant dense<0.000000e+00> : vector<8x8xf32>
    %44 = tpu.matmul %42, %43, %cst_17 {dimension_numbers = #tpu.dot_dimension_numbers<[1], [1], [0], [0], [0, 0, 1, 0], [], []>} : vector<8x8xbf16>, vector<8x8xbf16>, vector<8x8xf32> -> vector<8x8xf32>
    %45 = arith.addf %44, %20 : vector<8x8xf32>
    %cst_18 = arith.constant dense<0xFF800000> : vector<8xf32>
    %46 = vector.multi_reduction <maximumf>, %45, %cst_18 [1] : vector<8x8xf32> to vector<8xf32>
    %47 = vector.shape_cast %46 : vector<8xf32> to vector<8x1xf32>
    %48 = vector.broadcast %47 : vector<8x1xf32> to vector<8x8xf32>
    %49 = arith.subf %45, %48 : vector<8x8xf32>
    %50 = math.exp %49 : vector<8x8xf32>
    %cst_19 = arith.constant dense<0.000000e+00> : vector<8xf32>
    %51 = vector.multi_reduction <add>, %50, %cst_19 [1] : vector<8x8xf32> to vector<8xf32>
    %52 = vector.shape_cast %51 : vector<8xf32> to vector<8x1xf32>
    %53 = tpu.reciprocal %52 {approx = true} : vector<8x1xf32> -> vector<8x1xf32>
    %54 = vector.broadcast %53 : vector<8x1xf32> to vector<8x8xf32>
    %55 = arith.mulf %50, %54 : vector<8x8xf32>
    %56 = arith.truncf %55 : vector<8x8xf32> to vector<8x8xbf16>
    %57 = vector.extract_strided_slice %16 {offsets = [0, 8], sizes = [8, 8], strides = [1, 1]} : vector<8x32xbf16> to vector<8x8xbf16>
    %cst_20 = arith.constant dense<0.000000e+00> : vector<8x8xf32>
    %58 = tpu.matmul %56, %57, %cst_20 {dimension_numbers = #tpu.dot_dimension_numbers<[1], [0], [0], [1], [0, 0, 1, 1], [], []>} : vector<8x8xbf16>, vector<8x8xbf16>, vector<8x8xf32> -> vector<8x8xf32>
    %59 = arith.truncf %58 : vector<8x8xf32> to vector<8x8xbf16>
    %60 = vector.extract_strided_slice %21 {offsets = [8, 0], sizes = [8, 32], strides = [1, 1]} : vector<32x32xbf16> to vector<8x32xbf16>
    %cst_21 = arith.constant dense<0.000000e+00> : vector<8x32xf32>
    %61 = tpu.matmul %59, %60, %cst_21 {dimension_numbers = #tpu.dot_dimension_numbers<[1], [0], [0], [1], [0, 0, 1, 1], [], []>} : vector<8x8xbf16>, vector<8x32xbf16>, vector<8x32xf32> -> vector<8x32xf32>
    %62 = arith.addf %41, %61 : vector<8x32xf32>
    %63 = vector.extract_strided_slice %12 {offsets = [0, 16], sizes = [8, 8], strides = [1, 1]} : vector<8x32xbf16> to vector<8x8xbf16>
    %64 = vector.extract_strided_slice %14 {offsets = [0, 16], sizes = [8, 8], strides = [1, 1]} : vector<8x32xbf16> to vector<8x8xbf16>
    %cst_22 = arith.constant dense<0.000000e+00> : vector<8x8xf32>
    %65 = tpu.matmul %63, %64, %cst_22 {dimension_numbers = #tpu.dot_dimension_numbers<[1], [1], [0], [0], [0, 0, 1, 0], [], []>} : vector<8x8xbf16>, vector<8x8xbf16>, vector<8x8xf32> -> vector<8x8xf32>
    %66 = arith.addf %65, %20 : vector<8x8xf32>
    %cst_23 = arith.constant dense<0xFF800000> : vector<8xf32>
    %67 = vector.multi_reduction <maximumf>, %66, %cst_23 [1] : vector<8x8xf32> to vector<8xf32>
    %68 = vector.shape_cast %67 : vector<8xf32> to vector<8x1xf32>
    %69 = vector.broadcast %68 : vector<8x1xf32> to vector<8x8xf32>
    %70 = arith.subf %66, %69 : vector<8x8xf32>
    %71 = math.exp %70 : vector<8x8xf32>
    %cst_24 = arith.constant dense<0.000000e+00> : vector<8xf32>
    %72 = vector.multi_reduction <add>, %71, %cst_24 [1] : vector<8x8xf32> to vector<8xf32>
    %73 = vector.shape_cast %72 : vector<8xf32> to vector<8x1xf32>
    %74 = tpu.reciprocal %73 {approx = true} : vector<8x1xf32> -> vector<8x1xf32>
    %75 = vector.broadcast %74 : vector<8x1xf32> to vector<8x8xf32>
    %76 = arith.mulf %71, %75 : vector<8x8xf32>
    %77 = arith.truncf %76 : vector<8x8xf32> to vector<8x8xbf16>
    %78 = vector.extract_strided_slice %16 {offsets = [0, 16], sizes = [8, 8], strides = [1, 1]} : vector<8x32xbf16> to vector<8x8xbf16>
    %cst_25 = arith.constant dense<0.000000e+00> : vector<8x8xf32>
    %79 = tpu.matmul %77, %78, %cst_25 {dimension_numbers = #tpu.dot_dimension_numbers<[1], [0], [0], [1], [0, 0, 1, 1], [], []>} : vector<8x8xbf16>, vector<8x8xbf16>, vector<8x8xf32> -> vector<8x8xf32>
    %80 = arith.truncf %79 : vector<8x8xf32> to vector<8x8xbf16>
    %81 = vector.extract_strided_slice %21 {offsets = [16, 0], sizes = [8, 32], strides = [1, 1]} : vector<32x32xbf16> to vector<8x32xbf16>
    %cst_26 = arith.constant dense<0.000000e+00> : vector<8x32xf32>
    %82 = tpu.matmul %80, %81, %cst_26 {dimension_numbers = #tpu.dot_dimension_numbers<[1], [0], [0], [1], [0, 0, 1, 1], [], []>} : vector<8x8xbf16>, vector<8x32xbf16>, vector<8x32xf32> -> vector<8x32xf32>
    %83 = arith.addf %62, %82 : vector<8x32xf32>
    %84 = vector.extract_strided_slice %12 {offsets = [0, 24], sizes = [8, 8], strides = [1, 1]} : vector<8x32xbf16> to vector<8x8xbf16>
    %85 = vector.extract_strided_slice %14 {offsets = [0, 24], sizes = [8, 8], strides = [1, 1]} : vector<8x32xbf16> to vector<8x8xbf16>
    %cst_27 = arith.constant dense<0.000000e+00> : vector<8x8xf32>
    %86 = tpu.matmul %84, %85, %cst_27 {dimension_numbers = #tpu.dot_dimension_numbers<[1], [1], [0], [0], [0, 0, 1, 0], [], []>} : vector<8x8xbf16>, vector<8x8xbf16>, vector<8x8xf32> -> vector<8x8xf32>
    %87 = arith.addf %86, %20 : vector<8x8xf32>
    %cst_28 = arith.constant dense<0xFF800000> : vector<8xf32>
    %88 = vector.multi_reduction <maximumf>, %87, %cst_28 [1] : vector<8x8xf32> to vector<8xf32>
    %89 = vector.shape_cast %88 : vector<8xf32> to vector<8x1xf32>
    %90 = vector.broadcast %89 : vector<8x1xf32> to vector<8x8xf32>
    %91 = arith.subf %87, %90 : vector<8x8xf32>
    %92 = math.exp %91 : vector<8x8xf32>
    %cst_29 = arith.constant dense<0.000000e+00> : vector<8xf32>
    %93 = vector.multi_reduction <add>, %92, %cst_29 [1] : vector<8x8xf32> to vector<8xf32>
    %94 = vector.shape_cast %93 : vector<8xf32> to vector<8x1xf32>
    %95 = tpu.reciprocal %94 {approx = true} : vector<8x1xf32> -> vector<8x1xf32>
    %96 = vector.broadcast %95 : vector<8x1xf32> to vector<8x8xf32>
    %97 = arith.mulf %92, %96 : vector<8x8xf32>
    %98 = arith.truncf %97 : vector<8x8xf32> to vector<8x8xbf16>
    %99 = vector.extract_strided_slice %16 {offsets = [0, 24], sizes = [8, 8], strides = [1, 1]} : vector<8x32xbf16> to vector<8x8xbf16>
    %cst_30 = arith.constant dense<0.000000e+00> : vector<8x8xf32>
    %100 = tpu.matmul %98, %99, %cst_30 {dimension_numbers = #tpu.dot_dimension_numbers<[1], [0], [0], [1], [0, 0, 1, 1], [], []>} : vector<8x8xbf16>, vector<8x8xbf16>, vector<8x8xf32> -> vector<8x8xf32>
    %101 = arith.truncf %100 : vector<8x8xf32> to vector<8x8xbf16>
    %102 = vector.extract_strided_slice %21 {offsets = [24, 0], sizes = [8, 32], strides = [1, 1]} : vector<32x32xbf16> to vector<8x32xbf16>
    %cst_31 = arith.constant dense<0.000000e+00> : vector<8x32xf32>
    %103 = tpu.matmul %101, %102, %cst_31 {dimension_numbers = #tpu.dot_dimension_numbers<[1], [0], [0], [1], [0, 0, 1, 1], [], []>} : vector<8x8xbf16>, vector<8x32xbf16>, vector<8x32xf32> -> vector<8x32xf32>
    %104 = arith.addf %83, %103 : vector<8x32xf32>
    %c0_32 = arith.constant 0 : index
    %c0_33 = arith.constant 0 : index
    %105 = vector.load %arg6[%c0_32, %c0_33] : memref<1x32xf32, #tpu.memory_space<vmem>>, vector<1x32xf32>
    %106 = vector.broadcast %105 : vector<1x32xf32> to vector<8x32xf32>
    %107 = arith.addf %104, %106 : vector<8x32xf32>
    %108 = arith.addf %107, %2 : vector<8x32xf32>
    %c0_34 = arith.constant 0 : index
    %c0_35 = arith.constant 0 : index
    %109 = vector.load %arg7[%c0_34, %c0_35] : memref<1x32xf32, #tpu.memory_space<vmem>>, vector<1x32xf32>
    %c0_36 = arith.constant 0 : index
    %c0_37 = arith.constant 0 : index
    %110 = vector.load %arg8[%c0_36, %c0_37] : memref<1x32xf32, #tpu.memory_space<vmem>>, vector<1x32xf32>
    %cst_38 = arith.constant dense<0.000000e+00> : vector<8xf32>
    %111 = vector.multi_reduction <add>, %108, %cst_38 [1] : vector<8x32xf32> to vector<8xf32>
    %112 = vector.shape_cast %111 : vector<8xf32> to vector<8x1xf32>
    %cst_39 = arith.constant 3.200000e+01 : f32
    %113 = vector.broadcast %cst_39 : f32 to vector<8x1xf32>
    %114 = arith.divf %112, %113 : vector<8x1xf32>
    %115 = vector.broadcast %114 : vector<8x1xf32> to vector<8x32xf32>
    %116 = arith.subf %108, %115 : vector<8x32xf32>
    %117 = vector.broadcast %114 : vector<8x1xf32> to vector<8x32xf32>
    %118 = arith.subf %108, %117 : vector<8x32xf32>
    %119 = arith.mulf %116, %118 : vector<8x32xf32>
    %cst_40 = arith.constant dense<0.000000e+00> : vector<8xf32>
    %120 = vector.multi_reduction <add>, %119, %cst_40 [1] : vector<8x32xf32> to vector<8xf32>
    %121 = vector.shape_cast %120 : vector<8xf32> to vector<8x1xf32>
    %cst_41 = arith.constant 3.200000e+01 : f32
    %122 = vector.broadcast %cst_41 : f32 to vector<8x1xf32>
    %123 = arith.divf %121, %122 : vector<8x1xf32>
    %124 = vector.broadcast %114 : vector<8x1xf32> to vector<8x32xf32>
    %125 = arith.subf %108, %124 : vector<8x32xf32>
    %cst_42 = arith.constant 9.99999996E-13 : f32
    %126 = vector.broadcast %cst_42 : f32 to vector<8x1xf32>
    %127 = arith.addf %123, %126 : vector<8x1xf32>
    %128 = math.rsqrt %127 : vector<8x1xf32>
    %129 = vector.broadcast %128 : vector<8x1xf32> to vector<8x32xf32>
    %130 = arith.mulf %125, %129 : vector<8x32xf32>
    %131 = vector.broadcast %109 : vector<1x32xf32> to vector<8x32xf32>
    %132 = arith.mulf %130, %131 : vector<8x32xf32>
    %133 = vector.broadcast %110 : vector<1x32xf32> to vector<8x32xf32>
    %134 = arith.addf %132, %133 : vector<8x32xf32>
    %135 = arith.truncf %134 : vector<8x32xf32> to vector<8x32xbf16>
    %c0_43 = arith.constant 0 : index
    %c0_44 = arith.constant 0 : index
    %136 = vector.load %arg9[%c0_43, %c0_44] : memref<32x64xbf16, #tpu.memory_space<vmem>>, vector<32x64xbf16>
    %cst_45 = arith.constant dense<0.000000e+00> : vector<8x64xf32>
    %137 = tpu.matmul %135, %136, %cst_45 {dimension_numbers = #tpu.dot_dimension_numbers<[1], [0], [0], [1], [0, 0, 1, 1], [], []>} : vector<8x32xbf16>, vector<32x64xbf16>, vector<8x64xf32> -> vector<8x64xf32>
    %c0_46 = arith.constant 0 : index
    %c0_47 = arith.constant 0 : index
    %138 = vector.load %arg10[%c0_46, %c0_47] : memref<1x64xf32, #tpu.memory_space<vmem>>, vector<1x64xf32>
    %139 = vector.broadcast %138 : vector<1x64xf32> to vector<8x64xf32>
    %140 = arith.addf %137, %139 : vector<8x64xf32>
    %cst_48 = arith.constant 5.000000e-01 : f32
    %141 = vector.broadcast %cst_48 : f32 to vector<8x64xf32>
    %142 = arith.mulf %141, %140 : vector<8x64xf32>
    %cst_49 = arith.constant 4.471500e-02 : f32
    %143 = vector.broadcast %cst_49 : f32 to vector<8x64xf32>
    %144 = arith.mulf %143, %140 : vector<8x64xf32>
    %145 = arith.mulf %144, %140 : vector<8x64xf32>
    %146 = arith.mulf %145, %140 : vector<8x64xf32>
    %147 = arith.addf %140, %146 : vector<8x64xf32>
    %cst_50 = arith.constant 0.797884583 : f32
    %148 = vector.broadcast %cst_50 : f32 to vector<8x64xf32>
    %149 = arith.mulf %148, %147 : vector<8x64xf32>
    %150 = math.tanh %149 : vector<8x64xf32>
    %cst_51 = arith.constant 1.000000e+00 : f32
    %151 = vector.broadcast %cst_51 : f32 to vector<8x64xf32>
    %152 = arith.addf %151, %150 : vector<8x64xf32>
    %153 = arith.mulf %142, %152 : vector<8x64xf32>
    %154 = arith.truncf %153 : vector<8x64xf32> to vector<8x64xbf16>
    %c0_52 = arith.constant 0 : index
    %c0_53 = arith.constant 0 : index
    %155 = vector.load %arg11[%c0_52, %c0_53] : memref<64x32xbf16, #tpu.memory_space<vmem>>, vector<64x32xbf16>
    %cst_54 = arith.constant dense<0.000000e+00> : vector<8x32xf32>
    %156 = tpu.matmul %154, %155, %cst_54 {dimension_numbers = #tpu.dot_dimension_numbers<[1], [0], [0], [1], [0, 0, 1, 1], [], []>} : vector<8x64xbf16>, vector<64x32xbf16>, vector<8x32xf32> -> vector<8x32xf32>
    %c0_55 = arith.constant 0 : index
    %c0_56 = arith.constant 0 : index
    %157 = vector.load %arg12[%c0_55, %c0_56] : memref<1x32xf32, #tpu.memory_space<vmem>>, vector<1x32xf32>
    %158 = vector.broadcast %157 : vector<1x32xf32> to vector<8x32xf32>
    %159 = arith.addf %156, %158 : vector<8x32xf32>
    %160 = arith.addf %159, %134 : vector<8x32xf32>
    %c0_57 = arith.constant 0 : index
    %c0_58 = arith.constant 0 : index
    %161 = vector.load %arg13[%c0_57, %c0_58] : memref<1x32xf32, #tpu.memory_space<vmem>>, vector<1x32xf32>
    %c0_59 = arith.constant 0 : index
    %c0_60 = arith.constant 0 : index
    %162 = vector.load %arg14[%c0_59, %c0_60] : memref<1x32xf32, #tpu.memory_space<vmem>>, vector<1x32xf32>
    %cst_61 = arith.constant dense<0.000000e+00> : vector<8xf32>
    %163 = vector.multi_reduction <add>, %160, %cst_61 [1] : vector<8x32xf32> to vector<8xf32>
    %164 = vector.shape_cast %163 : vector<8xf32> to vector<8x1xf32>
    %cst_62 = arith.constant 3.200000e+01 : f32
    %165 = vector.broadcast %cst_62 : f32 to vector<8x1xf32>
    %166 = arith.divf %164, %165 : vector<8x1xf32>
    %167 = vector.broadcast %166 : vector<8x1xf32> to vector<8x32xf32>
    %168 = arith.subf %160, %167 : vector<8x32xf32>
    %169 = vector.broadcast %166 : vector<8x1xf32> to vector<8x32xf32>
    %170 = arith.subf %160, %169 : vector<8x32xf32>
    %171 = arith.mulf %168, %170 : vector<8x32xf32>
    %cst_63 = arith.constant dense<0.000000e+00> : vector<8xf32>
    %172 = vector.multi_reduction <add>, %171, %cst_63 [1] : vector<8x32xf32> to vector<8xf32>
    %173 = vector.shape_cast %172 : vector<8xf32> to vector<8x1xf32>
    %cst_64 = arith.constant 3.200000e+01 : f32
    %174 = vector.broadcast %cst_64 : f32 to vector<8x1xf32>
    %175 = arith.divf %173, %174 : vector<8x1xf32>
    %176 = vector.broadcast %166 : vector<8x1xf32> to vector<8x32xf32>
    %177 = arith.subf %160, %176 : vector<8x32xf32>
    %cst_65 = arith.constant 9.99999996E-13 : f32
    %178 = vector.broadcast %cst_65 : f32 to vector<8x1xf32>
    %179 = arith.addf %175, %178 : vector<8x1xf32>
    %180 = math.rsqrt %179 : vector<8x1xf32>
    %181 = vector.broadcast %180 : vector<8x1xf32> to vector<8x32xf32>
    %182 = arith.mulf %177, %181 : vector<8x32xf32>
    %183 = vector.broadcast %161 : vector<1x32xf32> to vector<8x32xf32>
    %184 = arith.mulf %182, %183 : vector<8x32xf32>
    %185 = vector.broadcast %162 : vector<1x32xf32> to vector<8x32xf32>
    %186 = arith.addf %184, %185 : vector<8x32xf32>
    %187 = arith.truncf %186 : vector<8x32xf32> to vector<8x32xbf16>
    %c0_66 = arith.constant 0 : index
    %c0_67 = arith.constant 0 : index
    %c0_68 = arith.constant 0 : index
    %188 = vector.load %arg15[%c0_66, %c0_67, %c0_68] : memref<1x8x32xbf16, #tpu.memory_space<vmem>>, vector<1x8x32xbf16>
    %189 = vector.shape_cast %188 : vector<1x8x32xbf16> to vector<8x32xbf16>
    %190 = vector.shape_cast %187 : vector<8x32xbf16> to vector<1x8x32xbf16>
    tpu.vector_store %arg15[%c0_66, %c0_67, %c0_68], %190 {strides = array<i32>} : memref<1x8x32xbf16, #tpu.memory_space<vmem>>, vector<1x8x32xbf16>,
    return
  }
  func.func @transform_0(%arg0: i32) -> (i32, i32, i32) {
    %c0_i32 = arith.constant 0 : i32
    %c0_i32_0 = arith.constant 0 : i32
    %c0_i32_1 = arith.constant 0 : i32
    return %arg0, %c0_i32, %c0_i32_0 : i32, i32, i32
  }
  func.func @transform_1(%arg0: i32) -> (i32, i32, i32) {
    %c0_i32 = arith.constant 0 : i32
    %c0_i32_0 = arith.constant 0 : i32
    %c0_i32_1 = arith.constant 0 : i32
    return %arg0, %c0_i32, %c0_i32_0 : i32, i32, i32
  }
  func.func @transform_2(%arg0: i32) -> (i32, i32) {
    %c0_i32 = arith.constant 0 : i32
    %c0_i32_0 = arith.constant 0 : i32
    %c0_i32_1 = arith.constant 0 : i32
    return %c0_i32, %c0_i32_0 : i32, i32
  }
  func.func @transform_3(%arg0: i32) -> (i32, i32) {
    %c0_i32 = arith.constant 0 : i32
    %c0_i32_0 = arith.constant 0 : i32
    %c0_i32_1 = arith.constant 0 : i32
    return %c0_i32, %c0_i32_0 : i32, i32
  }
  func.func @transform_4(%arg0: i32) -> (i32, i32) {
    %c0_i32 = arith.constant 0 : i32
    %c0_i32_0 = arith.constant 0 : i32
    %c0_i32_1 = arith.constant 0 : i32
    return %c0_i32, %c0_i32_0 : i32, i32
  }
  func.func @transform_5(%arg0: i32) -> (i32, i32) {
    %c0_i32 = arith.constant 0 : i32
    %c0_i32_0 = arith.constant 0 : i32
    %c0_i32_1 = arith.constant 0 : i32
    return %c0_i32, %c0_i32_0 : i32, i32
  }
  func.func @transform_6(%arg0: i32) -> (i32, i32) {
    %c0_i32 = arith.constant 0 : i32
    %c0_i32_0 = arith.constant 0 : i32
    %c0_i32_1 = arith.constant 0 : i32
    return %c0_i32, %c0_i32_0 : i32, i32
  }
  func.func @transform_7(%arg0: i32) -> (i32, i32) {
    %c0_i32 = arith.constant 0 : i32
    %c0_i32_0 = arith.constant 0 : i32
    %c0_i32_1 = arith.constant 0 : i32
    return %c0_i32, %c0_i32_0 : i32, i32
  }
  func.func @transform_8(%arg0: i32) -> (i32, i32) {
    %c0_i32 = arith.constant 0 : i32
    %c0_i32_0 = arith.constant 0 : i32
    %c0_i32_1 = arith.constant 0 : i32
    return %c0_i32, %c0_i32_0 : i32, i32
  }
  func.func @transform_9(%arg0: i32) -> (i32, i32) {
    %c0_i32 = arith.constant 0 : i32
    %c0_i32_0 = arith.constant 0 : i32
    %c0_i32_1 = arith.constant 0 : i32
    return %c0_i32, %c0_i32_0 : i32, i32
  }
  func.func @transform_10(%arg0: i32) -> (i32, i32) {
    %c0_i32 = arith.constant 0 : i32
    %c0_i32_0 = arith.constant 0 : i32
    %c0_i32_1 = arith.constant 0 : i32
    return %c0_i32, %c0_i32_0 : i32, i32
  }
  func.func @transform_11(%arg0: i32) -> (i32, i32) {
    %c0_i32 = arith.constant 0 : i32
    %c0_i32_0 = arith.constant 0 : i32
    %c0_i32_1 = arith.constant 0 : i32
    return %c0_i32, %c0_i32_0 : i32, i32
  }
  func.func @transform_12(%arg0: i32) -> (i32, i32) {
    %c0_i32 = arith.constant 0 : i32
    %c0_i32_0 = arith.constant 0 : i32
    %c0_i32_1 = arith.constant 0 : i32
    return %c0_i32, %c0_i32_0 : i32, i32
  }
  func.func @transform_13(%arg0: i32) -> (i32, i32) {
    %c0_i32 = arith.constant 0 : i32
    %c0_i32_0 = arith.constant 0 : i32
    %c0_i32_1 = arith.constant 0 : i32
    return %c0_i32, %c0_i32_0 : i32, i32
  }
  func.func @transform_14(%arg0: i32) -> (i32, i32, i32) {
    %c0_i32 = arith.constant 0 : i32
    %c0_i32_0 = arith.constant 0 : i32
    %c0_i32_1 = arith.constant 0 : i32
    return %arg0, %c0_i32, %c0_i32_0 : i32, i32, i32
  }
}

</mosaic_0001>

<llo_original>
// kernel: bert_classifier_forward.5
$region0: #{bert_classifier_forward.5}
  #allocation0 [shape = 'u32[]', space=smem, size = 0x4, offset = 0x4, fixed_abs, tag = 'smem constant byte address 0x4 - core index']
  #allocation1 [shape = 'u32[144,128]{1,0:T(1,128)}', space=vmem, size = 0x12000, scoped, tag = 'internal scratch']
  %s0 = inlined_call_operand.vmem [shape: bf16[2,8,32], index: 0, kind: input, shape index: {}]
  %s1 = inlined_call_operand.vmem [shape: bf16[32,32], index: 1, kind: input, shape index: {}]
  %s2 = inlined_call_operand.vmem [shape: f32[1,32], index: 2, kind: input, shape index: {}]
  %s3 = inlined_call_operand.vmem [shape: bf16[32,128], index: 3, kind: input, shape index: {}]
  %s4 = inlined_call_operand.vmem [shape: f32[1,128], index: 4, kind: input, shape index: {}]
  %s5 = inlined_call_operand.hbm [shape: f32[2,128], index: 5, kind: output, shape index: {}]
  %s6 = sld [smem:[#allocation0]]
  $region30: #{bert_classifier_forward.5} parent=0
    _
  %s8 = ssub.s32 1, %s6
  %s9 = scalar_select 0, %s8, %s6
  $region1: #{bert_classifier_forward.5} parent=0
    #allocation2 [shape = 'u8[1024]{0}', space=vmem, size = 0x400, scoped, tag = 'output window, operand 0, single buffered']
    #allocation3 [shape = 's32[1]{0}', space=sflag, size = 0x4, scoped, tag = 'scoped memory for bert_classifier_forward.5']
    %10 = vsyncpa [#allocation3], 0
    // Predicated region
    $region2: #{bert_classifier_forward.5} parent=1 // pred_check
      _
    $region3: #{bert_classifier_forward.5} parent=1 // pred_check_branch
      %12 = sbr.rel (0) target = $region5
    $region4: #{bert_classifier_forward.5} parent=1 // pred_region
      _
    $region5: #{bert_classifier_forward.5} parent=1 // pred_fallthru
      _
    // Predicated region
    $region6: #{bert_classifier_forward.5} parent=1 // pred_check
      _
    $region7: #{bert_classifier_forward.5} parent=1 // pred_check_branch
      %14 = sbr.rel (0) target = $region9
    $region8: #{bert_classifier_forward.5} parent=1 // pred_region
      _
    $region9: #{bert_classifier_forward.5} parent=1 // pred_fallthru
      _
    // Predicated region
    $region10: #{bert_classifier_forward.5} parent=1 // pred_check
      _
    $region11: #{bert_classifier_forward.5} parent=1 // pred_check_branch
      %16 = sbr.rel (0) target = $region13
    $region12: #{bert_classifier_forward.5} parent=1 // pred_region
      _
    $region13: #{bert_classifier_forward.5} parent=1 // pred_fallthru
      _
    // Predicated region
    $region14: #{bert_classifier_forward.5} parent=1 // pred_check
      _
    $region15: #{bert_classifier_forward.5} parent=1 // pred_check_branch
      %18 = sbr.rel (0) target = $region17
    $region16: #{bert_classifier_forward.5} parent=1 // pred_region
      _
    $region17: #{bert_classifier_forward.5} parent=1 // pred_fallthru
      _
    // Predicated region
    $region18: #{bert_classifier_forward.5} parent=1 // pred_check
      _
    $region19: #{bert_classifier_forward.5} parent=1 // pred_check_branch
      %20 = sbr.rel (0) target = $region21
    $region20: #{bert_classifier_forward.5} parent=1 // pred_region
      _
    $region21: #{bert_classifier_forward.5} parent=1 // pred_fallthru
      _
    %v22 = vld [vmem:[%s0] sm:$0xf]
    %v23 = vld [vmem:[%s0 + $0x4] sm:$0xf]
    %v24 = vld [vmem:[%s1] sm:$0xf]
    %v25 = vld [vmem:[%s1 + $0x4] sm:$0xf]
    %v26 = vld [vmem:[%s1 + $0x8] sm:$0xf]
    %v27 = vld [vmem:[%s1 + $0xc] sm:$0xf]
    %v28 = vld [vmem:[%s2] sm:$0x1]
    %v30 = vlaneseq
    %v31 = vshrl.u32 %v30, 7
    %v32 = vsub.s32 0, %v31
    %v33 = vrot.slane %v28, %v32
    %v37 = vunpack.c.l.b16 %v22
    %v38 = vunpack.c.l.b16 %v23
    %v39 = vpack.c.b16 %v37, %v37
    %v40 = vpack.c.b16 %v38, %v38
    %v41 = vunpack.c.l.b16 %v39
    %v42 = vunpack.c.l.b16 %v40
    %v43 = vrot.slane %v42, 7
    %vm44 = vcmask 1041409
    %v45 = vsel %vm44, %v43, %v41
    %v46 = vpack.c.b16 %v45, %v45
    %v51 = vunpack.c.l.b16 %v24
    %v52 = vunpack.c.l.b16 %v25
    %v53 = vunpack.c.l.b16 %v26
    %v54 = vunpack.c.l.b16 %v27
    %v55 = vpack.c.b16 %v52, %v51
    %v56 = vpack.c.b16 %v54, %v53
    %vm59 = vcmask 261120
    %v61 = vsel %vm59, %v46, 0
    %63 = vmatprep.subr.bf16.mxu0 0
    %64 = vmatpush1.bf16.msra.mxu0 0
    %65 = vmatprep.subr.bf16.mxu0 0
    %66 = vmatpush1.bf16.msra.mxu0 0
    %67 = vmatprep.subr.bf16.mxu0 0
    %68 = vmatpush1.bf16.msra.mxu0 0
    %69 = vmatprep.subr.bf16.mxu0 0
    %70 = vmatpush1.bf16.msra.mxu0 0
    %71 = vmatprep.subr.bf16.mxu0 0
    %72 = vmatpush1.bf16.msra.mxu0 0
    %73 = vmatprep.subr.bf16.mxu0 0
    %74 = vmatpush1.bf16.msra.mxu0 0
    %75 = vmatprep.subr.bf16.mxu0 0
    %76 = vmatpush1.bf16.msra.mxu0 %v56
    %77 = vmatprep.subr.bf16.mxu0 0
    %78 = vmatpush1.bf16.msra.mxu0 %v55
    %79 = vmatprep.subr.bf16.mxu0 0
    %80 = vmatpush2.bf16.msra.mxu0 0
    %81 = vmatprep.subr.bf16.mxu0 0
    %82 = vmatpush2.bf16.msra.mxu0 0
    %83 = vmatprep.subr.bf16.mxu0 0
    %84 = vmatpush2.bf16.msra.mxu0 0
    %85 = vmatprep.subr.bf16.mxu0 0
    %86 = vmatpush2.bf16.msra.mxu0 0
    %87 = vmatprep.subr.bf16.mxu0 0
    %88 = vmatpush2.bf16.msra.mxu0 0
    %89 = vmatprep.subr.bf16.mxu0 0
    %90 = vmatpush2.bf16.msra.mxu0 0
    %91 = vmatprep.subr.bf16.mxu0 0
    %92 = vmatpush2.bf16.msra.mxu0 0
    %93 = vmatprep.subr.bf16.mxu0 0
    %94 = vmatpush2.bf16.msra.mxu0 0
    %95 = vmatprep.mubr.bf16.mxu0 0
    %96 = vmatmul.mubr.bf16.gmra.mxu0 %v61
    %v97 = vpop.f32.mrf.mxu0
    %v98 = vadd.f32 %v33, %v97
    %v99 = vpop.f32.mrf.mxu0
    %v100 = vpop.f32.mrf.mxu0
    %v101 = vpop.f32.mrf.mxu0
    %102 = vdwg.mxu0
    %v103 = vtanh.pop %v98
    %v104 = vpack.c.bf16 %v103, %v103
    %v105 = vld [vmem:[%s3] sm:$0xf]
    %v106 = vld [vmem:[%s3 + $0x4] sm:$0xf]
    %v107 = vld [vmem:[%s3 + $0x8] sm:$0xf]
    %v108 = vld [vmem:[%s3 + $0xc] sm:$0xf]
    %v109 = vld [vmem:[%s4] sm:$0x1]
    %v111 = vlaneseq
    %v112 = vshrl.u32 %v111, 7
    %v113 = vsub.s32 0, %v112
    %v114 = vrot.slane %v109, %v113
    %v120 = vunpack.c.l.b16 %v105
    %v121 = vunpack.c.l.b16 %v106
    %v122 = vunpack.c.l.b16 %v107
    %v123 = vunpack.c.l.b16 %v108
    %v124 = vpack.c.b16 %v121, %v120
    %v125 = vpack.c.b16 %v123, %v122
    %v129 = vsel %vm59, %v104, 0
    %131 = vmatprep.subr.bf16.mxu0 0
    %132 = vmatpush1.bf16.msra.mxu0 0
    %133 = vmatprep.subr.bf16.mxu0 0
    %134 = vmatpush1.bf16.msra.mxu0 0
    %135 = vmatprep.subr.bf16.mxu0 0
    %136 = vmatpush1.bf16.msra.mxu0 0
    %137 = vmatprep.subr.bf16.mxu0 0
    %138 = vmatpush1.bf16.msra.mxu0 0
    %139 = vmatprep.subr.bf16.mxu0 0
    %140 = vmatpush1.bf16.msra.mxu0 0
    %141 = vmatprep.subr.bf16.mxu0 0
    %142 = vmatpush1.bf16.msra.mxu0 0
    %143 = vmatprep.subr.bf16.mxu0 0
    %144 = vmatpush1.bf16.msra.mxu0 %v125
    %145 = vmatprep.subr.bf16.mxu0 0
    %146 = vmatpush1.bf16.msra.mxu0 %v124
    %147 = vmatprep.subr.bf16.mxu0 0
    %148 = vmatpush2.bf16.msra.mxu0 0
    %149 = vmatprep.subr.bf16.mxu0 0
    %150 = vmatpush2.bf16.msra.mxu0 0
    %151 = vmatprep.subr.bf16.mxu0 0
    %152 = vmatpush2.bf16.msra.mxu0 0
    %153 = vmatprep.subr.bf16.mxu0 0
    %154 = vmatpush2.bf16.msra.mxu0 0
    %155 = vmatprep.subr.bf16.mxu0 0
    %156 = vmatpush2.bf16.msra.mxu0 0
    %157 = vmatprep.subr.bf16.mxu0 0
    %158 = vmatpush2.bf16.msra.mxu0 0
    %159 = vmatprep.subr.bf16.mxu0 0
    %160 = vmatpush2.bf16.msra.mxu0 0
    %161 = vmatprep.subr.bf16.mxu0 0
    %162 = vmatpush2.bf16.msra.mxu0 0
    %163 = vmatprep.mubr.bf16.mxu0 0
    %164 = vmatmul.mubr.bf16.gmra.mxu0 %v129
    %v165 = vpop.f32.mrf.mxu0
    %v166 = vadd.f32 %v114, %v165
    %v167 = vpop.f32.mrf.mxu0
    %v168 = vpop.f32.mrf.mxu0
    %v169 = vpop.f32.mrf.mxu0
    %170 = vdwg.mxu0
    %171 = vst [vmem:[#allocation2] sm:$0x3] %v166
    // Predicated region
    $region22: #{bert_classifier_forward.5} parent=1 // pred_check
      _
    $region23: #{bert_classifier_forward.5} parent=1 // pred_check_branch
      %173 = sbr.rel (0) target = $region25
    $region24: #{bert_classifier_forward.5} parent=1 // pred_region
      %s175 = ssub.s32 32, 32
      %176 = vsyncadd [#allocation3], %s175
      %s178 = sshll.u32 [#allocation2], 4
      %s179 = int_to_ptr.vmem [resolvable:$true] %s178
      %181 = dma.vmem_to_hbm [thread:$0]  %s179, 32, %s5, [#allocation3]
    $region25: #{bert_classifier_forward.5} parent=1 // pred_fallthru
      _
    // Predicated region
    $region26: #{bert_classifier_forward.5} parent=1 // pred_check
      _
    $region27: #{bert_classifier_forward.5} parent=1 // pred_check_branch
      %183 = sbr.rel (0) target = $region29
    $region28: #{bert_classifier_forward.5} parent=1 // pred_region
      %184 = dma.done [#allocation3], 32
    $region29: #{bert_classifier_forward.5} parent=1 // pred_fallthru
      _
    %185 = vsyncpa [#allocation3], 1

// kernel: bert_classifier_forward.3
$region0: #{bert_classifier_forward.3}
  #allocation0 [shape = 'u32[]', space=smem, size = 0x4, offset = 0x4, fixed_abs, tag = 'smem constant byte address 0x4 - core index']
  #allocation1 [shape = 'u32[144,128]{1,0:T(1,128)}', space=vmem, size = 0x12000, scoped, tag = 'internal scratch']
  %s0 = inlined_call_operand.vmem [shape: bf16[2,8,32], index: 0, kind: input, shape index: {}]
  %s1 = inlined_call_operand.vmem [shape: f32[2,1,8], index: 1, kind: input, shape index: {}]
  %s2 = inlined_call_operand.vmem [shape: f32[1,32], index: 2, kind: input, shape index: {}]
  %s3 = inlined_call_operand.vmem [shape: f32[1,32], index: 3, kind: input, shape index: {}]
  %s4 = inlined_call_operand.vmem [shape: bf16[32,96], index: 4, kind: input, shape index: {}]
  %s5 = inlined_call_operand.vmem [shape: f32[1,96], index: 5, kind: input, shape index: {}]
  %s6 = inlined_call_operand.vmem [shape: bf16[32,32], index: 6, kind: input, shape index: {}]
  %s7 = inlined_call_operand.vmem [shape: f32[1,32], index: 7, kind: input, shape index: {}]
  %s8 = inlined_call_operand.vmem [shape: f32[1,32], index: 8, kind: input, shape index: {}]
  %s9 = inlined_call_operand.vmem [shape: f32[1,32], index: 9, kind: input, shape index: {}]
  %s10 = inlined_call_operand.vmem [shape: bf16[32,64], index: 10, kind: input, shape index: {}]
  %s11 = inlined_call_operand.vmem [shape: f32[1,64], index: 11, kind: input, shape index: {}]
  %s12 = inlined_call_operand.vmem [shape: bf16[64,32], index: 12, kind: input, shape index: {}]
  %s13 = inlined_call_operand.vmem [shape: f32[1,32], index: 13, kind: input, shape index: {}]
  %s14 = inlined_call_operand.vmem [shape: f32[1,32], index: 14, kind: input, shape index: {}]
  %s15 = inlined_call_operand.vmem [shape: f32[1,32], index: 15, kind: input, shape index: {}]
  %s16 = inlined_call_operand.vmem [shape: bf16[2,8,32], index: 16, kind: output, shape index: {}]
  %s17 = sld [smem:[#allocation0]]
  $region97: #{bert_classifier_forward.3} parent=0
    _
  %s19 = ssub.s32 1, %s17
  %s20 = scalar_select 0, %s19, %s17
  loop: start=0, step=1, limit=4
  $region2: #{bert_classifier_forward.3} parent=0 // loop_pre_header
    _
  $region3: #{bert_classifier_forward.3} parent=0 // loop_header
    %s22 = sphi 0, %s26
    %p23 = scmp.ge.s32.totalorder %s22, 4
    %s32 = sphi 0, %s34
    %s35 = sphi 0, %s32
    %s36 = sphi 0, %s35
    %s52 = sphi 0, %s36
    %s58 = sphi 0, %s60
    %s61 = sphi 0, %s58
    %s62 = sphi 0, %s61
    %s78 = sphi 0, %s62
    %s82 = sphi 0, %s82
    %s84 = sphi 0, %s82
    %s85 = sphi 0, %s84
    %s99 = sphi 0, %s85
    %s103 = sphi 0, %s103
    %s105 = sphi 0, %s103
    %s106 = sphi 0, %s105
    %s120 = sphi 0, %s106
    %s124 = sphi 0, %s124
    %s126 = sphi 0, %s124
    %s127 = sphi 0, %s126
    %s141 = sphi 0, %s127
    %s145 = sphi 0, %s145
    %s147 = sphi 0, %s145
    %s148 = sphi 0, %s147
    %s162 = sphi 0, %s148
    %s166 = sphi 0, %s166
    %s168 = sphi 0, %s166
    %s169 = sphi 0, %s168
    %s183 = sphi 0, %s169
    %s187 = sphi 0, %s187
    %s189 = sphi 0, %s187
    %s190 = sphi 0, %s189
    %s204 = sphi 0, %s190
    %s208 = sphi 0, %s208
    %s210 = sphi 0, %s208
    %s211 = sphi 0, %s210
    %s225 = sphi 0, %s211
    %s229 = sphi 0, %s229
    %s231 = sphi 0, %s229
    %s232 = sphi 0, %s231
    %s246 = sphi 0, %s232
    %s250 = sphi 0, %s250
    %s252 = sphi 0, %s250
    %s253 = sphi 0, %s252
    %s267 = sphi 0, %s253
    %s271 = sphi 0, %s271
    %s273 = sphi 0, %s271
    %s274 = sphi 0, %s273
    %s288 = sphi 0, %s274
    %s292 = sphi 0, %s292
    %s294 = sphi 0, %s292
    %s295 = sphi 0, %s294
    %s309 = sphi 0, %s295
    %s313 = sphi 0, %s313
    %s315 = sphi 0, %s313
    %s316 = sphi 0, %s315
    %s330 = sphi 0, %s316
    %s334 = sphi 0, %s334
    %s336 = sphi 0, %s334
    %s337 = sphi 0, %s336
    %s351 = sphi 0, %s337
    %s355 = sphi 0, %s355
    %s357 = sphi 0, %s355
    %s358 = sphi 0, %s357
    %s372 = sphi 0, %s358
    %s378 = sphi 0, %s380
    %s381 = sphi 0, %s378
    %s382 = sphi 0, %s381
    %s398 = sphi 0, %s382
  $region4: #{bert_classifier_forward.3} parent=0 // loop_header_branch
    %25 = sbr.rel (%p23) target = $region8
  $region5: #{bert_classifier_forward.3} parent=0 // loop_body
    %s27 = ssub.s32 %s22, 1
    %s28 = ssub.s32 %s22, 2
    %s29 = sadd.s32 %s22, 1
    %s30 = ssub.s32 %s22, %s29
    %p31 = scmp.eq.s32.totalorder %s30, 0
    %s33 = sadd.s32 %s32, 1
    %s34 = scalar_select %p31, %s32, %s33
    %p37 = pneg %p31
    %p38 = scmp.eq.s32.totalorder %s22, 1
    %p39 = por %p37, %p38
    %p40 = scmp.ne.s32.totalorder %s32, %s35
    %p41 = scmp.eq.s32.totalorder %s22, 0
    %p42 = por %p40, %p41
    %p43 = scmp.ne.s32.totalorder %s32, %s35
    %p44 = scmp.eq.s32.totalorder %s27, 1
    %p45 = por %p43, %p44
    %p46 = scmp.ne.s32.totalorder %s35, %s36
    %p47 = scmp.eq.s32.totalorder %s27, 0
    %p48 = por %p46, %p47
    %p49 = scmp.ne.s32.totalorder %s35, %s36
    %p50 = scmp.eq.s32.totalorder %s28, 1
    %p51 = por %p49, %p50
    %p53 = scmp.ne.s32.totalorder %s36, %s52
    %p54 = scmp.eq.s32.totalorder %s28, 0
    %p55 = por %p53, %p54
    %s56 = ssub.s32 %s22, %s29
    %p57 = scmp.eq.s32.totalorder %s56, 0
    %s59 = sadd.s32 %s58, 1
    %s60 = scalar_select %p57, %s58, %s59
    %p63 = pneg %p57
    %p64 = scmp.eq.s32.totalorder %s22, 1
    %p65 = por %p63, %p64
    %p66 = scmp.ne.s32.totalorder %s58, %s61
    %p67 = scmp.eq.s32.totalorder %s22, 0
    %p68 = por %p66, %p67
    %p69 = scmp.ne.s32.totalorder %s58, %s61
    %p70 = scmp.eq.s32.totalorder %s27, 1
    %p71 = por %p69, %p70
    %p72 = scmp.ne.s32.totalorder %s61, %s62
    %p73 = scmp.eq.s32.totalorder %s27, 0
    %p74 = por %p72, %p73
    %p75 = scmp.ne.s32.totalorder %s61, %s62
    %p76 = scmp.eq.s32.totalorder %s28, 1
    %p77 = por %p75, %p76
    %p79 = scmp.ne.s32.totalorder %s62, %s78
    %p80 = scmp.eq.s32.totalorder %s28, 0
    %p81 = por %p79, %p80
    %s83 = sadd.s32 %s82, 1
    %p86 = scmp.eq.s32.totalorder %s22, 1
    %p87 = scmp.ne.s32.totalorder %s82, %s84
    %p88 = scmp.eq.s32.totalorder %s22, 0
    %p89 = por %p87, %p88
    %p90 = scmp.ne.s32.totalorder %s82, %s84
    %p91 = scmp.eq.s32.totalorder %s27, 1
    %p92 = por %p90, %p91
    %p93 = scmp.ne.s32.totalorder %s84, %s85
    %p94 = scmp.eq.s32.totalorder %s27, 0
    %p95 = por %p93, %p94
    %p96 = scmp.ne.s32.totalorder %s84, %s85
    %p97 = scmp.eq.s32.totalorder %s28, 1
    %p98 = por %p96, %p97
    %p100 = scmp.ne.s32.totalorder %s85, %s99
    %p101 = scmp.eq.s32.totalorder %s28, 0
    %p102 = por %p100, %p101
    %s104 = sadd.s32 %s103, 1
    %p107 = scmp.eq.s32.totalorder %s22, 1
    %p108 = scmp.ne.s32.totalorder %s103, %s105
    %p109 = scmp.eq.s32.totalorder %s22, 0
    %p110 = por %p108, %p109
    %p111 = scmp.ne.s32.totalorder %s103, %s105
    %p112 = scmp.eq.s32.totalorder %s27, 1
    %p113 = por %p111, %p112
    %p114 = scmp.ne.s32.totalorder %s105, %s106
    %p115 = scmp.eq.s32.totalorder %s27, 0
    %p116 = por %p114, %p115
    %p117 = scmp.ne.s32.totalorder %s105, %s106
    %p118 = scmp.eq.s32.totalorder %s28, 1
    %p119 = por %p117, %p118
    %p121 = scmp.ne.s32.totalorder %s106, %s120
    %p122 = scmp.eq.s32.totalorder %s28, 0
    %p123 = por %p121, %p122
    %s125 = sadd.s32 %s124, 1
    %p128 = scmp.eq.s32.totalorder %s22, 1
    %p129 = scmp.ne.s32.totalorder %s124, %s126
    %p130 = scmp.eq.s32.totalorder %s22, 0
    %p131 = por %p129, %p130
    %p132 = scmp.ne.s32.totalorder %s124, %s126
    %p133 = scmp.eq.s32.totalorder %s27, 1
    %p134 = por %p132, %p133
    %p135 = scmp.ne.s32.totalorder %s126, %s127
    %p136 = scmp.eq.s32.totalorder %s27, 0
    %p137 = por %p135, %p136
    %p138 = scmp.ne.s32.totalorder %s126, %s127
    %p139 = scmp.eq.s32.totalorder %s28, 1
    %p140 = por %p138, %p139
    %p142 = scmp.ne.s32.totalorder %s127, %s141
    %p143 = scmp.eq.s32.totalorder %s28, 0
    %p144 = por %p142, %p143
    %s146 = sadd.s32 %s145, 1
    %p149 = scmp.eq.s32.totalorder %s22, 1
    %p150 = scmp.ne.s32.totalorder %s145, %s147
    %p151 = scmp.eq.s32.totalorder %s22, 0
    %p152 = por %p150, %p151
    %p153 = scmp.ne.s32.totalorder %s145, %s147
    %p154 = scmp.eq.s32.totalorder %s27, 1
    %p155 = por %p153, %p154
    %p156 = scmp.ne.s32.totalorder %s147, %s148
    %p157 = scmp.eq.s32.totalorder %s27, 0
    %p158 = por %p156, %p157
    %p159 = scmp.ne.s32.totalorder %s147, %s148
    %p160 = scmp.eq.s32.totalorder %s28, 1
    %p161 = por %p159, %p160
    %p163 = scmp.ne.s32.totalorder %s148, %s162
    %p164 = scmp.eq.s32.totalorder %s28, 0
    %p165 = por %p163, %p164
    %s167 = sadd.s32 %s166, 1
    %p170 = scmp.eq.s32.totalorder %s22, 1
    %p171 = scmp.ne.s32.totalorder %s166, %s168
    %p172 = scmp.eq.s32.totalorder %s22, 0
    %p173 = por %p171, %p172
    %p174 = scmp.ne.s32.totalorder %s166, %s168
    %p175 = scmp.eq.s32.totalorder %s27, 1
    %p176 = por %p174, %p175
    %p177 = scmp.ne.s32.totalorder %s168, %s169
    %p178 = scmp.eq.s32.totalorder %s27, 0
    %p179 = por %p177, %p178
    %p180 = scmp.ne.s32.totalorder %s168, %s169
    %p181 = scmp.eq.s32.totalorder %s28, 1
    %p182 = por %p180, %p181
    %p184 = scmp.ne.s32.totalorder %s169, %s183
    %p185 = scmp.eq.s32.totalorder %s28, 0
    %p186 = por %p184, %p185
    %s188 = sadd.s32 %s187, 1
    %p191 = scmp.eq.s32.totalorder %s22, 1
    %p192 = scmp.ne.s32.totalorder %s187, %s189
    %p193 = scmp.eq.s32.totalorder %s22, 0
    %p194 = por %p192, %p193
    %p195 = scmp.ne.s32.totalorder %s187, %s189
    %p196 = scmp.eq.s32.totalorder %s27, 1
    %p197 = por %p195, %p196
    %p198 = scmp.ne.s32.totalorder %s189, %s190
    %p199 = scmp.eq.s32.totalorder %s27, 0
    %p200 = por %p198, %p199
    %p201 = scmp.ne.s32.totalorder %s189, %s190
    %p202 = scmp.eq.s32.totalorder %s28, 1
    %p203 = por %p201, %p202
    %p205 = scmp.ne.s32.totalorder %s190, %s204
    %p206 = scmp.eq.s32.totalorder %s28, 0
    %p207 = por %p205, %p206
    %s209 = sadd.s32 %s208, 1
    %p212 = scmp.eq.s32.totalorder %s22, 1
    %p213 = scmp.ne.s32.totalorder %s208, %s210
    %p214 = scmp.eq.s32.totalorder %s22, 0
    %p215 = por %p213, %p214
    %p216 = scmp.ne.s32.totalorder %s208, %s210
    %p217 = scmp.eq.s32.totalorder %s27, 1
    %p218 = por %p216, %p217
    %p219 = scmp.ne.s32.totalorder %s210, %s211
    %p220 = scmp.eq.s32.totalorder %s27, 0
    %p221 = por %p219, %p220
    %p222 = scmp.ne.s32.totalorder %s210, %s211
    %p223 = scmp.eq.s32.totalorder %s28, 1
    %p224 = por %p222, %p223
    %p226 = scmp.ne.s32.totalorder %s211, %s225
    %p227 = scmp.eq.s32.totalorder %s28, 0
    %p228 = por %p226, %p227
    %s230 = sadd.s32 %s229, 1
    %p233 = scmp.eq.s32.totalorder %s22, 1
    %p234 = scmp.ne.s32.totalorder %s229, %s231
    %p235 = scmp.eq.s32.totalorder %s22, 0
    %p236 = por %p234, %p235
    %p237 = scmp.ne.s32.totalorder %s229, %s231
    %p238 = scmp.eq.s32.totalorder %s27, 1
    %p239 = por %p237, %p238
    %p240 = scmp.ne.s32.totalorder %s231, %s232
    %p241 = scmp.eq.s32.totalorder %s27, 0
    %p242 = por %p240, %p241
    %p243 = scmp.ne.s32.totalorder %s231, %s232
    %p244 = scmp.eq.s32.totalorder %s28, 1
    %p245 = por %p243, %p244
    %p247 = scmp.ne.s32.totalorder %s232, %s246
    %p248 = scmp.eq.s32.totalorder %s28, 0
    %p249 = por %p247, %p248
    %s251 = sadd.s32 %s250, 1
    %p254 = scmp.eq.s32.totalorder %s22, 1
    %p255 = scmp.ne.s32.totalorder %s250, %s252
    %p256 = scmp.eq.s32.totalorder %s22, 0
    %p257 = por %p255, %p256
    %p258 = scmp.ne.s32.totalorder %s250, %s252
    %p259 = scmp.eq.s32.totalorder %s27, 1
    %p260 = por %p258, %p259
    %p261 = scmp.ne.s32.totalorder %s252, %s253
    %p262 = scmp.eq.s32.totalorder %s27, 0
    %p263 = por %p261, %p262
    %p264 = scmp.ne.s32.totalorder %s252, %s253
    %p265 = scmp.eq.s32.totalorder %s28, 1
    %p266 = por %p264, %p265
    %p268 = scmp.ne.s32.totalorder %s253, %s267
    %p269 = scmp.eq.s32.totalorder %s28, 0
    %p270 = por %p268, %p269
    %s272 = sadd.s32 %s271, 1
    %p275 = scmp.eq.s32.totalorder %s22, 1
    %p276 = scmp.ne.s32.totalorder %s271, %s273
    %p277 = scmp.eq.s32.totalorder %s22, 0
    %p278 = por %p276, %p277
    %p279 = scmp.ne.s32.totalorder %s271, %s273
    %p280 = scmp.eq.s32.totalorder %s27, 1
    %p281 = por %p279, %p280
    %p282 = scmp.ne.s32.totalorder %s273, %s274
    %p283 = scmp.eq.s32.totalorder %s27, 0
    %p284 = por %p282, %p283
    %p285 = scmp.ne.s32.totalorder %s273, %s274
    %p286 = scmp.eq.s32.totalorder %s28, 1
    %p287 = por %p285, %p286
    %p289 = scmp.ne.s32.totalorder %s274, %s288
    %p290 = scmp.eq.s32.totalorder %s28, 0
    %p291 = por %p289, %p290
    %s293 = sadd.s32 %s292, 1
    %p296 = scmp.eq.s32.totalorder %s22, 1
    %p297 = scmp.ne.s32.totalorder %s292, %s294
    %p298 = scmp.eq.s32.totalorder %s22, 0
    %p299 = por %p297, %p298
    %p300 = scmp.ne.s32.totalorder %s292, %s294
    %p301 = scmp.eq.s32.totalorder %s27, 1
    %p302 = por %p300, %p301
    %p303 = scmp.ne.s32.totalorder %s294, %s295
    %p304 = scmp.eq.s32.totalorder %s27, 0
    %p305 = por %p303, %p304
    %p306 = scmp.ne.s32.totalorder %s294, %s295
    %p307 = scmp.eq.s32.totalorder %s28, 1
    %p308 = por %p306, %p307
    %p310 = scmp.ne.s32.totalorder %s295, %s309
    %p311 = scmp.eq.s32.totalorder %s28, 0
    %p312 = por %p310, %p311
    %s314 = sadd.s32 %s313, 1
    %p317 = scmp.eq.s32.totalorder %s22, 1
    %p318 = scmp.ne.s32.totalorder %s313, %s315
    %p319 = scmp.eq.s32.totalorder %s22, 0
    %p320 = por %p318, %p319
    %p321 = scmp.ne.s32.totalorder %s313, %s315
    %p322 = scmp.eq.s32.totalorder %s27, 1
    %p323 = por %p321, %p322
    %p324 = scmp.ne.s32.totalorder %s315, %s316
    %p325 = scmp.eq.s32.totalorder %s27, 0
    %p326 = por %p324, %p325
    %p327 = scmp.ne.s32.totalorder %s315, %s316
    %p328 = scmp.eq.s32.totalorder %s28, 1
    %p329 = por %p327, %p328
    %p331 = scmp.ne.s32.totalorder %s316, %s330
    %p332 = scmp.eq.s32.totalorder %s28, 0
    %p333 = por %p331, %p332
    %s335 = sadd.s32 %s334, 1
    %p338 = scmp.eq.s32.totalorder %s22, 1
    %p339 = scmp.ne.s32.totalorder %s334, %s336
    %p340 = scmp.eq.s32.totalorder %s22, 0
    %p341 = por %p339, %p340
    %p342 = scmp.ne.s32.totalorder %s334, %s336
    %p343 = scmp.eq.s32.totalorder %s27, 1
    %p344 = por %p342, %p343
    %p345 = scmp.ne.s32.totalorder %s336, %s337
    %p346 = scmp.eq.s32.totalorder %s27, 0
    %p347 = por %p345, %p346
    %p348 = scmp.ne.s32.totalorder %s336, %s337
    %p349 = scmp.eq.s32.totalorder %s28, 1
    %p350 = por %p348, %p349
    %p352 = scmp.ne.s32.totalorder %s337, %s351
    %p353 = scmp.eq.s32.totalorder %s28, 0
    %p354 = por %p352, %p353
    %s356 = sadd.s32 %s355, 1
    %p359 = scmp.eq.s32.totalorder %s22, 1
    %p360 = scmp.ne.s32.totalorder %s355, %s357
    %p361 = scmp.eq.s32.totalorder %s22, 0
    %p362 = por %p360, %p361
    %p363 = scmp.ne.s32.totalorder %s355, %s357
    %p364 = scmp.eq.s32.totalorder %s27, 1
    %p365 = por %p363, %p364
    %p366 = scmp.ne.s32.totalorder %s357, %s358
    %p367 = scmp.eq.s32.totalorder %s27, 0
    %p368 = por %p366, %p367
    %p369 = scmp.ne.s32.totalorder %s357, %s358
    %p370 = scmp.eq.s32.totalorder %s28, 1
    %p371 = por %p369, %p370
    %p373 = scmp.ne.s32.totalorder %s358, %s372
    %p374 = scmp.eq.s32.totalorder %s28, 0
    %p375 = por %p373, %p374
    %s376 = ssub.s32 %s22, %s29
    %p377 = scmp.eq.s32.totalorder %s376, 0
    %s379 = sadd.s32 %s378, 1
    %s380 = scalar_select %p377, %s378, %s379
    %p383 = pneg %p377
    %p384 = scmp.eq.s32.totalorder %s22, 1
    %p385 = por %p383, %p384
    %p386 = scmp.ne.s32.totalorder %s378, %s381
    %p387 = scmp.eq.s32.totalorder %s22, 0
    %p388 = por %p386, %p387
    %p389 = scmp.ne.s32.totalorder %s378, %s381
    %p390 = scmp.eq.s32.totalorder %s27, 1
    %p391 = por %p389, %p390
    %p392 = scmp.ne.s32.totalorder %s381, %s382
    %p393 = scmp.eq.s32.totalorder %s27, 0
    %p394 = por %p392, %p393
    %p395 = scmp.ne.s32.totalorder %s381, %s382
    %p396 = scmp.eq.s32.totalorder %s28, 1
    %p397 = por %p395, %p396
    %p399 = scmp.ne.s32.totalorder %s382, %s398
    %p400 = scmp.eq.s32.totalorder %s28, 0
    %p401 = por %p399, %p400
    %p402 = scmp.le.s32.totalorder 1, %s22
    %p403 = scmp.lt.s32.totalorder %s22, 3
    %p404 = pnand %p402, %p403
    %p405 = pneg %p404
    // Predicated region
    $region9: #{bert_classifier_forward.3} parent=5 // pred_check
      _
    $region10: #{bert_classifier_forward.3} parent=5 // pred_check_branch
      %407 = sbr.rel (%p404) target = $region12
    $region11: #{bert_classifier_forward.3} parent=5 // pred_region
      %s408 = ssub.s32 %s22, 1
      // Predicated region
      $region13: #{bert_classifier_forward.3} parent=11 // pred_check
        %p409 = pneg %p95
      $region14: #{bert_classifier_forward.3} parent=11 // pred_check_branch
        %411 = sbr.rel (%p409) target = $region16
      $region15: #{bert_classifier_forward.3} parent=11 // pred_region
        _
      $region16: #{bert_classifier_forward.3} parent=11 // pred_fallthru
        _
      // Predicated region
      $region17: #{bert_classifier_forward.3} parent=11 // pred_check
        %p412 = pneg %p116
      $region18: #{bert_classifier_forward.3} parent=11 // pred_check_branch
        %414 = sbr.rel (%p412) target = $region20
      $region19: #{bert_classifier_forward.3} parent=11 // pred_region
        _
      $region20: #{bert_classifier_forward.3} parent=11 // pred_fallthru
        _
      // Predicated region
      $region21: #{bert_classifier_forward.3} parent=11 // pred_check
        %p415 = pneg %p137
      $region22: #{bert_classifier_forward.3} parent=11 // pred_check_branch
        %417 = sbr.rel (%p415) target = $region24
      $region23: #{bert_classifier_forward.3} parent=11 // pred_region
        _
      $region24: #{bert_classifier_forward.3} parent=11 // pred_fallthru
        _
      // Predicated region
      $region25: #{bert_classifier_forward.3} parent=11 // pred_check
        %p418 = pneg %p158
      $region26: #{bert_classifier_forward.3} parent=11 // pred_check_branch
        %420 = sbr.rel (%p418) target = $region28
      $region27: #{bert_classifier_forward.3} parent=11 // pred_region
        _
      $region28: #{bert_classifier_forward.3} parent=11 // pred_fallthru
        _
      // Predicated region
      $region29: #{bert_classifier_forward.3} parent=11 // pred_check
        %p421 = pneg %p179
      $region30: #{bert_classifier_forward.3} parent=11 // pred_check_branch
        %423 = sbr.rel (%p421) target = $region32
      $region31: #{bert_classifier_forward.3} parent=11 // pred_region
        _
      $region32: #{bert_classifier_forward.3} parent=11 // pred_fallthru
        _
      // Predicated region
      $region33: #{bert_classifier_forward.3} parent=11 // pred_check
        %p424 = pneg %p200
      $region34: #{bert_classifier_forward.3} parent=11 // pred_check_branch
        %426 = sbr.rel (%p424) target = $region36
      $region35: #{bert_classifier_forward.3} parent=11 // pred_region
        _
      $region36: #{bert_classifier_forward.3} parent=11 // pred_fallthru
        _
      // Predicated region
      $region37: #{bert_classifier_forward.3} parent=11 // pred_check
        %p427 = pneg %p221
      $region38: #{bert_classifier_forward.3} parent=11 // pred_check_branch
        %429 = sbr.rel (%p427) target = $region40
      $region39: #{bert_classifier_forward.3} parent=11 // pred_region
        _
      $region40: #{bert_classifier_forward.3} parent=11 // pred_fallthru
        _
      // Predicated region
      $region41: #{bert_classifier_forward.3} parent=11 // pred_check
        %p430 = pneg %p242
      $region42: #{bert_classifier_forward.3} parent=11 // pred_check_branch
        %432 = sbr.rel (%p430) target = $region44
      $region43: #{bert_classifier_forward.3} parent=11 // pred_region
        _
      $region44: #{bert_classifier_forward.3} parent=11 // pred_fallthru
        _
      // Predicated region
      $region45: #{bert_classifier_forward.3} parent=11 // pred_check
        %p433 = pneg %p263
      $region46: #{bert_classifier_forward.3} parent=11 // pred_check_branch
        %435 = sbr.rel (%p433) target = $region48
      $region47: #{bert_classifier_forward.3} parent=11 // pred_region
        _
      $region48: #{bert_classifier_forward.3} parent=11 // pred_fallthru
        _
      // Predicated region
      $region49: #{bert_classifier_forward.3} parent=11 // pred_check
        %p436 = pneg %p284
      $region50: #{bert_classifier_forward.3} parent=11 // pred_check_branch
        %438 = sbr.rel (%p436) target = $region52
      $region51: #{bert_classifier_forward.3} parent=11 // pred_region
        _
      $region52: #{bert_classifier_forward.3} parent=11 // pred_fallthru
        _
      // Predicated region
      $region53: #{bert_classifier_forward.3} parent=11 // pred_check
        %p439 = pneg %p305
      $region54: #{bert_classifier_forward.3} parent=11 // pred_check_branch
        %441 = sbr.rel (%p439) target = $region56
      $region55: #{bert_classifier_forward.3} parent=11 // pred_region
        _
      $region56: #{bert_classifier_forward.3} parent=11 // pred_fallthru
        _
      // Predicated region
      $region57: #{bert_classifier_forward.3} parent=11 // pred_check
        %p442 = pneg %p326
      $region58: #{bert_classifier_forward.3} parent=11 // pred_check_branch
        %444 = sbr.rel (%p442) target = $region60
      $region59: #{bert_classifier_forward.3} parent=11 // pred_region
        _
      $region60: #{bert_classifier_forward.3} parent=11 // pred_fallthru
        _
      // Predicated region
      $region61: #{bert_classifier_forward.3} parent=11 // pred_check
        %p445 = pneg %p347
      $region62: #{bert_classifier_forward.3} parent=11 // pred_check_branch
        %447 = sbr.rel (%p445) target = $region64
      $region63: #{bert_classifier_forward.3} parent=11 // pred_region
        _
      $region64: #{bert_classifier_forward.3} parent=11 // pred_fallthru
        _
      // Predicated region
      $region65: #{bert_classifier_forward.3} parent=11 // pred_check
        %p448 = pneg %p368
      $region66: #{bert_classifier_forward.3} parent=11 // pred_check_branch
        %450 = sbr.rel (%p448) target = $region68
      $region67: #{bert_classifier_forward.3} parent=11 // pred_region
        _
      $region68: #{bert_classifier_forward.3} parent=11 // pred_fallthru
        _
    $region12: #{bert_classifier_forward.3} parent=5 // pred_fallthru
      _
    %p451 = scmp.lt.s32.totalorder %s22, 2
    // Predicated region
    $region69: #{bert_classifier_forward.3} parent=5 // pred_check
      %p452 = pneg %p451
    $region70: #{bert_classifier_forward.3} parent=5 // pred_check_branch
      %454 = sbr.rel (%p452) target = $region72
    $region71: #{bert_classifier_forward.3} parent=5 // pred_region
      // Predicated region
      $region73: #{bert_classifier_forward.3} parent=71 // pred_check
        %p455 = pneg %p42
      $region74: #{bert_classifier_forward.3} parent=71 // pred_check_branch
        %457 = sbr.rel (%p455) target = $region76
      $region75: #{bert_classifier_forward.3} parent=71 // pred_region
        %p458 = scmp.lt.s32.totalorder %s22, 1
        %s459 = scalar_select %p458, %s22, 1
        %s460 = smul.addr %s459, 4
        %s461 = scalar_lea.vmem %s0, %s460
      $region76: #{bert_classifier_forward.3} parent=71 // pred_fallthru
        _
      // Predicated region
      $region77: #{bert_classifier_forward.3} parent=71 // pred_check
        %p462 = pneg %p68
      $region78: #{bert_classifier_forward.3} parent=71 // pred_check_branch
        %464 = sbr.rel (%p462) target = $region80
      $region79: #{bert_classifier_forward.3} parent=71 // pred_region
        %p465 = scmp.lt.s32.totalorder %s22, 1
        %s466 = scalar_select %p465, %s22, 1
        %s467 = scalar_lea.vmem %s1, %s466
      $region80: #{bert_classifier_forward.3} parent=71 // pred_fallthru
        _
    $region72: #{bert_classifier_forward.3} parent=5 // pred_fallthru
      _
    %p468 = scmp.le.s32.totalorder 1, %s22
    %p469 = scmp.lt.s32.totalorder %s22, 3
    %p470 = pnand %p468, %p469
    %p471 = pneg %p470
    // Predicated region
    $region81: #{bert_classifier_forward.3} parent=5 // pred_check
      _
    $region82: #{bert_classifier_forward.3} parent=5 // pred_check_branch
      %473 = sbr.rel (%p470) target = $region84
    $region83: #{bert_classifier_forward.3} parent=5 // pred_region
      %s474 = ssub.s32 %s22, 1
      %p475 = scmp.lt.s32.totalorder %s27, 1
      %s476 = scalar_select %p475, %s27, 1
      %s477 = smul.addr %s476, 4
      %s478 = scalar_lea.vmem %s0, %s477
      %p479 = pneg %p48
      %p480 = pneg %p45
      %p481 = scmp.lt.s32.totalorder %s27, 1
      %s482 = scalar_select %p481, %s27, 1
      %s483 = scalar_lea.vmem %s1, %s482
      %p484 = pneg %p74
      %p485 = pneg %p71
      %p486 = pneg %p95
      %p487 = pneg %p92
      %p488 = pneg %p116
      %p489 = pneg %p113
      %p490 = pneg %p137
      %p491 = pneg %p134
      %p492 = pneg %p158
      %p493 = pneg %p155
      %p494 = pneg %p179
      %p495 = pneg %p176
      %p496 = pneg %p200
      %p497 = pneg %p197
      %p498 = pneg %p221
      %p499 = pneg %p218
      %p500 = pneg %p242
      %p501 = pneg %p239
      %p502 = pneg %p263
      %p503 = pneg %p260
      %p504 = pneg %p284
      %p505 = pneg %p281
      %p506 = pneg %p305
      %p507 = pneg %p302
      %p508 = pneg %p326
      %p509 = pneg %p323
      %p510 = pneg %p347
      %p511 = pneg %p344
      %p512 = pneg %p368
      %p513 = pneg %p365
      %p514 = pneg %p394
      %p515 = pneg %p391
      %p516 = scmp.lt.s32.totalorder %s27, 1
      %s517 = scalar_select %p516, %s27, 1
      %s518 = smul.addr %s517, 4
      %s519 = scalar_lea.vmem %s16, %s518
      %p520 = scmp.lt.s32.totalorder %s27, 1
      %s521 = scalar_select %p520, %s27, 1
      %s522 = smul.addr %s521, 4
      %s523 = scalar_lea.vmem %s0, %s522
      %p524 = scmp.lt.s32.totalorder %s27, 1
      %s525 = scalar_select %p524, %s27, 1
      %s526 = scalar_lea.vmem %s1, %s525
      %p527 = scmp.lt.s32.totalorder %s27, 1
      %s528 = scalar_select %p527, %s27, 1
      %s529 = smul.addr %s528, 4
      %s530 = scalar_lea.vmem %s16, %s529
      %v532 = vld [vmem:[%s523] sm:$0xf]
      %v533 = vunpack.c.l.bf16 %v532
      %v534 = vld [vmem:[%s2] sm:$0x1]
      %v535 = vld [vmem:[%s3] sm:$0x1]
      %vm536 = vcmask 261120
      %v537 = vsel %vm536, %v533, 0.0
      %538 = vadd.xlane.f32.xlu0 %v537
      %v539 = vpop.xlane.xlu0 %538
      %v540 = vrcp.pop 32.0
      %v541 = vmul.f32 %v539, %v540
      %v542 = vsub.f32 %v533, %v541
      %v543 = vmul.f32 %v542, %v542
      %v544 = vsel %vm536, %v543, 0.0
      %545 = vadd.xlane.f32.xlu0 %v544
      %v546 = vpop.xlane.xlu0 %545
      %v547 = vmul.f32 %v546, %v540
      %v548 = vadd.f32 %v547, 1e-12
      %v549 = vrsqrt.pop %v548
      %v550 = vmul.f32 %v542, %v549
      %v552 = vlaneseq
      %v553 = vshrl.u32 %v552, 7
      %v554 = vsub.s32 0, %v553
      %v555 = vrot.slane %v534, %v554
      %v557 = vmul.f32 %v550, %v555
      %v559 = vlaneseq
      %v560 = vshrl.u32 %v559, 7
      %v561 = vsub.s32 0, %v560
      %v562 = vrot.slane %v535, %v561
      %v564 = vadd.f32 %v557, %v562
      %v565 = vpack.c.bf16 %v564, %v564
      %v566 = vld [vmem:[%s4] sm:$0xf]
      %v567 = vld [vmem:[%s4 + $0x4] sm:$0xf]
      %v568 = vld [vmem:[%s4 + $0x8] sm:$0xf]
      %v569 = vld [vmem:[%s4 + $0xc] sm:$0xf]
      %v570 = vld [vmem:[%s5] sm:$0x1]
      %v572 = vlaneseq
      %v573 = vshrl.u32 %v572, 7
      %v574 = vsub.s32 0, %v573
      %v575 = vrot.slane %v570, %v574
      %v581 = vunpack.c.l.b16 %v566
      %v582 = vunpack.c.l.b16 %v567
      %v583 = vunpack.c.l.b16 %v568
      %v584 = vunpack.c.l.b16 %v569
      %v585 = vpack.c.b16 %v582, %v581
      %v586 = vpack.c.b16 %v584, %v583
      %v590 = vsel %vm536, %v565, 0
      %592 = vmatprep.subr.bf16.mxu0 0
      %593 = vmatpush1.bf16.msra.mxu0 0
      %594 = vmatprep.subr.bf16.mxu0 0
      %595 = vmatpush1.bf16.msra.mxu0 0
      %596 = vmatprep.subr.bf16.mxu0 0
      %597 = vmatpush1.bf16.msra.mxu0 0
      %598 = vmatprep.subr.bf16.mxu0 0
      %599 = vmatpush1.bf16.msra.mxu0 0
      %600 = vmatprep.subr.bf16.mxu0 0
      %601 = vmatpush1.bf16.msra.mxu0 0
      %602 = vmatprep.subr.bf16.mxu0 0
      %603 = vmatpush1.bf16.msra.mxu0 0
      %604 = vmatprep.subr.bf16.mxu0 0
      %605 = vmatpush1.bf16.msra.mxu0 %v586
      %606 = vmatprep.subr.bf16.mxu0 0
      %607 = vmatpush1.bf16.msra.mxu0 %v585
      %608 = vmatprep.subr.bf16.mxu0 0
      %609 = vmatpush2.bf16.msra.mxu0 0
      %610 = vmatprep.subr.bf16.mxu0 0
      %611 = vmatpush2.bf16.msra.mxu0 0
      %612 = vmatprep.subr.bf16.mxu0 0
      %613 = vmatpush2.bf16.msra.mxu0 0
      %614 = vmatprep.subr.bf16.mxu0 0
      %615 = vmatpush2.bf16.msra.mxu0 0
      %616 = vmatprep.subr.bf16.mxu0 0
      %617 = vmatpush2.bf16.msra.mxu0 0
      %618 = vmatprep.subr.bf16.mxu0 0
      %619 = vmatpush2.bf16.msra.mxu0 0
      %620 = vmatprep.subr.bf16.mxu0 0
      %621 = vmatpush2.bf16.msra.mxu0 0
      %622 = vmatprep.subr.bf16.mxu0 0
      %623 = vmatpush2.bf16.msra.mxu0 0
      %624 = vmatprep.mubr.bf16.mxu0 0
      %625 = vmatmul.mubr.bf16.gmra.mxu0 %v590
      %v626 = vpop.f32.mrf.mxu0
      %v627 = vadd.f32 %v575, %v626
      %v628 = vpop.f32.mrf.mxu0
      %v629 = vpop.f32.mrf.mxu0
      %v630 = vpop.f32.mrf.mxu0
      %631 = vdwg.mxu0
      %v632 = vmul.f32 %v627, 0.35355338
      %v633 = vpack.c.bf16 %v632, %v632
      %v634 = vpack.c.bf16 %v627, %v627
      %v635 = vld [vmem:[%s526] sm:$0x1]
      %v637 = vlaneseq
      %v638 = vshrl.u32 %v637, 7
      %v639 = vsub.s32 0, %v638
      %v640 = vrot.slane %v635, %v639
      %v642 = vld [vmem:[%s6] sm:$0xf]
      %v643 = vld [vmem:[%s6 + $0x4] sm:$0xf]
      %v644 = vld [vmem:[%s6 + $0x8] sm:$0xf]
      %v645 = vld [vmem:[%s6 + $0xc] sm:$0xf]
      %647 = vrot.lane.b32.xlu0 %v634, 96
      %v648 = vpop.permute.xlu0 %647
      %vm649 = vcmask 64512
      %v651 = vsel %vm649, %v633, 0
      %v654 = vsel %vm649, %v648, 0
      %656 = vmatprep.subr.bf16.mxu0 0
      %657 = vmatpush1.bf16.xpose.msra.mxu0 0
      %658 = vmatprep.subr.bf16.mxu0 0
      %659 = vmatpush1.bf16.xpose.msra.mxu0 0
      %660 = vmatprep.subr.bf16.mxu0 0
      %661 = vmatpush1.bf16.xpose.msra.mxu0 0
      %662 = vmatprep.subr.bf16.mxu0 0
      %663 = vmatpush1.bf16.xpose.msra.mxu0 0
      %664 = vmatprep.subr.bf16.mxu0 0
      %665 = vmatpush1.bf16.xpose.msra.mxu0 0
      %666 = vmatprep.subr.bf16.mxu0 0
      %667 = vmatpush1.bf16.xpose.msra.mxu0 0
      %668 = vmatprep.subr.bf16.mxu0 0
      %669 = vmatpush1.bf16.xpose.msra.mxu0 0
      %670 = vmatprep.subr.bf16.mxu0 0
      %671 = vmatpush1.bf16.xpose.msra.mxu0 %v654
      %672 = vmatprep.subr.bf16.mxu0 0
      %673 = vmatpush2.bf16.xpose.msra.mxu0 0
      %674 = vmatprep.subr.bf16.mxu0 0
      %675 = vmatpush2.bf16.xpose.msra.mxu0 0
      %676 = vmatprep.subr.bf16.mxu0 0
      %677 = vmatpush2.bf16.xpose.msra.mxu0 0
      %678 = vmatprep.subr.bf16.mxu0 0
      %679 = vmatpush2.bf16.xpose.msra.mxu0 0
      %680 = vmatprep.subr.bf16.mxu0 0
      %681 = vmatpush2.bf16.xpose.msra.mxu0 0
      %682 = vmatprep.subr.bf16.mxu0 0
      %683 = vmatpush2.bf16.xpose.msra.mxu0 0
      %684 = vmatprep.subr.bf16.mxu0 0
      %685 = vmatpush2.bf16.xpose.msra.mxu0 0
      %686 = vmatprep.subr.bf16.mxu0 0
      %687 = vmatpush2.bf16.xpose.msra.mxu0 0
      %688 = vmatprep.mubr.bf16.mxu0 0
      %689 = vmatmul.mubr.bf16.gmra.mxu0 %v651
      %v690 = vpop.f32.mrf.mxu0
      %v691 = vadd.f32 %v640, %v690
      %v692 = vpop.f32.mrf.mxu0
      %v693 = vpop.f32.mrf.mxu0
      %v694 = vpop.f32.mrf.mxu0
      %695 = vdwg.mxu0
      %v696 = vsel %vm649, %v691, -inf
      %697 = vmax.xlane.f32.xlu0 %v696
      %v698 = vpop.xlane.xlu0 %697
      %v699 = vsub.f32 %v691, %v698
      %v700 = vmul.f32 %v699, 1.442695
      %v701 = vpow.pop %v700
      %v702 = vsel %vm649, %v701, 0.0
      %703 = vadd.xlane.f32.xlu0 %v702
      %v704 = vpop.xlane.xlu0 %703
      %v705 = vrcp.pop %v704
      %v706 = vmul.f32 %v701, %v705
      %v707 = vpack.c.bf16 %v706, %v706
      %708 = vrot.lane.b32.xlu0 %v634, 64
      %v709 = vpop.permute.xlu0 %708
      %v711 = vsel %vm649, %v707, 0
      %vm713 = vcmask 1043456
      %v715 = vsel %vm713, %v709, 0
      %717 = vmatprep.subr.bf16.mxu0 0
      %718 = vmatpush1.bf16.msra.mxu0 0
      %719 = vmatprep.subr.bf16.mxu0 0
      %720 = vmatpush1.bf16.msra.mxu0 0
      %721 = vmatprep.subr.bf16.mxu0 0
      %722 = vmatpush1.bf16.msra.mxu0 0
      %723 = vmatprep.subr.bf16.mxu0 0
      %724 = vmatpush1.bf16.msra.mxu0 0
      %725 = vmatprep.subr.bf16.mxu0 0
      %726 = vmatpush1.bf16.msra.mxu0 0
      %727 = vmatprep.subr.bf16.mxu0 0
      %728 = vmatpush1.bf16.msra.mxu0 0
      %729 = vmatprep.subr.bf16.mxu0 0
      %730 = vmatpush1.bf16.msra.mxu0 0
      %731 = vmatprep.subr.bf16.mxu0 0
      %732 = vmatpush1.bf16.msra.mxu0 %v715
      %733 = vmatprep.subr.bf16.mxu0 0
      %734 = vmatpush2.bf16.msra.mxu0 0
      %735 = vmatprep.subr.bf16.mxu0 0
      %736 = vmatpush2.bf16.msra.mxu0 0
      %737 = vmatprep.subr.bf16.mxu0 0
      %738 = vmatpush2.bf16.msra.mxu0 0
      %739 = vmatprep.subr.bf16.mxu0 0
      %740 = vmatpush2.bf16.msra.mxu0 0
      %741 = vmatprep.subr.bf16.mxu0 0
      %742 = vmatpush2.bf16.msra.mxu0 0
      %743 = vmatprep.subr.bf16.mxu0 0
      %744 = vmatpush2.bf16.msra.mxu0 0
      %745 = vmatprep.subr.bf16.mxu0 0
      %746 = vmatpush2.bf16.msra.mxu0 0
      %747 = vmatprep.subr.bf16.mxu0 0
      %748 = vmatpush2.bf16.msra.mxu0 0
      %749 = vmatprep.mubr.bf16.mxu0 0
      %750 = vmatmul.mubr.bf16.gmra.mxu0 %v711
      %v751 = vpop.f32.mrf.mxu0
      %v752 = vadd.f32 0.0, %v751
      %v753 = vpop.f32.mrf.mxu0
      %v754 = vpop.f32.mrf.mxu0
      %v755 = vpop.f32.mrf.mxu0
      %756 = vdwg.mxu0
      %v757 = vpack.c.bf16 %v752, %v752
      %759 = vrot.lane.b32.xlu0 %v633, 120
      %v760 = vpop.permute.xlu0 %759
      %761 = vrot.lane.b32.xlu0 %v634, 88
      %v762 = vpop.permute.xlu0 %761
      %v764 = vsel %vm649, %v760, 0
      %v767 = vsel %vm649, %v762, 0
      %769 = vmatprep.subr.bf16.mxu0 0
      %770 = vmatpush1.bf16.xpose.msra.mxu0 0
      %771 = vmatprep.subr.bf16.mxu0 0
      %772 = vmatpush1.bf16.xpose.msra.mxu0 0
      %773 = vmatprep.subr.bf16.mxu0 0
      %774 = vmatpush1.bf16.xpose.msra.mxu0 0
      %775 = vmatprep.subr.bf16.mxu0 0
      %776 = vmatpush1.bf16.xpose.msra.mxu0 0
      %777 = vmatprep.subr.bf16.mxu0 0
      %778 = vmatpush1.bf16.xpose.msra.mxu0 0
      %779 = vmatprep.subr.bf16.mxu0 0
      %780 = vmatpush1.bf16.xpose.msra.mxu0 0
      %781 = vmatprep.subr.bf16.mxu0 0
      %782 = vmatpush1.bf16.xpose.msra.mxu0 0
      %783 = vmatprep.subr.bf16.mxu0 0
      %784 = vmatpush1.bf16.xpose.msra.mxu0 %v767
      %785 = vmatprep.subr.bf16.mxu0 0
      %786 = vmatpush2.bf16.xpose.msra.mxu0 0
      %787 = vmatprep.subr.bf16.mxu0 0
      %788 = vmatpush2.bf16.xpose.msra.mxu0 0
      %789 = vmatprep.subr.bf16.mxu0 0
      %790 = vmatpush2.bf16.xpose.msra.mxu0 0
      %791 = vmatprep.subr.bf16.mxu0 0
      %792 = vmatpush2.bf16.xpose.msra.mxu0 0
      %793 = vmatprep.subr.bf16.mxu0 0
      %794 = vmatpush2.bf16.xpose.msra.mxu0 0
      %795 = vmatprep.subr.bf16.mxu0 0
      %796 = vmatpush2.bf16.xpose.msra.mxu0 0
      %797 = vmatprep.subr.bf16.mxu0 0
      %798 = vmatpush2.bf16.xpose.msra.mxu0 0
      %799 = vmatprep.subr.bf16.mxu0 0
      %800 = vmatpush2.bf16.xpose.msra.mxu0 0
      %801 = vmatprep.mubr.bf16.mxu0 0
      %802 = vmatmul.mubr.bf16.gmra.mxu0 %v764
      %v803 = vpop.f32.mrf.mxu0
      %v804 = vadd.f32 %v640, %v803
      %v805 = vpop.f32.mrf.mxu0
      %v806 = vpop.f32.mrf.mxu0
      %v807 = vpop.f32.mrf.mxu0
      %808 = vdwg.mxu0
      %v809 = vsel %vm649, %v804, -inf
      %810 = vmax.xlane.f32.xlu0 %v809
      %v811 = vpop.xlane.xlu0 %810
      %v812 = vsub.f32 %v804, %v811
      %v813 = vmul.f32 %v812, 1.442695
      %v814 = vpow.pop %v813
      %v815 = vsel %vm649, %v814, 0.0
      %816 = vadd.xlane.f32.xlu0 %v815
      %v817 = vpop.xlane.xlu0 %816
      %v818 = vrcp.pop %v817
      %v819 = vmul.f32 %v814, %v818
      %v820 = vpack.c.bf16 %v819, %v819
      %821 = vrot.lane.b32.xlu0 %v634, 56
      %v822 = vpop.permute.xlu0 %821
      %v824 = vsel %vm649, %v820, 0
      %v827 = vsel %vm713, %v822, 0
      %829 = vmatprep.subr.bf16.mxu0 0
      %830 = vmatpush1.bf16.msra.mxu0 0
      %831 = vmatprep.subr.bf16.mxu0 0
      %832 = vmatpush1.bf16.msra.mxu0 0
      %833 = vmatprep.subr.bf16.mxu0 0
      %834 = vmatpush1.bf16.msra.mxu0 0
      %835 = vmatprep.subr.bf16.mxu0 0
      %836 = vmatpush1.bf16.msra.mxu0 0
      %837 = vmatprep.subr.bf16.mxu0 0
      %838 = vmatpush1.bf16.msra.mxu0 0
      %839 = vmatprep.subr.bf16.mxu0 0
      %840 = vmatpush1.bf16.msra.mxu0 0
      %841 = vmatprep.subr.bf16.mxu0 0
      %842 = vmatpush1.bf16.msra.mxu0 0
      %843 = vmatprep.subr.bf16.mxu0 0
      %844 = vmatpush1.bf16.msra.mxu0 %v827
      %845 = vmatprep.subr.bf16.mxu0 0
      %846 = vmatpush2.bf16.msra.mxu0 0
      %847 = vmatprep.subr.bf16.mxu0 0
      %848 = vmatpush2.bf16.msra.mxu0 0
      %849 = vmatprep.subr.bf16.mxu0 0
      %850 = vmatpush2.bf16.msra.mxu0 0
      %851 = vmatprep.subr.bf16.mxu0 0
      %852 = vmatpush2.bf16.msra.mxu0 0
      %853 = vmatprep.subr.bf16.mxu0 0
      %854 = vmatpush2.bf16.msra.mxu0 0
      %855 = vmatprep.subr.bf16.mxu0 0
      %856 = vmatpush2.bf16.msra.mxu0 0
      %857 = vmatprep.subr.bf16.mxu0 0
      %858 = vmatpush2.bf16.msra.mxu0 0
      %859 = vmatprep.subr.bf16.mxu0 0
      %860 = vmatpush2.bf16.msra.mxu0 0
      %861 = vmatprep.mubr.bf16.mxu0 0
      %862 = vmatmul.mubr.bf16.gmra.mxu0 %v824
      %v863 = vpop.f32.mrf.mxu0
      %v864 = vadd.f32 0.0, %v863
      %v865 = vpop.f32.mrf.mxu0
      %v866 = vpop.f32.mrf.mxu0
      %v867 = vpop.f32.mrf.mxu0
      %868 = vdwg.mxu0
      %v869 = vpack.c.bf16 %v864, %v864
      %v871 = vsel %vm649, %v869, 0
      %v874 = vsel %vm713, %v643, 0
      %876 = vmatprep.subr.bf16.mxu0 0
      %877 = vmatpush1.bf16.msra.mxu0 0
      %878 = vmatprep.subr.bf16.mxu0 0
      %879 = vmatpush1.bf16.msra.mxu0 0
      %880 = vmatprep.subr.bf16.mxu0 0
      %881 = vmatpush1.bf16.msra.mxu0 0
      %882 = vmatprep.subr.bf16.mxu0 0
      %883 = vmatpush1.bf16.msra.mxu0 0
      %884 = vmatprep.subr.bf16.mxu0 0
      %885 = vmatpush1.bf16.msra.mxu0 0
      %886 = vmatprep.subr.bf16.mxu0 0
      %887 = vmatpush1.bf16.msra.mxu0 0
      %888 = vmatprep.subr.bf16.mxu0 0
      %889 = vmatpush1.bf16.msra.mxu0 0
      %890 = vmatprep.subr.bf16.mxu0 0
      %891 = vmatpush1.bf16.msra.mxu0 %v874
      %892 = vmatprep.subr.bf16.mxu0 0
      %893 = vmatpush2.bf16.msra.mxu0 0
      %894 = vmatprep.subr.bf16.mxu0 0
      %895 = vmatpush2.bf16.msra.mxu0 0
      %896 = vmatprep.subr.bf16.mxu0 0
      %897 = vmatpush2.bf16.msra.mxu0 0
      %898 = vmatprep.subr.bf16.mxu0 0
      %899 = vmatpush2.bf16.msra.mxu0 0
      %900 = vmatprep.subr.bf16.mxu0 0
      %901 = vmatpush2.bf16.msra.mxu0 0
      %902 = vmatprep.subr.bf16.mxu0 0
      %903 = vmatpush2.bf16.msra.mxu0 0
      %904 = vmatprep.subr.bf16.mxu0 0
      %905 = vmatpush2.bf16.msra.mxu0 0
      %906 = vmatprep.subr.bf16.mxu0 0
      %907 = vmatpush2.bf16.msra.mxu0 0
      %908 = vmatprep.mubr.bf16.mxu0 0
      %909 = vmatmul.mubr.bf16.gmra.mxu0 %v871
      %v910 = vpop.f32.mrf.mxu0
      %v911 = vadd.f32 0.0, %v910
      %v912 = vpop.f32.mrf.mxu0
      %v913 = vpop.f32.mrf.mxu0
      %v914 = vpop.f32.mrf.mxu0
      %915 = vdwg.mxu0
      %v917 = vsel %vm649, %v757, 0
      %v920 = vsel %vm713, %v642, 0
      %922 = vmatprep.subr.bf16.mxu0 0
      %923 = vmatpush1.bf16.msra.mxu0 0
      %924 = vmatprep.subr.bf16.mxu0 0
      %925 = vmatpush1.bf16.msra.mxu0 0
      %926 = vmatprep.subr.bf16.mxu0 0
      %927 = vmatpush1.bf16.msra.mxu0 0
      %928 = vmatprep.subr.bf16.mxu0 0
      %929 = vmatpush1.bf16.msra.mxu0 0
      %930 = vmatprep.subr.bf16.mxu0 0
      %931 = vmatpush1.bf16.msra.mxu0 0
      %932 = vmatprep.subr.bf16.mxu0 0
      %933 = vmatpush1.bf16.msra.mxu0 0
      %934 = vmatprep.subr.bf16.mxu0 0
      %935 = vmatpush1.bf16.msra.mxu0 0
      %936 = vmatprep.subr.bf16.mxu0 0
      %937 = vmatpush1.bf16.msra.mxu0 %v920
      %938 = vmatprep.subr.bf16.mxu0 0
      %939 = vmatpush2.bf16.msra.mxu0 0
      %940 = vmatprep.subr.bf16.mxu0 0
      %941 = vmatpush2.bf16.msra.mxu0 0
      %942 = vmatprep.subr.bf16.mxu0 0
      %943 = vmatpush2.bf16.msra.mxu0 0
      %944 = vmatprep.subr.bf16.mxu0 0
      %945 = vmatpush2.bf16.msra.mxu0 0
      %946 = vmatprep.subr.bf16.mxu0 0
      %947 = vmatpush2.bf16.msra.mxu0 0
      %948 = vmatprep.subr.bf16.mxu0 0
      %949 = vmatpush2.bf16.msra.mxu0 0
      %950 = vmatprep.subr.bf16.mxu0 0
      %951 = vmatpush2.bf16.msra.mxu0 0
      %952 = vmatprep.subr.bf16.mxu0 0
      %953 = vmatpush2.bf16.msra.mxu0 0
      %954 = vmatprep.mubr.bf16.mxu0 0
      %955 = vmatmul.mubr.bf16.gmra.mxu0 %v917
      %v956 = vpop.f32.mrf.mxu0
      %v957 = vadd.f32 %v911, %v956
      %v958 = vpop.f32.mrf.mxu0
      %v959 = vpop.f32.mrf.mxu0
      %v960 = vpop.f32.mrf.mxu0
      %961 = vdwg.mxu0
      %962 = vrot.lane.b32.xlu0 %v633, 112
      %v963 = vpop.permute.xlu0 %962
      %964 = vrot.lane.b32.xlu0 %v634, 80
      %v965 = vpop.permute.xlu0 %964
      %v967 = vsel %vm649, %v963, 0
      %v970 = vsel %vm649, %v965, 0
      %972 = vmatprep.subr.bf16.mxu0 0
      %973 = vmatpush1.bf16.xpose.msra.mxu0 0
      %974 = vmatprep.subr.bf16.mxu0 0
      %975 = vmatpush1.bf16.xpose.msra.mxu0 0
      %976 = vmatprep.subr.bf16.mxu0 0
      %977 = vmatpush1.bf16.xpose.msra.mxu0 0
      %978 = vmatprep.subr.bf16.mxu0 0
      %979 = vmatpush1.bf16.xpose.msra.mxu0 0
      %980 = vmatprep.subr.bf16.mxu0 0
      %981 = vmatpush1.bf16.xpose.msra.mxu0 0
      %982 = vmatprep.subr.bf16.mxu0 0
      %983 = vmatpush1.bf16.xpose.msra.mxu0 0
      %984 = vmatprep.subr.bf16.mxu0 0
      %985 = vmatpush1.bf16.xpose.msra.mxu0 0
      %986 = vmatprep.subr.bf16.mxu0 0
      %987 = vmatpush1.bf16.xpose.msra.mxu0 %v970
      %988 = vmatprep.subr.bf16.mxu0 0
      %989 = vmatpush2.bf16.xpose.msra.mxu0 0
      %990 = vmatprep.subr.bf16.mxu0 0
      %991 = vmatpush2.bf16.xpose.msra.mxu0 0
      %992 = vmatprep.subr.bf16.mxu0 0
      %993 = vmatpush2.bf16.xpose.msra.mxu0 0
      %994 = vmatprep.subr.bf16.mxu0 0
      %995 = vmatpush2.bf16.xpose.msra.mxu0 0
      %996 = vmatprep.subr.bf16.mxu0 0
      %997 = vmatpush2.bf16.xpose.msra.mxu0 0
      %998 = vmatprep.subr.bf16.mxu0 0
      %999 = vmatpush2.bf16.xpose.msra.mxu0 0
      %1000 = vmatprep.subr.bf16.mxu0 0
      %1001 = vmatpush2.bf16.xpose.msra.mxu0 0
      %1002 = vmatprep.subr.bf16.mxu0 0
      %1003 = vmatpush2.bf16.xpose.msra.mxu0 0
      %1004 = vmatprep.mubr.bf16.mxu0 0
      %1005 = vmatmul.mubr.bf16.gmra.mxu0 %v967
      %v1006 = vpop.f32.mrf.mxu0
      %v1007 = vadd.f32 %v640, %v1006
      %v1008 = vpop.f32.mrf.mxu0
      %v1009 = vpop.f32.mrf.mxu0
      %v1010 = vpop.f32.mrf.mxu0
      %1011 = vdwg.mxu0
      %v1012 = vsel %vm649, %v1007, -inf
      %1013 = vmax.xlane.f32.xlu0 %v1012
      %v1014 = vpop.xlane.xlu0 %1013
      %v1015 = vsub.f32 %v1007, %v1014
      %v1016 = vmul.f32 %v1015, 1.442695
      %v1017 = vpow.pop %v1016
      %v1018 = vsel %vm649, %v1017, 0.0
      %1019 = vadd.xlane.f32.xlu0 %v1018
      %v1020 = vpop.xlane.xlu0 %1019
      %v1021 = vrcp.pop %v1020
      %v1022 = vmul.f32 %v1017, %v1021
      %v1023 = vpack.c.bf16 %v1022, %v1022
      %1024 = vrot.lane.b32.xlu0 %v634, 48
      %v1025 = vpop.permute.xlu0 %1024
      %v1027 = vsel %vm649, %v1023, 0
      %v1030 = vsel %vm713, %v1025, 0
      %1032 = vmatprep.subr.bf16.mxu0 0
      %1033 = vmatpush1.bf16.msra.mxu0 0
      %1034 = vmatprep.subr.bf16.mxu0 0
      %1035 = vmatpush1.bf16.msra.mxu0 0
      %1036 = vmatprep.subr.bf16.mxu0 0
      %1037 = vmatpush1.bf16.msra.mxu0 0
      %1038 = vmatprep.subr.bf16.mxu0 0
      %1039 = vmatpush1.bf16.msra.mxu0 0
      %1040 = vmatprep.subr.bf16.mxu0 0
      %1041 = vmatpush1.bf16.msra.mxu0 0
      %1042 = vmatprep.subr.bf16.mxu0 0
      %1043 = vmatpush1.bf16.msra.mxu0 0
      %1044 = vmatprep.subr.bf16.mxu0 0
      %1045 = vmatpush1.bf16.msra.mxu0 0
      %1046 = vmatprep.subr.bf16.mxu0 0
      %1047 = vmatpush1.bf16.msra.mxu0 %v1030
      %1048 = vmatprep.subr.bf16.mxu0 0
      %1049 = vmatpush2.bf16.msra.mxu0 0
      %1050 = vmatprep.subr.bf16.mxu0 0
      %1051 = vmatpush2.bf16.msra.mxu0 0
      %1052 = vmatprep.subr.bf16.mxu0 0
      %1053 = vmatpush2.bf16.msra.mxu0 0
      %1054 = vmatprep.subr.bf16.mxu0 0
      %1055 = vmatpush2.bf16.msra.mxu0 0
      %1056 = vmatprep.subr.bf16.mxu0 0
      %1057 = vmatpush2.bf16.msra.mxu0 0
      %1058 = vmatprep.subr.bf16.mxu0 0
      %1059 = vmatpush2.bf16.msra.mxu0 0
      %1060 = vmatprep.subr.bf16.mxu0 0
      %1061 = vmatpush2.bf16.msra.mxu0 0
      %1062 = vmatprep.subr.bf16.mxu0 0
      %1063 = vmatpush2.bf16.msra.mxu0 0
      %1064 = vmatprep.mubr.bf16.mxu0 0
      %1065 = vmatmul.mubr.bf16.gmra.mxu0 %v1027
      %v1066 = vpop.f32.mrf.mxu0
      %v1067 = vadd.f32 0.0, %v1066
      %v1068 = vpop.f32.mrf.mxu0
      %v1069 = vpop.f32.mrf.mxu0
      %v1070 = vpop.f32.mrf.mxu0
      %1071 = vdwg.mxu0
      %v1072 = vpack.c.bf16 %v1067, %v1067
      %v1074 = vsel %vm649, %v1072, 0
      %v1077 = vsel %vm713, %v644, 0
      %1079 = vmatprep.subr.bf16.mxu0 0
      %1080 = vmatpush1.bf16.msra.mxu0 0
      %1081 = vmatprep.subr.bf16.mxu0 0
      %1082 = vmatpush1.bf16.msra.mxu0 0
      %1083 = vmatprep.subr.bf16.mxu0 0
      %1084 = vmatpush1.bf16.msra.mxu0 0
      %1085 = vmatprep.subr.bf16.mxu0 0
      %1086 = vmatpush1.bf16.msra.mxu0 0
      %1087 = vmatprep.subr.bf16.mxu0 0
      %1088 = vmatpush1.bf16.msra.mxu0 0
      %1089 = vmatprep.subr.bf16.mxu0 0
      %1090 = vmatpush1.bf16.msra.mxu0 0
      %1091 = vmatprep.subr.bf16.mxu0 0
      %1092 = vmatpush1.bf16.msra.mxu0 0
      %1093 = vmatprep.subr.bf16.mxu0 0
      %1094 = vmatpush1.bf16.msra.mxu0 %v1077
      %1095 = vmatprep.subr.bf16.mxu0 0
      %1096 = vmatpush2.bf16.msra.mxu0 0
      %1097 = vmatprep.subr.bf16.mxu0 0
      %1098 = vmatpush2.bf16.msra.mxu0 0
      %1099 = vmatprep.subr.bf16.mxu0 0
      %1100 = vmatpush2.bf16.msra.mxu0 0
      %1101 = vmatprep.subr.bf16.mxu0 0
      %1102 = vmatpush2.bf16.msra.mxu0 0
      %1103 = vmatprep.subr.bf16.mxu0 0
      %1104 = vmatpush2.bf16.msra.mxu0 0
      %1105 = vmatprep.subr.bf16.mxu0 0
      %1106 = vmatpush2.bf16.msra.mxu0 0
      %1107 = vmatprep.subr.bf16.mxu0 0
      %1108 = vmatpush2.bf16.msra.mxu0 0
      %1109 = vmatprep.subr.bf16.mxu0 0
      %1110 = vmatpush2.bf16.msra.mxu0 0
      %1111 = vmatprep.mubr.bf16.mxu0 0
      %1112 = vmatmul.mubr.bf16.gmra.mxu0 %v1074
      %v1113 = vpop.f32.mrf.mxu0
      %v1114 = vadd.f32 0.0, %v1113
      %v1115 = vpop.f32.mrf.mxu0
      %v1116 = vpop.f32.mrf.mxu0
      %v1117 = vpop.f32.mrf.mxu0
      %1118 = vdwg.mxu0
      %v1119 = vadd.f32 %v957, %v1114
      %1120 = vrot.lane.b32.xlu0 %v633, 104
      %v1121 = vpop.permute.xlu0 %1120
      %1122 = vrot.lane.b32.xlu0 %v634, 72
      %v1123 = vpop.permute.xlu0 %1122
      %v1125 = vsel %vm649, %v1121, 0
      %v1128 = vsel %vm649, %v1123, 0
      %1130 = vmatprep.subr.bf16.mxu0 0
      %1131 = vmatpush1.bf16.xpose.msra.mxu0 0
      %1132 = vmatprep.subr.bf16.mxu0 0
      %1133 = vmatpush1.bf16.xpose.msra.mxu0 0
      %1134 = vmatprep.subr.bf16.mxu0 0
      %1135 = vmatpush1.bf16.xpose.msra.mxu0 0
      %1136 = vmatprep.subr.bf16.mxu0 0
      %1137 = vmatpush1.bf16.xpose.msra.mxu0 0
      %1138 = vmatprep.subr.bf16.mxu0 0
      %1139 = vmatpush1.bf16.xpose.msra.mxu0 0
      %1140 = vmatprep.subr.bf16.mxu0 0
      %1141 = vmatpush1.bf16.xpose.msra.mxu0 0
      %1142 = vmatprep.subr.bf16.mxu0 0
      %1143 = vmatpush1.bf16.xpose.msra.mxu0 0
      %1144 = vmatprep.subr.bf16.mxu0 0
      %1145 = vmatpush1.bf16.xpose.msra.mxu0 %v1128
      %1146 = vmatprep.subr.bf16.mxu0 0
      %1147 = vmatpush2.bf16.xpose.msra.mxu0 0
      %1148 = vmatprep.subr.bf16.mxu0 0
      %1149 = vmatpush2.bf16.xpose.msra.mxu0 0
      %1150 = vmatprep.subr.bf16.mxu0 0
      %1151 = vmatpush2.bf16.xpose.msra.mxu0 0
      %1152 = vmatprep.subr.bf16.mxu0 0
      %1153 = vmatpush2.bf16.xpose.msra.mxu0 0
      %1154 = vmatprep.subr.bf16.mxu0 0
      %1155 = vmatpush2.bf16.xpose.msra.mxu0 0
      %1156 = vmatprep.subr.bf16.mxu0 0
      %1157 = vmatpush2.bf16.xpose.msra.mxu0 0
      %1158 = vmatprep.subr.bf16.mxu0 0
      %1159 = vmatpush2.bf16.xpose.msra.mxu0 0
      %1160 = vmatprep.subr.bf16.mxu0 0
      %1161 = vmatpush2.bf16.xpose.msra.mxu0 0
      %1162 = vmatprep.mubr.bf16.mxu0 0
      %1163 = vmatmul.mubr.bf16.gmra.mxu0 %v1125
      %v1164 = vpop.f32.mrf.mxu0
      %v1165 = vadd.f32 %v640, %v1164
      %v1166 = vpop.f32.mrf.mxu0
      %v1167 = vpop.f32.mrf.mxu0
      %v1168 = vpop.f32.mrf.mxu0
      %1169 = vdwg.mxu0
      %v1170 = vsel %vm649, %v1165, -inf
      %1171 = vmax.xlane.f32.xlu0 %v1170
      %v1172 = vpop.xlane.xlu0 %1171
      %v1173 = vsub.f32 %v1165, %v1172
      %v1174 = vmul.f32 %v1173, 1.442695
      %v1175 = vpow.pop %v1174
      %v1176 = vsel %vm649, %v1175, 0.0
      %1177 = vadd.xlane.f32.xlu0 %v1176
      %v1178 = vpop.xlane.xlu0 %1177
      %v1179 = vrcp.pop %v1178
      %v1180 = vmul.f32 %v1175, %v1179
      %v1181 = vpack.c.bf16 %v1180, %v1180
      %1182 = vrot.lane.b32.xlu0 %v634, 40
      %v1183 = vpop.permute.xlu0 %1182
      %v1185 = vsel %vm649, %v1181, 0
      %v1188 = vsel %vm713, %v1183, 0
      %1190 = vmatprep.subr.bf16.mxu0 0
      %1191 = vmatpush1.bf16.msra.mxu0 0
      %1192 = vmatprep.subr.bf16.mxu0 0
      %1193 = vmatpush1.bf16.msra.mxu0 0
      %1194 = vmatprep.subr.bf16.mxu0 0
      %1195 = vmatpush1.bf16.msra.mxu0 0
      %1196 = vmatprep.subr.bf16.mxu0 0
      %1197 = vmatpush1.bf16.msra.mxu0 0
      %1198 = vmatprep.subr.bf16.mxu0 0
      %1199 = vmatpush1.bf16.msra.mxu0 0
      %1200 = vmatprep.subr.bf16.mxu0 0
      %1201 = vmatpush1.bf16.msra.mxu0 0
      %1202 = vmatprep.subr.bf16.mxu0 0
      %1203 = vmatpush1.bf16.msra.mxu0 0
      %1204 = vmatprep.subr.bf16.mxu0 0
      %1205 = vmatpush1.bf16.msra.mxu0 %v1188
      %1206 = vmatprep.subr.bf16.mxu0 0
      %1207 = vmatpush2.bf16.msra.mxu0 0
      %1208 = vmatprep.subr.bf16.mxu0 0
      %1209 = vmatpush2.bf16.msra.mxu0 0
      %1210 = vmatprep.subr.bf16.mxu0 0
      %1211 = vmatpush2.bf16.msra.mxu0 0
      %1212 = vmatprep.subr.bf16.mxu0 0
      %1213 = vmatpush2.bf16.msra.mxu0 0
      %1214 = vmatprep.subr.bf16.mxu0 0
      %1215 = vmatpush2.bf16.msra.mxu0 0
      %1216 = vmatprep.subr.bf16.mxu0 0
      %1217 = vmatpush2.bf16.msra.mxu0 0
      %1218 = vmatprep.subr.bf16.mxu0 0
      %1219 = vmatpush2.bf16.msra.mxu0 0
      %1220 = vmatprep.subr.bf16.mxu0 0
      %1221 = vmatpush2.bf16.msra.mxu0 0
      %1222 = vmatprep.mubr.bf16.mxu0 0
      %1223 = vmatmul.mubr.bf16.gmra.mxu0 %v1185
      %v1224 = vpop.f32.mrf.mxu0
      %v1225 = vadd.f32 0.0, %v1224
      %v1226 = vpop.f32.mrf.mxu0
      %v1227 = vpop.f32.mrf.mxu0
      %v1228 = vpop.f32.mrf.mxu0
      %1229 = vdwg.mxu0
      %v1230 = vpack.c.bf16 %v1225, %v1225
      %v1232 = vsel %vm649, %v1230, 0
      %v1235 = vsel %vm713, %v645, 0
      %1237 = vmatprep.subr.bf16.mxu0 0
      %1238 = vmatpush1.bf16.msra.mxu0 0
      %1239 = vmatprep.subr.bf16.mxu0 0
      %1240 = vmatpush1.bf16.msra.mxu0 0
      %1241 = vmatprep.subr.bf16.mxu0 0
      %1242 = vmatpush1.bf16.msra.mxu0 0
      %1243 = vmatprep.subr.bf16.mxu0 0
      %1244 = vmatpush1.bf16.msra.mxu0 0
      %1245 = vmatprep.subr.bf16.mxu0 0
      %1246 = vmatpush1.bf16.msra.mxu0 0
      %1247 = vmatprep.subr.bf16.mxu0 0
      %1248 = vmatpush1.bf16.msra.mxu0 0
      %1249 = vmatprep.subr.bf16.mxu0 0
      %1250 = vmatpush1.bf16.msra.mxu0 0
      %1251 = vmatprep.subr.bf16.mxu0 0
      %1252 = vmatpush1.bf16.msra.mxu0 %v1235
      %1253 = vmatprep.subr.bf16.mxu0 0
      %1254 = vmatpush2.bf16.msra.mxu0 0
      %1255 = vmatprep.subr.bf16.mxu0 0
      %1256 = vmatpush2.bf16.msra.mxu0 0
      %1257 = vmatprep.subr.bf16.mxu0 0
      %1258 = vmatpush2.bf16.msra.mxu0 0
      %1259 = vmatprep.subr.bf16.mxu0 0
      %1260 = vmatpush2.bf16.msra.mxu0 0
      %1261 = vmatprep.subr.bf16.mxu0 0
      %1262 = vmatpush2.bf16.msra.mxu0 0
      %1263 = vmatprep.subr.bf16.mxu0 0
      %1264 = vmatpush2.bf16.msra.mxu0 0
      %1265 = vmatprep.subr.bf16.mxu0 0
      %1266 = vmatpush2.bf16.msra.mxu0 0
      %1267 = vmatprep.subr.bf16.mxu0 0
      %1268 = vmatpush2.bf16.msra.mxu0 0
      %1269 = vmatprep.mubr.bf16.mxu0 0
      %1270 = vmatmul.mubr.bf16.gmra.mxu0 %v1232
      %v1271 = vpop.f32.mrf.mxu0
      %v1272 = vadd.f32 0.0, %v1271
      %v1273 = vpop.f32.mrf.mxu0
      %v1274 = vpop.f32.mrf.mxu0
      %v1275 = vpop.f32.mrf.mxu0
      %1276 = vdwg.mxu0
      %v1277 = vadd.f32 %v1119, %v1272
      %v1278 = vld [vmem:[%s7] sm:$0x1]
      %v1280 = vlaneseq
      %v1281 = vshrl.u32 %v1280, 7
      %v1282 = vsub.s32 0, %v1281
      %v1283 = vrot.slane %v1278, %v1282
      %v1285 = vadd.f32 %v1277, %v1283
      %v1286 = vadd.f32 %v1285, %v564
      %v1287 = vld [vmem:[%s8] sm:$0x1]
      %v1288 = vld [vmem:[%s9] sm:$0x1]
      %v1289 = vsel %vm536, %v1286, 0.0
      %1290 = vadd.xlane.f32.xlu0 %v1289
      %v1291 = vpop.xlane.xlu0 %1290
      %v1292 = vmul.f32 %v1291, %v540
      %v1293 = vsub.f32 %v1286, %v1292
      %v1294 = vmul.f32 %v1293, %v1293
      %v1295 = vsel %vm536, %v1294, 0.0
      %1296 = vadd.xlane.f32.xlu0 %v1295
      %v1297 = vpop.xlane.xlu0 %1296
      %v1298 = vmul.f32 %v1297, %v540
      %v1299 = vadd.f32 %v1298, 1e-12
      %v1300 = vrsqrt.pop %v1299
      %v1301 = vmul.f32 %v1293, %v1300
      %v1303 = vlaneseq
      %v1304 = vshrl.u32 %v1303, 7
      %v1305 = vsub.s32 0, %v1304
      %v1306 = vrot.slane %v1287, %v1305
      %v1308 = vmul.f32 %v1301, %v1306
      %v1310 = vlaneseq
      %v1311 = vshrl.u32 %v1310, 7
      %v1312 = vsub.s32 0, %v1311
      %v1313 = vrot.slane %v1288, %v1312
      %v1315 = vadd.f32 %v1308, %v1313
      %v1316 = vpack.c.bf16 %v1315, %v1315
      %v1317 = vld [vmem:[%s10] sm:$0xf]
      %v1318 = vld [vmem:[%s10 + $0x4] sm:$0xf]
      %v1319 = vld [vmem:[%s10 + $0x8] sm:$0xf]
      %v1320 = vld [vmem:[%s10 + $0xc] sm:$0xf]
      %v1321 = vld [vmem:[%s11] sm:$0x1]
      %v1323 = vlaneseq
      %v1324 = vshrl.u32 %v1323, 7
      %v1325 = vsub.s32 0, %v1324
      %v1326 = vrot.slane %v1321, %v1325
      %v1332 = vunpack.c.l.b16 %v1317
      %v1333 = vunpack.c.l.b16 %v1318
      %v1334 = vunpack.c.l.b16 %v1319
      %v1335 = vunpack.c.l.b16 %v1320
      %v1336 = vpack.c.b16 %v1333, %v1332
      %v1337 = vpack.c.b16 %v1335, %v1334
      %v1341 = vsel %vm536, %v1316, 0
      %1343 = vmatprep.subr.bf16.mxu0 0
      %1344 = vmatpush1.bf16.msra.mxu0 0
      %1345 = vmatprep.subr.bf16.mxu0 0
      %1346 = vmatpush1.bf16.msra.mxu0 0
      %1347 = vmatprep.subr.bf16.mxu0 0
      %1348 = vmatpush1.bf16.msra.mxu0 0
      %1349 = vmatprep.subr.bf16.mxu0 0
      %1350 = vmatpush1.bf16.msra.mxu0 0
      %1351 = vmatprep.subr.bf16.mxu0 0
      %1352 = vmatpush1.bf16.msra.mxu0 0
      %1353 = vmatprep.subr.bf16.mxu0 0
      %1354 = vmatpush1.bf16.msra.mxu0 0
      %1355 = vmatprep.subr.bf16.mxu0 0
      %1356 = vmatpush1.bf16.msra.mxu0 %v1337
      %1357 = vmatprep.subr.bf16.mxu0 0
      %1358 = vmatpush1.bf16.msra.mxu0 %v1336
      %1359 = vmatprep.subr.bf16.mxu0 0
      %1360 = vmatpush2.bf16.msra.mxu0 0
      %1361 = vmatprep.subr.bf16.mxu0 0
      %1362 = vmatpush2.bf16.msra.mxu0 0
      %1363 = vmatprep.subr.bf16.mxu0 0
      %1364 = vmatpush2.bf16.msra.mxu0 0
      %1365 = vmatprep.subr.bf16.mxu0 0
      %1366 = vmatpush2.bf16.msra.mxu0 0
      %1367 = vmatprep.subr.bf16.mxu0 0
      %1368 = vmatpush2.bf16.msra.mxu0 0
      %1369 = vmatprep.subr.bf16.mxu0 0
      %1370 = vmatpush2.bf16.msra.mxu0 0
      %1371 = vmatprep.subr.bf16.mxu0 0
      %1372 = vmatpush2.bf16.msra.mxu0 0
      %1373 = vmatprep.subr.bf16.mxu0 0
      %1374 = vmatpush2.bf16.msra.mxu0 0
      %1375 = vmatprep.mubr.bf16.mxu0 0
      %1376 = vmatmul.mubr.bf16.gmra.mxu0 %v1341
      %v1377 = vpop.f32.mrf.mxu0
      %v1378 = vadd.f32 %v1326, %v1377
      %v1379 = vpop.f32.mrf.mxu0
      %v1380 = vpop.f32.mrf.mxu0
      %v1381 = vpop.f32.mrf.mxu0
      %1382 = vdwg.mxu0
      %v1383 = vmul.f32 %v1378, 0.5
      %v1384 = vmul.f32 %v1378, 0.044715
      %v1385 = vmul.f32 %v1384, %v1378
      %v1386 = vmul.f32 %v1385, %v1378
      %v1387 = vadd.f32 %v1378, %v1386
      %v1388 = vmul.f32 %v1387, 0.7978846
      %v1389 = vtanh.pop %v1388
      %v1390 = vadd.f32 %v1389, 1.0
      %v1391 = vmul.f32 %v1383, %v1390
      %v1392 = vpack.c.bf16 %v1391, %v1391
      %v1393 = vld [vmem:[%s12] sm:$0xf]
      %v1394 = vld [vmem:[%s12 + $0x4] sm:$0xf]
      %v1395 = vld [vmem:[%s12 + $0x8] sm:$0xf]
      %v1396 = vld [vmem:[%s12 + $0xc] sm:$0xf]
      %v1397 = vld [vmem:[%s12 + $0x10] sm:$0xf]
      %v1398 = vld [vmem:[%s12 + $0x14] sm:$0xf]
      %v1399 = vld [vmem:[%s12 + $0x18] sm:$0xf]
      %v1400 = vld [vmem:[%s12 + $0x1c] sm:$0xf]
      %v1401 = vld [vmem:[%s13] sm:$0x1]
      %v1403 = vlaneseq
      %v1404 = vshrl.u32 %v1403, 7
      %v1405 = vsub.s32 0, %v1404
      %v1406 = vrot.slane %v1401, %v1405
      %v1416 = vunpack.c.l.b16 %v1393
      %v1417 = vunpack.c.l.b16 %v1394
      %v1418 = vunpack.c.l.b16 %v1395
      %v1419 = vunpack.c.l.b16 %v1396
      %v1420 = vunpack.c.l.b16 %v1397
      %v1421 = vunpack.c.l.b16 %v1398
      %v1422 = vunpack.c.l.b16 %v1399
      %v1423 = vunpack.c.l.b16 %v1400
      %v1424 = vpack.c.b16 %v1417, %v1416
      %v1425 = vpack.c.b16 %v1419, %v1418
      %v1426 = vpack.c.b16 %v1421, %v1420
      %v1427 = vpack.c.b16 %v1423, %v1422
      %vm1432 = vcmask 523264
      %v1434 = vsel %vm1432, %v1392, 0
      %1436 = vmatprep.subr.bf16.mxu0 0
      %1437 = vmatpush1.bf16.msra.mxu0 0
      %1438 = vmatprep.subr.bf16.mxu0 0
      %1439 = vmatpush1.bf16.msra.mxu0 0
      %1440 = vmatprep.subr.bf16.mxu0 0
      %1441 = vmatpush1.bf16.msra.mxu0 0
      %1442 = vmatprep.subr.bf16.mxu0 0
      %1443 = vmatpush1.bf16.msra.mxu0 0
      %1444 = vmatprep.subr.bf16.mxu0 0
      %1445 = vmatpush1.bf16.msra.mxu0 %v1427
      %1446 = vmatprep.subr.bf16.mxu0 0
      %1447 = vmatpush1.bf16.msra.mxu0 %v1426
      %1448 = vmatprep.subr.bf16.mxu0 0
      %1449 = vmatpush1.bf16.msra.mxu0 %v1425
      %1450 = vmatprep.subr.bf16.mxu0 0
      %1451 = vmatpush1.bf16.msra.mxu0 %v1424
      %1452 = vmatprep.subr.bf16.mxu0 0
      %1453 = vmatpush2.bf16.msra.mxu0 0
      %1454 = vmatprep.subr.bf16.mxu0 0
      %1455 = vmatpush2.bf16.msra.mxu0 0
      %1456 = vmatprep.subr.bf16.mxu0 0
      %1457 = vmatpush2.bf16.msra.mxu0 0
      %1458 = vmatprep.subr.bf16.mxu0 0
      %1459 = vmatpush2.bf16.msra.mxu0 0
      %1460 = vmatprep.subr.bf16.mxu0 0
      %1461 = vmatpush2.bf16.msra.mxu0 0
      %1462 = vmatprep.subr.bf16.mxu0 0
      %1463 = vmatpush2.bf16.msra.mxu0 0
      %1464 = vmatprep.subr.bf16.mxu0 0
      %1465 = vmatpush2.bf16.msra.mxu0 0
      %1466 = vmatprep.subr.bf16.mxu0 0
      %1467 = vmatpush2.bf16.msra.mxu0 0
      %1468 = vmatprep.mubr.bf16.mxu0 0
      %1469 = vmatmul.mubr.bf16.gmra.mxu0 %v1434
      %v1470 = vpop.f32.mrf.mxu0
      %v1471 = vadd.f32 %v1406, %v1470
      %v1472 = vpop.f32.mrf.mxu0
      %v1473 = vpop.f32.mrf.mxu0
      %v1474 = vpop.f32.mrf.mxu0
      %1475 = vdwg.mxu0
      %v1476 = vadd.f32 %v1471, %v1315
      %v1477 = vld [vmem:[%s14] sm:$0x1]
      %v1478 = vld [vmem:[%s15] sm:$0x1]
      %v1479 = vsel %vm536, %v1476, 0.0
      %1480 = vadd.xlane.f32.xlu0 %v1479
      %v1481 = vpop.xlane.xlu0 %1480
      %v1482 = vmul.f32 %v1481, %v540
      %v1483 = vsub.f32 %v1476, %v1482
      %v1484 = vmul.f32 %v1483, %v1483
      %v1485 = vsel %vm536, %v1484, 0.0
      %1486 = vadd.xlane.f32.xlu0 %v1485
      %v1487 = vpop.xlane.xlu0 %1486
      %v1488 = vmul.f32 %v1487, %v540
      %v1489 = vadd.f32 %v1488, 1e-12
      %v1490 = vrsqrt.pop %v1489
      %v1491 = vmul.f32 %v1483, %v1490
      %v1493 = vlaneseq
      %v1494 = vshrl.u32 %v1493, 7
      %v1495 = vsub.s32 0, %v1494
      %v1496 = vrot.slane %v1477, %v1495
      %v1498 = vmul.f32 %v1491, %v1496
      %v1500 = vlaneseq
      %v1501 = vshrl.u32 %v1500, 7
      %v1502 = vsub.s32 0, %v1501
      %v1503 = vrot.slane %v1478, %v1502
      %v1505 = vadd.f32 %v1498, %v1503
      %v1506 = vpack.c.bf16 %v1505, %v1505
      %vm1507 = vcmask 257024
      %1508 = vst.msk [vmem:[%s530] sm:$0xf] %vm1507, %v1506
      %p1509 = scmp.lt.s32.totalorder %s27, 1
      %s1510 = scalar_select %p1509, %s27, 1
      %s1511 = smul.addr %s1510, 4
      %s1512 = scalar_lea.vmem %s16, %s1511
      // Predicated region
      $region85: #{bert_classifier_forward.3} parent=83 // pred_check
        %p1513 = pneg %p391
      $region86: #{bert_classifier_forward.3} parent=83 // pred_check_branch
        %1515 = sbr.rel (%p1513) target = $region88
      $region87: #{bert_classifier_forward.3} parent=83 // pred_region
        _
      $region88: #{bert_classifier_forward.3} parent=83 // pred_fallthru
        _
    $region84: #{bert_classifier_forward.3} parent=5 // pred_fallthru
      _
    %p1516 = scmp.le.s32.totalorder 2, %s22
    // Predicated region
    $region89: #{bert_classifier_forward.3} parent=5 // pred_check
      %p1517 = pneg %p1516
    $region90: #{bert_classifier_forward.3} parent=5 // pred_check_branch
      %1519 = sbr.rel (%p1517) target = $region92
    $region91: #{bert_classifier_forward.3} parent=5 // pred_region
      %s1520 = ssub.s32 %s22, 2
      // Predicated region
      $region93: #{bert_classifier_forward.3} parent=91 // pred_check
        %p1521 = pneg %p397
      $region94: #{bert_classifier_forward.3} parent=91 // pred_check_branch
        %1523 = sbr.rel (%p1521) target = $region96
      $region95: #{bert_classifier_forward.3} parent=91 // pred_region
        %p1524 = scmp.lt.s32.totalorder %s28, 1
        %s1525 = scalar_select %p1524, %s28, 1
        %s1526 = smul.addr %s1525, 4
        %s1527 = scalar_lea.vmem %s16, %s1526
      $region96: #{bert_classifier_forward.3} parent=91 // pred_fallthru
        _
    $region92: #{bert_classifier_forward.3} parent=5 // pred_fallthru
      _
  $region6: #{bert_classifier_forward.3} parent=0 // loop_footer
    %s26 = sadd.s32 1, %s22
  $region7: #{bert_classifier_forward.3} parent=0 // loop_footer_branch
    %21 = sbr.rel target = $region3
  $region8: #{bert_classifier_forward.3} parent=0 // loop_exit
    _

// kernel: bert_classifier_forward.4
$region0: #{bert_classifier_forward.4}
  #allocation0 [shape = 'u32[]', space=smem, size = 0x4, offset = 0x4, fixed_abs, tag = 'smem constant byte address 0x4 - core index']
  #allocation1 [shape = 'u32[144,128]{1,0:T(1,128)}', space=vmem, size = 0x12000, scoped, tag = 'internal scratch']
  %s0 = inlined_call_operand.vmem [shape: bf16[2,8,32], index: 0, kind: input, shape index: {}]
  %s1 = inlined_call_operand.vmem [shape: f32[2,1,8], index: 1, kind: input, shape index: {}]
  %s2 = inlined_call_operand.vmem [shape: bf16[32,96], index: 2, kind: input, shape index: {}]
  %s3 = inlined_call_operand.vmem [shape: f32[1,96], index: 3, kind: input, shape index: {}]
  %s4 = inlined_call_operand.vmem [shape: bf16[32,32], index: 4, kind: input, shape index: {}]
  %s5 = inlined_call_operand.vmem [shape: f32[1,32], index: 5, kind: input, shape index: {}]
  %s6 = inlined_call_operand.vmem [shape: f32[1,32], index: 6, kind: input, shape index: {}]
  %s7 = inlined_call_operand.vmem [shape: f32[1,32], index: 7, kind: input, shape index: {}]
  %s8 = inlined_call_operand.vmem [shape: bf16[32,64], index: 8, kind: input, shape index: {}]
  %s9 = inlined_call_operand.vmem [shape: f32[1,64], index: 9, kind: input, shape index: {}]
  %s10 = inlined_call_operand.vmem [shape: bf16[64,32], index: 10, kind: input, shape index: {}]
  %s11 = inlined_call_operand.vmem [shape: f32[1,32], index: 11, kind: input, shape index: {}]
  %s12 = inlined_call_operand.vmem [shape: f32[1,32], index: 12, kind: input, shape index: {}]
  %s13 = inlined_call_operand.vmem [shape: f32[1,32], index: 13, kind: input, shape index: {}]
  %s14 = inlined_call_operand.vmem [shape: bf16[2,8,32], index: 14, kind: output, shape index: {}]
  %s15 = sld [smem:[#allocation0]]
  $region89: #{bert_classifier_forward.4} parent=0
    _
  %s17 = ssub.s32 1, %s15
  %s18 = scalar_select 0, %s17, %s15
  loop: start=0, step=1, limit=4
  $region2: #{bert_classifier_forward.4} parent=0 // loop_pre_header
    _
  $region3: #{bert_classifier_forward.4} parent=0 // loop_header
    %s20 = sphi 0, %s24
    %p21 = scmp.ge.s32.totalorder %s20, 4
    %s30 = sphi 0, %s32
    %s33 = sphi 0, %s30
    %s34 = sphi 0, %s33
    %s50 = sphi 0, %s34
    %s56 = sphi 0, %s58
    %s59 = sphi 0, %s56
    %s60 = sphi 0, %s59
    %s76 = sphi 0, %s60
    %s80 = sphi 0, %s80
    %s82 = sphi 0, %s80
    %s83 = sphi 0, %s82
    %s97 = sphi 0, %s83
    %s101 = sphi 0, %s101
    %s103 = sphi 0, %s101
    %s104 = sphi 0, %s103
    %s118 = sphi 0, %s104
    %s122 = sphi 0, %s122
    %s124 = sphi 0, %s122
    %s125 = sphi 0, %s124
    %s139 = sphi 0, %s125
    %s143 = sphi 0, %s143
    %s145 = sphi 0, %s143
    %s146 = sphi 0, %s145
    %s160 = sphi 0, %s146
    %s164 = sphi 0, %s164
    %s166 = sphi 0, %s164
    %s167 = sphi 0, %s166
    %s181 = sphi 0, %s167
    %s185 = sphi 0, %s185
    %s187 = sphi 0, %s185
    %s188 = sphi 0, %s187
    %s202 = sphi 0, %s188
    %s206 = sphi 0, %s206
    %s208 = sphi 0, %s206
    %s209 = sphi 0, %s208
    %s223 = sphi 0, %s209
    %s227 = sphi 0, %s227
    %s229 = sphi 0, %s227
    %s230 = sphi 0, %s229
    %s244 = sphi 0, %s230
    %s248 = sphi 0, %s248
    %s250 = sphi 0, %s248
    %s251 = sphi 0, %s250
    %s265 = sphi 0, %s251
    %s269 = sphi 0, %s269
    %s271 = sphi 0, %s269
    %s272 = sphi 0, %s271
    %s286 = sphi 0, %s272
    %s290 = sphi 0, %s290
    %s292 = sphi 0, %s290
    %s293 = sphi 0, %s292
    %s307 = sphi 0, %s293
    %s311 = sphi 0, %s311
    %s313 = sphi 0, %s311
    %s314 = sphi 0, %s313
    %s328 = sphi 0, %s314
    %s334 = sphi 0, %s336
    %s337 = sphi 0, %s334
    %s338 = sphi 0, %s337
    %s354 = sphi 0, %s338
  $region4: #{bert_classifier_forward.4} parent=0 // loop_header_branch
    %23 = sbr.rel (%p21) target = $region8
  $region5: #{bert_classifier_forward.4} parent=0 // loop_body
    %s25 = ssub.s32 %s20, 1
    %s26 = ssub.s32 %s20, 2
    %s27 = sadd.s32 %s20, 1
    %s28 = ssub.s32 %s20, %s27
    %p29 = scmp.eq.s32.totalorder %s28, 0
    %s31 = sadd.s32 %s30, 1
    %s32 = scalar_select %p29, %s30, %s31
    %p35 = pneg %p29
    %p36 = scmp.eq.s32.totalorder %s20, 1
    %p37 = por %p35, %p36
    %p38 = scmp.ne.s32.totalorder %s30, %s33
    %p39 = scmp.eq.s32.totalorder %s20, 0
    %p40 = por %p38, %p39
    %p41 = scmp.ne.s32.totalorder %s30, %s33
    %p42 = scmp.eq.s32.totalorder %s25, 1
    %p43 = por %p41, %p42
    %p44 = scmp.ne.s32.totalorder %s33, %s34
    %p45 = scmp.eq.s32.totalorder %s25, 0
    %p46 = por %p44, %p45
    %p47 = scmp.ne.s32.totalorder %s33, %s34
    %p48 = scmp.eq.s32.totalorder %s26, 1
    %p49 = por %p47, %p48
    %p51 = scmp.ne.s32.totalorder %s34, %s50
    %p52 = scmp.eq.s32.totalorder %s26, 0
    %p53 = por %p51, %p52
    %s54 = ssub.s32 %s20, %s27
    %p55 = scmp.eq.s32.totalorder %s54, 0
    %s57 = sadd.s32 %s56, 1
    %s58 = scalar_select %p55, %s56, %s57
    %p61 = pneg %p55
    %p62 = scmp.eq.s32.totalorder %s20, 1
    %p63 = por %p61, %p62
    %p64 = scmp.ne.s32.totalorder %s56, %s59
    %p65 = scmp.eq.s32.totalorder %s20, 0
    %p66 = por %p64, %p65
    %p67 = scmp.ne.s32.totalorder %s56, %s59
    %p68 = scmp.eq.s32.totalorder %s25, 1
    %p69 = por %p67, %p68
    %p70 = scmp.ne.s32.totalorder %s59, %s60
    %p71 = scmp.eq.s32.totalorder %s25, 0
    %p72 = por %p70, %p71
    %p73 = scmp.ne.s32.totalorder %s59, %s60
    %p74 = scmp.eq.s32.totalorder %s26, 1
    %p75 = por %p73, %p74
    %p77 = scmp.ne.s32.totalorder %s60, %s76
    %p78 = scmp.eq.s32.totalorder %s26, 0
    %p79 = por %p77, %p78
    %s81 = sadd.s32 %s80, 1
    %p84 = scmp.eq.s32.totalorder %s20, 1
    %p85 = scmp.ne.s32.totalorder %s80, %s82
    %p86 = scmp.eq.s32.totalorder %s20, 0
    %p87 = por %p85, %p86
    %p88 = scmp.ne.s32.totalorder %s80, %s82
    %p89 = scmp.eq.s32.totalorder %s25, 1
    %p90 = por %p88, %p89
    %p91 = scmp.ne.s32.totalorder %s82, %s83
    %p92 = scmp.eq.s32.totalorder %s25, 0
    %p93 = por %p91, %p92
    %p94 = scmp.ne.s32.totalorder %s82, %s83
    %p95 = scmp.eq.s32.totalorder %s26, 1
    %p96 = por %p94, %p95
    %p98 = scmp.ne.s32.totalorder %s83, %s97
    %p99 = scmp.eq.s32.totalorder %s26, 0
    %p100 = por %p98, %p99
    %s102 = sadd.s32 %s101, 1
    %p105 = scmp.eq.s32.totalorder %s20, 1
    %p106 = scmp.ne.s32.totalorder %s101, %s103
    %p107 = scmp.eq.s32.totalorder %s20, 0
    %p108 = por %p106, %p107
    %p109 = scmp.ne.s32.totalorder %s101, %s103
    %p110 = scmp.eq.s32.totalorder %s25, 1
    %p111 = por %p109, %p110
    %p112 = scmp.ne.s32.totalorder %s103, %s104
    %p113 = scmp.eq.s32.totalorder %s25, 0
    %p114 = por %p112, %p113
    %p115 = scmp.ne.s32.totalorder %s103, %s104
    %p116 = scmp.eq.s32.totalorder %s26, 1
    %p117 = por %p115, %p116
    %p119 = scmp.ne.s32.totalorder %s104, %s118
    %p120 = scmp.eq.s32.totalorder %s26, 0
    %p121 = por %p119, %p120
    %s123 = sadd.s32 %s122, 1
    %p126 = scmp.eq.s32.totalorder %s20, 1
    %p127 = scmp.ne.s32.totalorder %s122, %s124
    %p128 = scmp.eq.s32.totalorder %s20, 0
    %p129 = por %p127, %p128
    %p130 = scmp.ne.s32.totalorder %s122, %s124
    %p131 = scmp.eq.s32.totalorder %s25, 1
    %p132 = por %p130, %p131
    %p133 = scmp.ne.s32.totalorder %s124, %s125
    %p134 = scmp.eq.s32.totalorder %s25, 0
    %p135 = por %p133, %p134
    %p136 = scmp.ne.s32.totalorder %s124, %s125
    %p137 = scmp.eq.s32.totalorder %s26, 1
    %p138 = por %p136, %p137
    %p140 = scmp.ne.s32.totalorder %s125, %s139
    %p141 = scmp.eq.s32.totalorder %s26, 0
    %p142 = por %p140, %p141
    %s144 = sadd.s32 %s143, 1
    %p147 = scmp.eq.s32.totalorder %s20, 1
    %p148 = scmp.ne.s32.totalorder %s143, %s145
    %p149 = scmp.eq.s32.totalorder %s20, 0
    %p150 = por %p148, %p149
    %p151 = scmp.ne.s32.totalorder %s143, %s145
    %p152 = scmp.eq.s32.totalorder %s25, 1
    %p153 = por %p151, %p152
    %p154 = scmp.ne.s32.totalorder %s145, %s146
    %p155 = scmp.eq.s32.totalorder %s25, 0
    %p156 = por %p154, %p155
    %p157 = scmp.ne.s32.totalorder %s145, %s146
    %p158 = scmp.eq.s32.totalorder %s26, 1
    %p159 = por %p157, %p158
    %p161 = scmp.ne.s32.totalorder %s146, %s160
    %p162 = scmp.eq.s32.totalorder %s26, 0
    %p163 = por %p161, %p162
    %s165 = sadd.s32 %s164, 1
    %p168 = scmp.eq.s32.totalorder %s20, 1
    %p169 = scmp.ne.s32.totalorder %s164, %s166
    %p170 = scmp.eq.s32.totalorder %s20, 0
    %p171 = por %p169, %p170
    %p172 = scmp.ne.s32.totalorder %s164, %s166
    %p173 = scmp.eq.s32.totalorder %s25, 1
    %p174 = por %p172, %p173
    %p175 = scmp.ne.s32.totalorder %s166, %s167
    %p176 = scmp.eq.s32.totalorder %s25, 0
    %p177 = por %p175, %p176
    %p178 = scmp.ne.s32.totalorder %s166, %s167
    %p179 = scmp.eq.s32.totalorder %s26, 1
    %p180 = por %p178, %p179
    %p182 = scmp.ne.s32.totalorder %s167, %s181
    %p183 = scmp.eq.s32.totalorder %s26, 0
    %p184 = por %p182, %p183
    %s186 = sadd.s32 %s185, 1
    %p189 = scmp.eq.s32.totalorder %s20, 1
    %p190 = scmp.ne.s32.totalorder %s185, %s187
    %p191 = scmp.eq.s32.totalorder %s20, 0
    %p192 = por %p190, %p191
    %p193 = scmp.ne.s32.totalorder %s185, %s187
    %p194 = scmp.eq.s32.totalorder %s25, 1
    %p195 = por %p193, %p194
    %p196 = scmp.ne.s32.totalorder %s187, %s188
    %p197 = scmp.eq.s32.totalorder %s25, 0
    %p198 = por %p196, %p197
    %p199 = scmp.ne.s32.totalorder %s187, %s188
    %p200 = scmp.eq.s32.totalorder %s26, 1
    %p201 = por %p199, %p200
    %p203 = scmp.ne.s32.totalorder %s188, %s202
    %p204 = scmp.eq.s32.totalorder %s26, 0
    %p205 = por %p203, %p204
    %s207 = sadd.s32 %s206, 1
    %p210 = scmp.eq.s32.totalorder %s20, 1
    %p211 = scmp.ne.s32.totalorder %s206, %s208
    %p212 = scmp.eq.s32.totalorder %s20, 0
    %p213 = por %p211, %p212
    %p214 = scmp.ne.s32.totalorder %s206, %s208
    %p215 = scmp.eq.s32.totalorder %s25, 1
    %p216 = por %p214, %p215
    %p217 = scmp.ne.s32.totalorder %s208, %s209
    %p218 = scmp.eq.s32.totalorder %s25, 0
    %p219 = por %p217, %p218
    %p220 = scmp.ne.s32.totalorder %s208, %s209
    %p221 = scmp.eq.s32.totalorder %s26, 1
    %p222 = por %p220, %p221
    %p224 = scmp.ne.s32.totalorder %s209, %s223
    %p225 = scmp.eq.s32.totalorder %s26, 0
    %p226 = por %p224, %p225
    %s228 = sadd.s32 %s227, 1
    %p231 = scmp.eq.s32.totalorder %s20, 1
    %p232 = scmp.ne.s32.totalorder %s227, %s229
    %p233 = scmp.eq.s32.totalorder %s20, 0
    %p234 = por %p232, %p233
    %p235 = scmp.ne.s32.totalorder %s227, %s229
    %p236 = scmp.eq.s32.totalorder %s25, 1
    %p237 = por %p235, %p236
    %p238 = scmp.ne.s32.totalorder %s229, %s230
    %p239 = scmp.eq.s32.totalorder %s25, 0
    %p240 = por %p238, %p239
    %p241 = scmp.ne.s32.totalorder %s229, %s230
    %p242 = scmp.eq.s32.totalorder %s26, 1
    %p243 = por %p241, %p242
    %p245 = scmp.ne.s32.totalorder %s230, %s244
    %p246 = scmp.eq.s32.totalorder %s26, 0
    %p247 = por %p245, %p246
    %s249 = sadd.s32 %s248, 1
    %p252 = scmp.eq.s32.totalorder %s20, 1
    %p253 = scmp.ne.s32.totalorder %s248, %s250
    %p254 = scmp.eq.s32.totalorder %s20, 0
    %p255 = por %p253, %p254
    %p256 = scmp.ne.s32.totalorder %s248, %s250
    %p257 = scmp.eq.s32.totalorder %s25, 1
    %p258 = por %p256, %p257
    %p259 = scmp.ne.s32.totalorder %s250, %s251
    %p260 = scmp.eq.s32.totalorder %s25, 0
    %p261 = por %p259, %p260
    %p262 = scmp.ne.s32.totalorder %s250, %s251
    %p263 = scmp.eq.s32.totalorder %s26, 1
    %p264 = por %p262, %p263
    %p266 = scmp.ne.s32.totalorder %s251, %s265
    %p267 = scmp.eq.s32.totalorder %s26, 0
    %p268 = por %p266, %p267
    %s270 = sadd.s32 %s269, 1
    %p273 = scmp.eq.s32.totalorder %s20, 1
    %p274 = scmp.ne.s32.totalorder %s269, %s271
    %p275 = scmp.eq.s32.totalorder %s20, 0
    %p276 = por %p274, %p275
    %p277 = scmp.ne.s32.totalorder %s269, %s271
    %p278 = scmp.eq.s32.totalorder %s25, 1
    %p279 = por %p277, %p278
    %p280 = scmp.ne.s32.totalorder %s271, %s272
    %p281 = scmp.eq.s32.totalorder %s25, 0
    %p282 = por %p280, %p281
    %p283 = scmp.ne.s32.totalorder %s271, %s272
    %p284 = scmp.eq.s32.totalorder %s26, 1
    %p285 = por %p283, %p284
    %p287 = scmp.ne.s32.totalorder %s272, %s286
    %p288 = scmp.eq.s32.totalorder %s26, 0
    %p289 = por %p287, %p288
    %s291 = sadd.s32 %s290, 1
    %p294 = scmp.eq.s32.totalorder %s20, 1
    %p295 = scmp.ne.s32.totalorder %s290, %s292
    %p296 = scmp.eq.s32.totalorder %s20, 0
    %p297 = por %p295, %p296
    %p298 = scmp.ne.s32.totalorder %s290, %s292
    %p299 = scmp.eq.s32.totalorder %s25, 1
    %p300 = por %p298, %p299
    %p301 = scmp.ne.s32.totalorder %s292, %s293
    %p302 = scmp.eq.s32.totalorder %s25, 0
    %p303 = por %p301, %p302
    %p304 = scmp.ne.s32.totalorder %s292, %s293
    %p305 = scmp.eq.s32.totalorder %s26, 1
    %p306 = por %p304, %p305
    %p308 = scmp.ne.s32.totalorder %s293, %s307
    %p309 = scmp.eq.s32.totalorder %s26, 0
    %p310 = por %p308, %p309
    %s312 = sadd.s32 %s311, 1
    %p315 = scmp.eq.s32.totalorder %s20, 1
    %p316 = scmp.ne.s32.totalorder %s311, %s313
    %p317 = scmp.eq.s32.totalorder %s20, 0
    %p318 = por %p316, %p317
    %p319 = scmp.ne.s32.totalorder %s311, %s313
    %p320 = scmp.eq.s32.totalorder %s25, 1
    %p321 = por %p319, %p320
    %p322 = scmp.ne.s32.totalorder %s313, %s314
    %p323 = scmp.eq.s32.totalorder %s25, 0
    %p324 = por %p322, %p323
    %p325 = scmp.ne.s32.totalorder %s313, %s314
    %p326 = scmp.eq.s32.totalorder %s26, 1
    %p327 = por %p325, %p326
    %p329 = scmp.ne.s32.totalorder %s314, %s328
    %p330 = scmp.eq.s32.totalorder %s26, 0
    %p331 = por %p329, %p330
    %s332 = ssub.s32 %s20, %s27
    %p333 = scmp.eq.s32.totalorder %s332, 0
    %s335 = sadd.s32 %s334, 1
    %s336 = scalar_select %p333, %s334, %s335
    %p339 = pneg %p333
    %p340 = scmp.eq.s32.totalorder %s20, 1
    %p341 = por %p339, %p340
    %p342 = scmp.ne.s32.totalorder %s334, %s337
    %p343 = scmp.eq.s32.totalorder %s20, 0
    %p344 = por %p342, %p343
    %p345 = scmp.ne.s32.totalorder %s334, %s337
    %p346 = scmp.eq.s32.totalorder %s25, 1
    %p347 = por %p345, %p346
    %p348 = scmp.ne.s32.totalorder %s337, %s338
    %p349 = scmp.eq.s32.totalorder %s25, 0
    %p350 = por %p348, %p349
    %p351 = scmp.ne.s32.totalorder %s337, %s338
    %p352 = scmp.eq.s32.totalorder %s26, 1
    %p353 = por %p351, %p352
    %p355 = scmp.ne.s32.totalorder %s338, %s354
    %p356 = scmp.eq.s32.totalorder %s26, 0
    %p357 = por %p355, %p356
    %p358 = scmp.le.s32.totalorder 1, %s20
    %p359 = scmp.lt.s32.totalorder %s20, 3
    %p360 = pnand %p358, %p359
    %p361 = pneg %p360
    // Predicated region
    $region9: #{bert_classifier_forward.4} parent=5 // pred_check
      _
    $region10: #{bert_classifier_forward.4} parent=5 // pred_check_branch
      %363 = sbr.rel (%p360) target = $region12
    $region11: #{bert_classifier_forward.4} parent=5 // pred_region
      %s364 = ssub.s32 %s20, 1
      // Predicated region
      $region13: #{bert_classifier_forward.4} parent=11 // pred_check
        %p365 = pneg %p93
      $region14: #{bert_classifier_forward.4} parent=11 // pred_check_branch
        %367 = sbr.rel (%p365) target = $region16
      $region15: #{bert_classifier_forward.4} parent=11 // pred_region
        _
      $region16: #{bert_classifier_forward.4} parent=11 // pred_fallthru
        _
      // Predicated region
      $region17: #{bert_classifier_forward.4} parent=11 // pred_check
        %p368 = pneg %p114
      $region18: #{bert_classifier_forward.4} parent=11 // pred_check_branch
        %370 = sbr.rel (%p368) target = $region20
      $region19: #{bert_classifier_forward.4} parent=11 // pred_region
        _
      $region20: #{bert_classifier_forward.4} parent=11 // pred_fallthru
        _
      // Predicated region
      $region21: #{bert_classifier_forward.4} parent=11 // pred_check
        %p371 = pneg %p135
      $region22: #{bert_classifier_forward.4} parent=11 // pred_check_branch
        %373 = sbr.rel (%p371) target = $region24
      $region23: #{bert_classifier_forward.4} parent=11 // pred_region
        _
      $region24: #{bert_classifier_forward.4} parent=11 // pred_fallthru
        _
      // Predicated region
      $region25: #{bert_classifier_forward.4} parent=11 // pred_check
        %p374 = pneg %p156
      $region26: #{bert_classifier_forward.4} parent=11 // pred_check_branch
        %376 = sbr.rel (%p374) target = $region28
      $region27: #{bert_classifier_forward.4} parent=11 // pred_region
        _
      $region28: #{bert_classifier_forward.4} parent=11 // pred_fallthru
        _
      // Predicated region
      $region29: #{bert_classifier_forward.4} parent=11 // pred_check
        %p377 = pneg %p177
      $region30: #{bert_classifier_forward.4} parent=11 // pred_check_branch
        %379 = sbr.rel (%p377) target = $region32
      $region31: #{bert_classifier_forward.4} parent=11 // pred_region
        _
      $region32: #{bert_classifier_forward.4} parent=11 // pred_fallthru
        _
      // Predicated region
      $region33: #{bert_classifier_forward.4} parent=11 // pred_check
        %p380 = pneg %p198
      $region34: #{bert_classifier_forward.4} parent=11 // pred_check_branch
        %382 = sbr.rel (%p380) target = $region36
      $region35: #{bert_classifier_forward.4} parent=11 // pred_region
        _
      $region36: #{bert_classifier_forward.4} parent=11 // pred_fallthru
        _
      // Predicated region
      $region37: #{bert_classifier_forward.4} parent=11 // pred_check
        %p383 = pneg %p219
      $region38: #{bert_classifier_forward.4} parent=11 // pred_check_branch
        %385 = sbr.rel (%p383) target = $region40
      $region39: #{bert_classifier_forward.4} parent=11 // pred_region
        _
      $region40: #{bert_classifier_forward.4} parent=11 // pred_fallthru
        _
      // Predicated region
      $region41: #{bert_classifier_forward.4} parent=11 // pred_check
        %p386 = pneg %p240
      $region42: #{bert_classifier_forward.4} parent=11 // pred_check_branch
        %388 = sbr.rel (%p386) target = $region44
      $region43: #{bert_classifier_forward.4} parent=11 // pred_region
        _
      $region44: #{bert_classifier_forward.4} parent=11 // pred_fallthru
        _
      // Predicated region
      $region45: #{bert_classifier_forward.4} parent=11 // pred_check
        %p389 = pneg %p261
      $region46: #{bert_classifier_forward.4} parent=11 // pred_check_branch
        %391 = sbr.rel (%p389) target = $region48
      $region47: #{bert_classifier_forward.4} parent=11 // pred_region
        _
      $region48: #{bert_classifier_forward.4} parent=11 // pred_fallthru
        _
      // Predicated region
      $region49: #{bert_classifier_forward.4} parent=11 // pred_check
        %p392 = pneg %p282
      $region50: #{bert_classifier_forward.4} parent=11 // pred_check_branch
        %394 = sbr.rel (%p392) target = $region52
      $region51: #{bert_classifier_forward.4} parent=11 // pred_region
        _
      $region52: #{bert_classifier_forward.4} parent=11 // pred_fallthru
        _
      // Predicated region
      $region53: #{bert_classifier_forward.4} parent=11 // pred_check
        %p395 = pneg %p303
      $region54: #{bert_classifier_forward.4} parent=11 // pred_check_branch
        %397 = sbr.rel (%p395) target = $region56
      $region55: #{bert_classifier_forward.4} parent=11 // pred_region
        _
      $region56: #{bert_classifier_forward.4} parent=11 // pred_fallthru
        _
      // Predicated region
      $region57: #{bert_classifier_forward.4} parent=11 // pred_check
        %p398 = pneg %p324
      $region58: #{bert_classifier_forward.4} parent=11 // pred_check_branch
        %400 = sbr.rel (%p398) target = $region60
      $region59: #{bert_classifier_forward.4} parent=11 // pred_region
        _
      $region60: #{bert_classifier_forward.4} parent=11 // pred_fallthru
        _
    $region12: #{bert_classifier_forward.4} parent=5 // pred_fallthru
      _
    %p401 = scmp.lt.s32.totalorder %s20, 2
    // Predicated region
    $region61: #{bert_classifier_forward.4} parent=5 // pred_check
      %p402 = pneg %p401
    $region62: #{bert_classifier_forward.4} parent=5 // pred_check_branch
      %404 = sbr.rel (%p402) target = $region64
    $region63: #{bert_classifier_forward.4} parent=5 // pred_region
      // Predicated region
      $region65: #{bert_classifier_forward.4} parent=63 // pred_check
        %p405 = pneg %p40
      $region66: #{bert_classifier_forward.4} parent=63 // pred_check_branch
        %407 = sbr.rel (%p405) target = $region68
      $region67: #{bert_classifier_forward.4} parent=63 // pred_region
        %p408 = scmp.lt.s32.totalorder %s20, 1
        %s409 = scalar_select %p408, %s20, 1
        %s410 = smul.addr %s409, 4
        %s411 = scalar_lea.vmem %s0, %s410
      $region68: #{bert_classifier_forward.4} parent=63 // pred_fallthru
        _
      // Predicated region
      $region69: #{bert_classifier_forward.4} parent=63 // pred_check
        %p412 = pneg %p66
      $region70: #{bert_classifier_forward.4} parent=63 // pred_check_branch
        %414 = sbr.rel (%p412) target = $region72
      $region71: #{bert_classifier_forward.4} parent=63 // pred_region
        %p415 = scmp.lt.s32.totalorder %s20, 1
        %s416 = scalar_select %p415, %s20, 1
        %s417 = scalar_lea.vmem %s1, %s416
      $region72: #{bert_classifier_forward.4} parent=63 // pred_fallthru
        _
    $region64: #{bert_classifier_forward.4} parent=5 // pred_fallthru
      _
    %p418 = scmp.le.s32.totalorder 1, %s20
    %p419 = scmp.lt.s32.totalorder %s20, 3
    %p420 = pnand %p418, %p419
    %p421 = pneg %p420
    // Predicated region
    $region73: #{bert_classifier_forward.4} parent=5 // pred_check
      _
    $region74: #{bert_classifier_forward.4} parent=5 // pred_check_branch
      %423 = sbr.rel (%p420) target = $region76
    $region75: #{bert_classifier_forward.4} parent=5 // pred_region
      %s424 = ssub.s32 %s20, 1
      %p425 = scmp.lt.s32.totalorder %s25, 1
      %s426 = scalar_select %p425, %s25, 1
      %s427 = smul.addr %s426, 4
      %s428 = scalar_lea.vmem %s0, %s427
      %p429 = pneg %p46
      %p430 = pneg %p43
      %p431 = scmp.lt.s32.totalorder %s25, 1
      %s432 = scalar_select %p431, %s25, 1
      %s433 = scalar_lea.vmem %s1, %s432
      %p434 = pneg %p72
      %p435 = pneg %p69
      %p436 = pneg %p93
      %p437 = pneg %p90
      %p438 = pneg %p114
      %p439 = pneg %p111
      %p440 = pneg %p135
      %p441 = pneg %p132
      %p442 = pneg %p156
      %p443 = pneg %p153
      %p444 = pneg %p177
      %p445 = pneg %p174
      %p446 = pneg %p198
      %p447 = pneg %p195
      %p448 = pneg %p219
      %p449 = pneg %p216
      %p450 = pneg %p240
      %p451 = pneg %p237
      %p452 = pneg %p261
      %p453 = pneg %p258
      %p454 = pneg %p282
      %p455 = pneg %p279
      %p456 = pneg %p303
      %p457 = pneg %p300
      %p458 = pneg %p324
      %p459 = pneg %p321
      %p460 = pneg %p350
      %p461 = pneg %p347
      %p462 = scmp.lt.s32.totalorder %s25, 1
      %s463 = scalar_select %p462, %s25, 1
      %s464 = smul.addr %s463, 4
      %s465 = scalar_lea.vmem %s14, %s464
      %p466 = scmp.lt.s32.totalorder %s25, 1
      %s467 = scalar_select %p466, %s25, 1
      %s468 = smul.addr %s467, 4
      %s469 = scalar_lea.vmem %s0, %s468
      %p470 = scmp.lt.s32.totalorder %s25, 1
      %s471 = scalar_select %p470, %s25, 1
      %s472 = scalar_lea.vmem %s1, %s471
      %p473 = scmp.lt.s32.totalorder %s25, 1
      %s474 = scalar_select %p473, %s25, 1
      %s475 = smul.addr %s474, 4
      %s476 = scalar_lea.vmem %s14, %s475
      %v478 = vld [vmem:[%s469] sm:$0xf]
      %v479 = vunpack.c.l.bf16 %v478
      %v480 = vld [vmem:[%s2] sm:$0xf]
      %v481 = vld [vmem:[%s2 + $0x4] sm:$0xf]
      %v482 = vld [vmem:[%s2 + $0x8] sm:$0xf]
      %v483 = vld [vmem:[%s2 + $0xc] sm:$0xf]
      %v484 = vld [vmem:[%s3] sm:$0x1]
      %v486 = vlaneseq
      %v487 = vshrl.u32 %v486, 7
      %v488 = vsub.s32 0, %v487
      %v489 = vrot.slane %v484, %v488
      %v495 = vunpack.c.l.b16 %v480
      %v496 = vunpack.c.l.b16 %v481
      %v497 = vunpack.c.l.b16 %v482
      %v498 = vunpack.c.l.b16 %v483
      %v499 = vpack.c.b16 %v496, %v495
      %v500 = vpack.c.b16 %v498, %v497
      %vm503 = vcmask 261120
      %v505 = vsel %vm503, %v478, 0
      %507 = vmatprep.subr.bf16.mxu0 0
      %508 = vmatpush1.bf16.msra.mxu0 0
      %509 = vmatprep.subr.bf16.mxu0 0
      %510 = vmatpush1.bf16.msra.mxu0 0
      %511 = vmatprep.subr.bf16.mxu0 0
      %512 = vmatpush1.bf16.msra.mxu0 0
      %513 = vmatprep.subr.bf16.mxu0 0
      %514 = vmatpush1.bf16.msra.mxu0 0
      %515 = vmatprep.subr.bf16.mxu0 0
      %516 = vmatpush1.bf16.msra.mxu0 0
      %517 = vmatprep.subr.bf16.mxu0 0
      %518 = vmatpush1.bf16.msra.mxu0 0
      %519 = vmatprep.subr.bf16.mxu0 0
      %520 = vmatpush1.bf16.msra.mxu0 %v500
      %521 = vmatprep.subr.bf16.mxu0 0
      %522 = vmatpush1.bf16.msra.mxu0 %v499
      %523 = vmatprep.subr.bf16.mxu0 0
      %524 = vmatpush2.bf16.msra.mxu0 0
      %525 = vmatprep.subr.bf16.mxu0 0
      %526 = vmatpush2.bf16.msra.mxu0 0
      %527 = vmatprep.subr.bf16.mxu0 0
      %528 = vmatpush2.bf16.msra.mxu0 0
      %529 = vmatprep.subr.bf16.mxu0 0
      %530 = vmatpush2.bf16.msra.mxu0 0
      %531 = vmatprep.subr.bf16.mxu0 0
      %532 = vmatpush2.bf16.msra.mxu0 0
      %533 = vmatprep.subr.bf16.mxu0 0
      %534 = vmatpush2.bf16.msra.mxu0 0
      %535 = vmatprep.subr.bf16.mxu0 0
      %536 = vmatpush2.bf16.msra.mxu0 0
      %537 = vmatprep.subr.bf16.mxu0 0
      %538 = vmatpush2.bf16.msra.mxu0 0
      %539 = vmatprep.mubr.bf16.mxu0 0
      %540 = vmatmul.mubr.bf16.gmra.mxu0 %v505
      %v541 = vpop.f32.mrf.mxu0
      %v542 = vadd.f32 %v489, %v541
      %v543 = vpop.f32.mrf.mxu0
      %v544 = vpop.f32.mrf.mxu0
      %v545 = vpop.f32.mrf.mxu0
      %546 = vdwg.mxu0
      %v547 = vmul.f32 %v542, 0.35355338
      %v548 = vpack.c.bf16 %v547, %v547
      %v549 = vpack.c.bf16 %v542, %v542
      %v550 = vld [vmem:[%s472] sm:$0x1]
      %v552 = vlaneseq
      %v553 = vshrl.u32 %v552, 7
      %v554 = vsub.s32 0, %v553
      %v555 = vrot.slane %v550, %v554
      %v557 = vld [vmem:[%s4] sm:$0xf]
      %v558 = vld [vmem:[%s4 + $0x4] sm:$0xf]
      %v559 = vld [vmem:[%s4 + $0x8] sm:$0xf]
      %v560 = vld [vmem:[%s4 + $0xc] sm:$0xf]
      %562 = vrot.lane.b32.xlu0 %v549, 96
      %v563 = vpop.permute.xlu0 %562
      %vm564 = vcmask 64512
      %v566 = vsel %vm564, %v548, 0
      %v569 = vsel %vm564, %v563, 0
      %571 = vmatprep.subr.bf16.mxu0 0
      %572 = vmatpush1.bf16.xpose.msra.mxu0 0
      %573 = vmatprep.subr.bf16.mxu0 0
      %574 = vmatpush1.bf16.xpose.msra.mxu0 0
      %575 = vmatprep.subr.bf16.mxu0 0
      %576 = vmatpush1.bf16.xpose.msra.mxu0 0
      %577 = vmatprep.subr.bf16.mxu0 0
      %578 = vmatpush1.bf16.xpose.msra.mxu0 0
      %579 = vmatprep.subr.bf16.mxu0 0
      %580 = vmatpush1.bf16.xpose.msra.mxu0 0
      %581 = vmatprep.subr.bf16.mxu0 0
      %582 = vmatpush1.bf16.xpose.msra.mxu0 0
      %583 = vmatprep.subr.bf16.mxu0 0
      %584 = vmatpush1.bf16.xpose.msra.mxu0 0
      %585 = vmatprep.subr.bf16.mxu0 0
      %586 = vmatpush1.bf16.xpose.msra.mxu0 %v569
      %587 = vmatprep.subr.bf16.mxu0 0
      %588 = vmatpush2.bf16.xpose.msra.mxu0 0
      %589 = vmatprep.subr.bf16.mxu0 0
      %590 = vmatpush2.bf16.xpose.msra.mxu0 0
      %591 = vmatprep.subr.bf16.mxu0 0
      %592 = vmatpush2.bf16.xpose.msra.mxu0 0
      %593 = vmatprep.subr.bf16.mxu0 0
      %594 = vmatpush2.bf16.xpose.msra.mxu0 0
      %595 = vmatprep.subr.bf16.mxu0 0
      %596 = vmatpush2.bf16.xpose.msra.mxu0 0
      %597 = vmatprep.subr.bf16.mxu0 0
      %598 = vmatpush2.bf16.xpose.msra.mxu0 0
      %599 = vmatprep.subr.bf16.mxu0 0
      %600 = vmatpush2.bf16.xpose.msra.mxu0 0
      %601 = vmatprep.subr.bf16.mxu0 0
      %602 = vmatpush2.bf16.xpose.msra.mxu0 0
      %603 = vmatprep.mubr.bf16.mxu0 0
      %604 = vmatmul.mubr.bf16.gmra.mxu0 %v566
      %v605 = vpop.f32.mrf.mxu0
      %v606 = vadd.f32 %v555, %v605
      %v607 = vpop.f32.mrf.mxu0
      %v608 = vpop.f32.mrf.mxu0
      %v609 = vpop.f32.mrf.mxu0
      %610 = vdwg.mxu0
      %v611 = vsel %vm564, %v606, -inf
      %612 = vmax.xlane.f32.xlu0 %v611
      %v613 = vpop.xlane.xlu0 %612
      %v614 = vsub.f32 %v606, %v613
      %v615 = vmul.f32 %v614, 1.442695
      %v616 = vpow.pop %v615
      %v617 = vsel %vm564, %v616, 0.0
      %618 = vadd.xlane.f32.xlu0 %v617
      %v619 = vpop.xlane.xlu0 %618
      %v620 = vrcp.pop %v619
      %v621 = vmul.f32 %v616, %v620
      %v622 = vpack.c.bf16 %v621, %v621
      %623 = vrot.lane.b32.xlu0 %v549, 64
      %v624 = vpop.permute.xlu0 %623
      %v626 = vsel %vm564, %v622, 0
      %vm628 = vcmask 1043456
      %v630 = vsel %vm628, %v624, 0
      %632 = vmatprep.subr.bf16.mxu0 0
      %633 = vmatpush1.bf16.msra.mxu0 0
      %634 = vmatprep.subr.bf16.mxu0 0
      %635 = vmatpush1.bf16.msra.mxu0 0
      %636 = vmatprep.subr.bf16.mxu0 0
      %637 = vmatpush1.bf16.msra.mxu0 0
      %638 = vmatprep.subr.bf16.mxu0 0
      %639 = vmatpush1.bf16.msra.mxu0 0
      %640 = vmatprep.subr.bf16.mxu0 0
      %641 = vmatpush1.bf16.msra.mxu0 0
      %642 = vmatprep.subr.bf16.mxu0 0
      %643 = vmatpush1.bf16.msra.mxu0 0
      %644 = vmatprep.subr.bf16.mxu0 0
      %645 = vmatpush1.bf16.msra.mxu0 0
      %646 = vmatprep.subr.bf16.mxu0 0
      %647 = vmatpush1.bf16.msra.mxu0 %v630
      %648 = vmatprep.subr.bf16.mxu0 0
      %649 = vmatpush2.bf16.msra.mxu0 0
      %650 = vmatprep.subr.bf16.mxu0 0
      %651 = vmatpush2.bf16.msra.mxu0 0
      %652 = vmatprep.subr.bf16.mxu0 0
      %653 = vmatpush2.bf16.msra.mxu0 0
      %654 = vmatprep.subr.bf16.mxu0 0
      %655 = vmatpush2.bf16.msra.mxu0 0
      %656 = vmatprep.subr.bf16.mxu0 0
      %657 = vmatpush2.bf16.msra.mxu0 0
      %658 = vmatprep.subr.bf16.mxu0 0
      %659 = vmatpush2.bf16.msra.mxu0 0
      %660 = vmatprep.subr.bf16.mxu0 0
      %661 = vmatpush2.bf16.msra.mxu0 0
      %662 = vmatprep.subr.bf16.mxu0 0
      %663 = vmatpush2.bf16.msra.mxu0 0
      %664 = vmatprep.mubr.bf16.mxu0 0
      %665 = vmatmul.mubr.bf16.gmra.mxu0 %v626
      %v666 = vpop.f32.mrf.mxu0
      %v667 = vadd.f32 0.0, %v666
      %v668 = vpop.f32.mrf.mxu0
      %v669 = vpop.f32.mrf.mxu0
      %v670 = vpop.f32.mrf.mxu0
      %671 = vdwg.mxu0
      %v672 = vpack.c.bf16 %v667, %v667
      %674 = vrot.lane.b32.xlu0 %v548, 120
      %v675 = vpop.permute.xlu0 %674
      %676 = vrot.lane.b32.xlu0 %v549, 88
      %v677 = vpop.permute.xlu0 %676
      %v679 = vsel %vm564, %v675, 0
      %v682 = vsel %vm564, %v677, 0
      %684 = vmatprep.subr.bf16.mxu0 0
      %685 = vmatpush1.bf16.xpose.msra.mxu0 0
      %686 = vmatprep.subr.bf16.mxu0 0
      %687 = vmatpush1.bf16.xpose.msra.mxu0 0
      %688 = vmatprep.subr.bf16.mxu0 0
      %689 = vmatpush1.bf16.xpose.msra.mxu0 0
      %690 = vmatprep.subr.bf16.mxu0 0
      %691 = vmatpush1.bf16.xpose.msra.mxu0 0
      %692 = vmatprep.subr.bf16.mxu0 0
      %693 = vmatpush1.bf16.xpose.msra.mxu0 0
      %694 = vmatprep.subr.bf16.mxu0 0
      %695 = vmatpush1.bf16.xpose.msra.mxu0 0
      %696 = vmatprep.subr.bf16.mxu0 0
      %697 = vmatpush1.bf16.xpose.msra.mxu0 0
      %698 = vmatprep.subr.bf16.mxu0 0
      %699 = vmatpush1.bf16.xpose.msra.mxu0 %v682
      %700 = vmatprep.subr.bf16.mxu0 0
      %701 = vmatpush2.bf16.xpose.msra.mxu0 0
      %702 = vmatprep.subr.bf16.mxu0 0
      %703 = vmatpush2.bf16.xpose.msra.mxu0 0
      %704 = vmatprep.subr.bf16.mxu0 0
      %705 = vmatpush2.bf16.xpose.msra.mxu0 0
      %706 = vmatprep.subr.bf16.mxu0 0
      %707 = vmatpush2.bf16.xpose.msra.mxu0 0
      %708 = vmatprep.subr.bf16.mxu0 0
      %709 = vmatpush2.bf16.xpose.msra.mxu0 0
      %710 = vmatprep.subr.bf16.mxu0 0
      %711 = vmatpush2.bf16.xpose.msra.mxu0 0
      %712 = vmatprep.subr.bf16.mxu0 0
      %713 = vmatpush2.bf16.xpose.msra.mxu0 0
      %714 = vmatprep.subr.bf16.mxu0 0
      %715 = vmatpush2.bf16.xpose.msra.mxu0 0
      %716 = vmatprep.mubr.bf16.mxu0 0
      %717 = vmatmul.mubr.bf16.gmra.mxu0 %v679
      %v718 = vpop.f32.mrf.mxu0
      %v719 = vadd.f32 %v555, %v718
      %v720 = vpop.f32.mrf.mxu0
      %v721 = vpop.f32.mrf.mxu0
      %v722 = vpop.f32.mrf.mxu0
      %723 = vdwg.mxu0
      %v724 = vsel %vm564, %v719, -inf
      %725 = vmax.xlane.f32.xlu0 %v724
      %v726 = vpop.xlane.xlu0 %725
      %v727 = vsub.f32 %v719, %v726
      %v728 = vmul.f32 %v727, 1.442695
      %v729 = vpow.pop %v728
      %v730 = vsel %vm564, %v729, 0.0
      %731 = vadd.xlane.f32.xlu0 %v730
      %v732 = vpop.xlane.xlu0 %731
      %v733 = vrcp.pop %v732
      %v734 = vmul.f32 %v729, %v733
      %v735 = vpack.c.bf16 %v734, %v734
      %736 = vrot.lane.b32.xlu0 %v549, 56
      %v737 = vpop.permute.xlu0 %736
      %v739 = vsel %vm564, %v735, 0
      %v742 = vsel %vm628, %v737, 0
      %744 = vmatprep.subr.bf16.mxu0 0
      %745 = vmatpush1.bf16.msra.mxu0 0
      %746 = vmatprep.subr.bf16.mxu0 0
      %747 = vmatpush1.bf16.msra.mxu0 0
      %748 = vmatprep.subr.bf16.mxu0 0
      %749 = vmatpush1.bf16.msra.mxu0 0
      %750 = vmatprep.subr.bf16.mxu0 0
      %751 = vmatpush1.bf16.msra.mxu0 0
      %752 = vmatprep.subr.bf16.mxu0 0
      %753 = vmatpush1.bf16.msra.mxu0 0
      %754 = vmatprep.subr.bf16.mxu0 0
      %755 = vmatpush1.bf16.msra.mxu0 0
      %756 = vmatprep.subr.bf16.mxu0 0
      %757 = vmatpush1.bf16.msra.mxu0 0
      %758 = vmatprep.subr.bf16.mxu0 0
      %759 = vmatpush1.bf16.msra.mxu0 %v742
      %760 = vmatprep.subr.bf16.mxu0 0
      %761 = vmatpush2.bf16.msra.mxu0 0
      %762 = vmatprep.subr.bf16.mxu0 0
      %763 = vmatpush2.bf16.msra.mxu0 0
      %764 = vmatprep.subr.bf16.mxu0 0
      %765 = vmatpush2.bf16.msra.mxu0 0
      %766 = vmatprep.subr.bf16.mxu0 0
      %767 = vmatpush2.bf16.msra.mxu0 0
      %768 = vmatprep.subr.bf16.mxu0 0
      %769 = vmatpush2.bf16.msra.mxu0 0
      %770 = vmatprep.subr.bf16.mxu0 0
      %771 = vmatpush2.bf16.msra.mxu0 0
      %772 = vmatprep.subr.bf16.mxu0 0
      %773 = vmatpush2.bf16.msra.mxu0 0
      %774 = vmatprep.subr.bf16.mxu0 0
      %775 = vmatpush2.bf16.msra.mxu0 0
      %776 = vmatprep.mubr.bf16.mxu0 0
      %777 = vmatmul.mubr.bf16.gmra.mxu0 %v739
      %v778 = vpop.f32.mrf.mxu0
      %v779 = vadd.f32 0.0, %v778
      %v780 = vpop.f32.mrf.mxu0
      %v781 = vpop.f32.mrf.mxu0
      %v782 = vpop.f32.mrf.mxu0
      %783 = vdwg.mxu0
      %v784 = vpack.c.bf16 %v779, %v779
      %v786 = vsel %vm564, %v784, 0
      %v789 = vsel %vm628, %v558, 0
      %791 = vmatprep.subr.bf16.mxu0 0
      %792 = vmatpush1.bf16.msra.mxu0 0
      %793 = vmatprep.subr.bf16.mxu0 0
      %794 = vmatpush1.bf16.msra.mxu0 0
      %795 = vmatprep.subr.bf16.mxu0 0
      %796 = vmatpush1.bf16.msra.mxu0 0
      %797 = vmatprep.subr.bf16.mxu0 0
      %798 = vmatpush1.bf16.msra.mxu0 0
      %799 = vmatprep.subr.bf16.mxu0 0
      %800 = vmatpush1.bf16.msra.mxu0 0
      %801 = vmatprep.subr.bf16.mxu0 0
      %802 = vmatpush1.bf16.msra.mxu0 0
      %803 = vmatprep.subr.bf16.mxu0 0
      %804 = vmatpush1.bf16.msra.mxu0 0
      %805 = vmatprep.subr.bf16.mxu0 0
      %806 = vmatpush1.bf16.msra.mxu0 %v789
      %807 = vmatprep.subr.bf16.mxu0 0
      %808 = vmatpush2.bf16.msra.mxu0 0
      %809 = vmatprep.subr.bf16.mxu0 0
      %810 = vmatpush2.bf16.msra.mxu0 0
      %811 = vmatprep.subr.bf16.mxu0 0
      %812 = vmatpush2.bf16.msra.mxu0 0
      %813 = vmatprep.subr.bf16.mxu0 0
      %814 = vmatpush2.bf16.msra.mxu0 0
      %815 = vmatprep.subr.bf16.mxu0 0
      %816 = vmatpush2.bf16.msra.mxu0 0
      %817 = vmatprep.subr.bf16.mxu0 0
      %818 = vmatpush2.bf16.msra.mxu0 0
      %819 = vmatprep.subr.bf16.mxu0 0
      %820 = vmatpush2.bf16.msra.mxu0 0
      %821 = vmatprep.subr.bf16.mxu0 0
      %822 = vmatpush2.bf16.msra.mxu0 0
      %823 = vmatprep.mubr.bf16.mxu0 0
      %824 = vmatmul.mubr.bf16.gmra.mxu0 %v786
      %v825 = vpop.f32.mrf.mxu0
      %v826 = vadd.f32 0.0, %v825
      %v827 = vpop.f32.mrf.mxu0
      %v828 = vpop.f32.mrf.mxu0
      %v829 = vpop.f32.mrf.mxu0
      %830 = vdwg.mxu0
      %v832 = vsel %vm564, %v672, 0
      %v835 = vsel %vm628, %v557, 0
      %837 = vmatprep.subr.bf16.mxu0 0
      %838 = vmatpush1.bf16.msra.mxu0 0
      %839 = vmatprep.subr.bf16.mxu0 0
      %840 = vmatpush1.bf16.msra.mxu0 0
      %841 = vmatprep.subr.bf16.mxu0 0
      %842 = vmatpush1.bf16.msra.mxu0 0
      %843 = vmatprep.subr.bf16.mxu0 0
      %844 = vmatpush1.bf16.msra.mxu0 0
      %845 = vmatprep.subr.bf16.mxu0 0
      %846 = vmatpush1.bf16.msra.mxu0 0
      %847 = vmatprep.subr.bf16.mxu0 0
      %848 = vmatpush1.bf16.msra.mxu0 0
      %849 = vmatprep.subr.bf16.mxu0 0
      %850 = vmatpush1.bf16.msra.mxu0 0
      %851 = vmatprep.subr.bf16.mxu0 0
      %852 = vmatpush1.bf16.msra.mxu0 %v835
      %853 = vmatprep.subr.bf16.mxu0 0
      %854 = vmatpush2.bf16.msra.mxu0 0
      %855 = vmatprep.subr.bf16.mxu0 0
      %856 = vmatpush2.bf16.msra.mxu0 0
      %857 = vmatprep.subr.bf16.mxu0 0
      %858 = vmatpush2.bf16.msra.mxu0 0
      %859 = vmatprep.subr.bf16.mxu0 0
      %860 = vmatpush2.bf16.msra.mxu0 0
      %861 = vmatprep.subr.bf16.mxu0 0
      %862 = vmatpush2.bf16.msra.mxu0 0
      %863 = vmatprep.subr.bf16.mxu0 0
      %864 = vmatpush2.bf16.msra.mxu0 0
      %865 = vmatprep.subr.bf16.mxu0 0
      %866 = vmatpush2.bf16.msra.mxu0 0
      %867 = vmatprep.subr.bf16.mxu0 0
      %868 = vmatpush2.bf16.msra.mxu0 0
      %869 = vmatprep.mubr.bf16.mxu0 0
      %870 = vmatmul.mubr.bf16.gmra.mxu0 %v832
      %v871 = vpop.f32.mrf.mxu0
      %v872 = vadd.f32 %v826, %v871
      %v873 = vpop.f32.mrf.mxu0
      %v874 = vpop.f32.mrf.mxu0
      %v875 = vpop.f32.mrf.mxu0
      %876 = vdwg.mxu0
      %877 = vrot.lane.b32.xlu0 %v548, 112
      %v878 = vpop.permute.xlu0 %877
      %879 = vrot.lane.b32.xlu0 %v549, 80
      %v880 = vpop.permute.xlu0 %879
      %v882 = vsel %vm564, %v878, 0
      %v885 = vsel %vm564, %v880, 0
      %887 = vmatprep.subr.bf16.mxu0 0
      %888 = vmatpush1.bf16.xpose.msra.mxu0 0
      %889 = vmatprep.subr.bf16.mxu0 0
      %890 = vmatpush1.bf16.xpose.msra.mxu0 0
      %891 = vmatprep.subr.bf16.mxu0 0
      %892 = vmatpush1.bf16.xpose.msra.mxu0 0
      %893 = vmatprep.subr.bf16.mxu0 0
      %894 = vmatpush1.bf16.xpose.msra.mxu0 0
      %895 = vmatprep.subr.bf16.mxu0 0
      %896 = vmatpush1.bf16.xpose.msra.mxu0 0
      %897 = vmatprep.subr.bf16.mxu0 0
      %898 = vmatpush1.bf16.xpose.msra.mxu0 0
      %899 = vmatprep.subr.bf16.mxu0 0
      %900 = vmatpush1.bf16.xpose.msra.mxu0 0
      %901 = vmatprep.subr.bf16.mxu0 0
      %902 = vmatpush1.bf16.xpose.msra.mxu0 %v885
      %903 = vmatprep.subr.bf16.mxu0 0
      %904 = vmatpush2.bf16.xpose.msra.mxu0 0
      %905 = vmatprep.subr.bf16.mxu0 0
      %906 = vmatpush2.bf16.xpose.msra.mxu0 0
      %907 = vmatprep.subr.bf16.mxu0 0
      %908 = vmatpush2.bf16.xpose.msra.mxu0 0
      %909 = vmatprep.subr.bf16.mxu0 0
      %910 = vmatpush2.bf16.xpose.msra.mxu0 0
      %911 = vmatprep.subr.bf16.mxu0 0
      %912 = vmatpush2.bf16.xpose.msra.mxu0 0
      %913 = vmatprep.subr.bf16.mxu0 0
      %914 = vmatpush2.bf16.xpose.msra.mxu0 0
      %915 = vmatprep.subr.bf16.mxu0 0
      %916 = vmatpush2.bf16.xpose.msra.mxu0 0
      %917 = vmatprep.subr.bf16.mxu0 0
      %918 = vmatpush2.bf16.xpose.msra.mxu0 0
      %919 = vmatprep.mubr.bf16.mxu0 0
      %920 = vmatmul.mubr.bf16.gmra.mxu0 %v882
      %v921 = vpop.f32.mrf.mxu0
      %v922 = vadd.f32 %v555, %v921
      %v923 = vpop.f32.mrf.mxu0
      %v924 = vpop.f32.mrf.mxu0
      %v925 = vpop.f32.mrf.mxu0
      %926 = vdwg.mxu0
      %v927 = vsel %vm564, %v922, -inf
      %928 = vmax.xlane.f32.xlu0 %v927
      %v929 = vpop.xlane.xlu0 %928
      %v930 = vsub.f32 %v922, %v929
      %v931 = vmul.f32 %v930, 1.442695
      %v932 = vpow.pop %v931
      %v933 = vsel %vm564, %v932, 0.0
      %934 = vadd.xlane.f32.xlu0 %v933
      %v935 = vpop.xlane.xlu0 %934
      %v936 = vrcp.pop %v935
      %v937 = vmul.f32 %v932, %v936
      %v938 = vpack.c.bf16 %v937, %v937
      %939 = vrot.lane.b32.xlu0 %v549, 48
      %v940 = vpop.permute.xlu0 %939
      %v942 = vsel %vm564, %v938, 0
      %v945 = vsel %vm628, %v940, 0
      %947 = vmatprep.subr.bf16.mxu0 0
      %948 = vmatpush1.bf16.msra.mxu0 0
      %949 = vmatprep.subr.bf16.mxu0 0
      %950 = vmatpush1.bf16.msra.mxu0 0
      %951 = vmatprep.subr.bf16.mxu0 0
      %952 = vmatpush1.bf16.msra.mxu0 0
      %953 = vmatprep.subr.bf16.mxu0 0
      %954 = vmatpush1.bf16.msra.mxu0 0
      %955 = vmatprep.subr.bf16.mxu0 0
      %956 = vmatpush1.bf16.msra.mxu0 0
      %957 = vmatprep.subr.bf16.mxu0 0
      %958 = vmatpush1.bf16.msra.mxu0 0
      %959 = vmatprep.subr.bf16.mxu0 0
      %960 = vmatpush1.bf16.msra.mxu0 0
      %961 = vmatprep.subr.bf16.mxu0 0
      %962 = vmatpush1.bf16.msra.mxu0 %v945
      %963 = vmatprep.subr.bf16.mxu0 0
      %964 = vmatpush2.bf16.msra.mxu0 0
      %965 = vmatprep.subr.bf16.mxu0 0
      %966 = vmatpush2.bf16.msra.mxu0 0
      %967 = vmatprep.subr.bf16.mxu0 0
      %968 = vmatpush2.bf16.msra.mxu0 0
      %969 = vmatprep.subr.bf16.mxu0 0
      %970 = vmatpush2.bf16.msra.mxu0 0
      %971 = vmatprep.subr.bf16.mxu0 0
      %972 = vmatpush2.bf16.msra.mxu0 0
      %973 = vmatprep.subr.bf16.mxu0 0
      %974 = vmatpush2.bf16.msra.mxu0 0
      %975 = vmatprep.subr.bf16.mxu0 0
      %976 = vmatpush2.bf16.msra.mxu0 0
      %977 = vmatprep.subr.bf16.mxu0 0
      %978 = vmatpush2.bf16.msra.mxu0 0
      %979 = vmatprep.mubr.bf16.mxu0 0
      %980 = vmatmul.mubr.bf16.gmra.mxu0 %v942
      %v981 = vpop.f32.mrf.mxu0
      %v982 = vadd.f32 0.0, %v981
      %v983 = vpop.f32.mrf.mxu0
      %v984 = vpop.f32.mrf.mxu0
      %v985 = vpop.f32.mrf.mxu0
      %986 = vdwg.mxu0
      %v987 = vpack.c.bf16 %v982, %v982
      %v989 = vsel %vm564, %v987, 0
      %v992 = vsel %vm628, %v559, 0
      %994 = vmatprep.subr.bf16.mxu0 0
      %995 = vmatpush1.bf16.msra.mxu0 0
      %996 = vmatprep.subr.bf16.mxu0 0
      %997 = vmatpush1.bf16.msra.mxu0 0
      %998 = vmatprep.subr.bf16.mxu0 0
      %999 = vmatpush1.bf16.msra.mxu0 0
      %1000 = vmatprep.subr.bf16.mxu0 0
      %1001 = vmatpush1.bf16.msra.mxu0 0
      %1002 = vmatprep.subr.bf16.mxu0 0
      %1003 = vmatpush1.bf16.msra.mxu0 0
      %1004 = vmatprep.subr.bf16.mxu0 0
      %1005 = vmatpush1.bf16.msra.mxu0 0
      %1006 = vmatprep.subr.bf16.mxu0 0
      %1007 = vmatpush1.bf16.msra.mxu0 0
      %1008 = vmatprep.subr.bf16.mxu0 0
      %1009 = vmatpush1.bf16.msra.mxu0 %v992
      %1010 = vmatprep.subr.bf16.mxu0 0
      %1011 = vmatpush2.bf16.msra.mxu0 0
      %1012 = vmatprep.subr.bf16.mxu0 0
      %1013 = vmatpush2.bf16.msra.mxu0 0
      %1014 = vmatprep.subr.bf16.mxu0 0
      %1015 = vmatpush2.bf16.msra.mxu0 0
      %1016 = vmatprep.subr.bf16.mxu0 0
      %1017 = vmatpush2.bf16.msra.mxu0 0
      %1018 = vmatprep.subr.bf16.mxu0 0
      %1019 = vmatpush2.bf16.msra.mxu0 0
      %1020 = vmatprep.subr.bf16.mxu0 0
      %1021 = vmatpush2.bf16.msra.mxu0 0
      %1022 = vmatprep.subr.bf16.mxu0 0
      %1023 = vmatpush2.bf16.msra.mxu0 0
      %1024 = vmatprep.subr.bf16.mxu0 0
      %1025 = vmatpush2.bf16.msra.mxu0 0
      %1026 = vmatprep.mubr.bf16.mxu0 0
      %1027 = vmatmul.mubr.bf16.gmra.mxu0 %v989
      %v1028 = vpop.f32.mrf.mxu0
      %v1029 = vadd.f32 0.0, %v1028
      %v1030 = vpop.f32.mrf.mxu0
      %v1031 = vpop.f32.mrf.mxu0
      %v1032 = vpop.f32.mrf.mxu0
      %1033 = vdwg.mxu0
      %v1034 = vadd.f32 %v872, %v1029
      %1035 = vrot.lane.b32.xlu0 %v548, 104
      %v1036 = vpop.permute.xlu0 %1035
      %1037 = vrot.lane.b32.xlu0 %v549, 72
      %v1038 = vpop.permute.xlu0 %1037
      %v1040 = vsel %vm564, %v1036, 0
      %v1043 = vsel %vm564, %v1038, 0
      %1045 = vmatprep.subr.bf16.mxu0 0
      %1046 = vmatpush1.bf16.xpose.msra.mxu0 0
      %1047 = vmatprep.subr.bf16.mxu0 0
      %1048 = vmatpush1.bf16.xpose.msra.mxu0 0
      %1049 = vmatprep.subr.bf16.mxu0 0
      %1050 = vmatpush1.bf16.xpose.msra.mxu0 0
      %1051 = vmatprep.subr.bf16.mxu0 0
      %1052 = vmatpush1.bf16.xpose.msra.mxu0 0
      %1053 = vmatprep.subr.bf16.mxu0 0
      %1054 = vmatpush1.bf16.xpose.msra.mxu0 0
      %1055 = vmatprep.subr.bf16.mxu0 0
      %1056 = vmatpush1.bf16.xpose.msra.mxu0 0
      %1057 = vmatprep.subr.bf16.mxu0 0
      %1058 = vmatpush1.bf16.xpose.msra.mxu0 0
      %1059 = vmatprep.subr.bf16.mxu0 0
      %1060 = vmatpush1.bf16.xpose.msra.mxu0 %v1043
      %1061 = vmatprep.subr.bf16.mxu0 0
      %1062 = vmatpush2.bf16.xpose.msra.mxu0 0
      %1063 = vmatprep.subr.bf16.mxu0 0
      %1064 = vmatpush2.bf16.xpose.msra.mxu0 0
      %1065 = vmatprep.subr.bf16.mxu0 0
      %1066 = vmatpush2.bf16.xpose.msra.mxu0 0
      %1067 = vmatprep.subr.bf16.mxu0 0
      %1068 = vmatpush2.bf16.xpose.msra.mxu0 0
      %1069 = vmatprep.subr.bf16.mxu0 0
      %1070 = vmatpush2.bf16.xpose.msra.mxu0 0
      %1071 = vmatprep.subr.bf16.mxu0 0
      %1072 = vmatpush2.bf16.xpose.msra.mxu0 0
      %1073 = vmatprep.subr.bf16.mxu0 0
      %1074 = vmatpush2.bf16.xpose.msra.mxu0 0
      %1075 = vmatprep.subr.bf16.mxu0 0
      %1076 = vmatpush2.bf16.xpose.msra.mxu0 0
      %1077 = vmatprep.mubr.bf16.mxu0 0
      %1078 = vmatmul.mubr.bf16.gmra.mxu0 %v1040
      %v1079 = vpop.f32.mrf.mxu0
      %v1080 = vadd.f32 %v555, %v1079
      %v1081 = vpop.f32.mrf.mxu0
      %v1082 = vpop.f32.mrf.mxu0
      %v1083 = vpop.f32.mrf.mxu0
      %1084 = vdwg.mxu0
      %v1085 = vsel %vm564, %v1080, -inf
      %1086 = vmax.xlane.f32.xlu0 %v1085
      %v1087 = vpop.xlane.xlu0 %1086
      %v1088 = vsub.f32 %v1080, %v1087
      %v1089 = vmul.f32 %v1088, 1.442695
      %v1090 = vpow.pop %v1089
      %v1091 = vsel %vm564, %v1090, 0.0
      %1092 = vadd.xlane.f32.xlu0 %v1091
      %v1093 = vpop.xlane.xlu0 %1092
      %v1094 = vrcp.pop %v1093
      %v1095 = vmul.f32 %v1090, %v1094
      %v1096 = vpack.c.bf16 %v1095, %v1095
      %1097 = vrot.lane.b32.xlu0 %v549, 40
      %v1098 = vpop.permute.xlu0 %1097
      %v1100 = vsel %vm564, %v1096, 0
      %v1103 = vsel %vm628, %v1098, 0
      %1105 = vmatprep.subr.bf16.mxu0 0
      %1106 = vmatpush1.bf16.msra.mxu0 0
      %1107 = vmatprep.subr.bf16.mxu0 0
      %1108 = vmatpush1.bf16.msra.mxu0 0
      %1109 = vmatprep.subr.bf16.mxu0 0
      %1110 = vmatpush1.bf16.msra.mxu0 0
      %1111 = vmatprep.subr.bf16.mxu0 0
      %1112 = vmatpush1.bf16.msra.mxu0 0
      %1113 = vmatprep.subr.bf16.mxu0 0
      %1114 = vmatpush1.bf16.msra.mxu0 0
      %1115 = vmatprep.subr.bf16.mxu0 0
      %1116 = vmatpush1.bf16.msra.mxu0 0
      %1117 = vmatprep.subr.bf16.mxu0 0
      %1118 = vmatpush1.bf16.msra.mxu0 0
      %1119 = vmatprep.subr.bf16.mxu0 0
      %1120 = vmatpush1.bf16.msra.mxu0 %v1103
      %1121 = vmatprep.subr.bf16.mxu0 0
      %1122 = vmatpush2.bf16.msra.mxu0 0
      %1123 = vmatprep.subr.bf16.mxu0 0
      %1124 = vmatpush2.bf16.msra.mxu0 0
      %1125 = vmatprep.subr.bf16.mxu0 0
      %1126 = vmatpush2.bf16.msra.mxu0 0
      %1127 = vmatprep.subr.bf16.mxu0 0
      %1128 = vmatpush2.bf16.msra.mxu0 0
      %1129 = vmatprep.subr.bf16.mxu0 0
      %1130 = vmatpush2.bf16.msra.mxu0 0
      %1131 = vmatprep.subr.bf16.mxu0 0
      %1132 = vmatpush2.bf16.msra.mxu0 0
      %1133 = vmatprep.subr.bf16.mxu0 0
      %1134 = vmatpush2.bf16.msra.mxu0 0
      %1135 = vmatprep.subr.bf16.mxu0 0
      %1136 = vmatpush2.bf16.msra.mxu0 0
      %1137 = vmatprep.mubr.bf16.mxu0 0
      %1138 = vmatmul.mubr.bf16.gmra.mxu0 %v1100
      %v1139 = vpop.f32.mrf.mxu0
      %v1140 = vadd.f32 0.0, %v1139
      %v1141 = vpop.f32.mrf.mxu0
      %v1142 = vpop.f32.mrf.mxu0
      %v1143 = vpop.f32.mrf.mxu0
      %1144 = vdwg.mxu0
      %v1145 = vpack.c.bf16 %v1140, %v1140
      %v1147 = vsel %vm564, %v1145, 0
      %v1150 = vsel %vm628, %v560, 0
      %1152 = vmatprep.subr.bf16.mxu0 0
      %1153 = vmatpush1.bf16.msra.mxu0 0
      %1154 = vmatprep.subr.bf16.mxu0 0
      %1155 = vmatpush1.bf16.msra.mxu0 0
      %1156 = vmatprep.subr.bf16.mxu0 0
      %1157 = vmatpush1.bf16.msra.mxu0 0
      %1158 = vmatprep.subr.bf16.mxu0 0
      %1159 = vmatpush1.bf16.msra.mxu0 0
      %1160 = vmatprep.subr.bf16.mxu0 0
      %1161 = vmatpush1.bf16.msra.mxu0 0
      %1162 = vmatprep.subr.bf16.mxu0 0
      %1163 = vmatpush1.bf16.msra.mxu0 0
      %1164 = vmatprep.subr.bf16.mxu0 0
      %1165 = vmatpush1.bf16.msra.mxu0 0
      %1166 = vmatprep.subr.bf16.mxu0 0
      %1167 = vmatpush1.bf16.msra.mxu0 %v1150
      %1168 = vmatprep.subr.bf16.mxu0 0
      %1169 = vmatpush2.bf16.msra.mxu0 0
      %1170 = vmatprep.subr.bf16.mxu0 0
      %1171 = vmatpush2.bf16.msra.mxu0 0
      %1172 = vmatprep.subr.bf16.mxu0 0
      %1173 = vmatpush2.bf16.msra.mxu0 0
      %1174 = vmatprep.subr.bf16.mxu0 0
      %1175 = vmatpush2.bf16.msra.mxu0 0
      %1176 = vmatprep.subr.bf16.mxu0 0
      %1177 = vmatpush2.bf16.msra.mxu0 0
      %1178 = vmatprep.subr.bf16.mxu0 0
      %1179 = vmatpush2.bf16.msra.mxu0 0
      %1180 = vmatprep.subr.bf16.mxu0 0
      %1181 = vmatpush2.bf16.msra.mxu0 0
      %1182 = vmatprep.subr.bf16.mxu0 0
      %1183 = vmatpush2.bf16.msra.mxu0 0
      %1184 = vmatprep.mubr.bf16.mxu0 0
      %1185 = vmatmul.mubr.bf16.gmra.mxu0 %v1147
      %v1186 = vpop.f32.mrf.mxu0
      %v1187 = vadd.f32 0.0, %v1186
      %v1188 = vpop.f32.mrf.mxu0
      %v1189 = vpop.f32.mrf.mxu0
      %v1190 = vpop.f32.mrf.mxu0
      %1191 = vdwg.mxu0
      %v1192 = vadd.f32 %v1034, %v1187
      %v1193 = vld [vmem:[%s5] sm:$0x1]
      %v1195 = vlaneseq
      %v1196 = vshrl.u32 %v1195, 7
      %v1197 = vsub.s32 0, %v1196
      %v1198 = vrot.slane %v1193, %v1197
      %v1200 = vadd.f32 %v1192, %v1198
      %v1201 = vadd.f32 %v1200, %v479
      %v1202 = vld [vmem:[%s6] sm:$0x1]
      %v1203 = vld [vmem:[%s7] sm:$0x1]
      %v1204 = vsel %vm503, %v1201, 0.0
      %1205 = vadd.xlane.f32.xlu0 %v1204
      %v1206 = vpop.xlane.xlu0 %1205
      %v1207 = vrcp.pop 32.0
      %v1208 = vmul.f32 %v1206, %v1207
      %v1209 = vsub.f32 %v1201, %v1208
      %v1210 = vmul.f32 %v1209, %v1209
      %v1211 = vsel %vm503, %v1210, 0.0
      %1212 = vadd.xlane.f32.xlu0 %v1211
      %v1213 = vpop.xlane.xlu0 %1212
      %v1214 = vmul.f32 %v1213, %v1207
      %v1215 = vadd.f32 %v1214, 1e-12
      %v1216 = vrsqrt.pop %v1215
      %v1217 = vmul.f32 %v1209, %v1216
      %v1219 = vlaneseq
      %v1220 = vshrl.u32 %v1219, 7
      %v1221 = vsub.s32 0, %v1220
      %v1222 = vrot.slane %v1202, %v1221
      %v1224 = vmul.f32 %v1217, %v1222
      %v1226 = vlaneseq
      %v1227 = vshrl.u32 %v1226, 7
      %v1228 = vsub.s32 0, %v1227
      %v1229 = vrot.slane %v1203, %v1228
      %v1231 = vadd.f32 %v1224, %v1229
      %v1232 = vpack.c.bf16 %v1231, %v1231
      %v1233 = vld [vmem:[%s8] sm:$0xf]
      %v1234 = vld [vmem:[%s8 + $0x4] sm:$0xf]
      %v1235 = vld [vmem:[%s8 + $0x8] sm:$0xf]
      %v1236 = vld [vmem:[%s8 + $0xc] sm:$0xf]
      %v1237 = vld [vmem:[%s9] sm:$0x1]
      %v1239 = vlaneseq
      %v1240 = vshrl.u32 %v1239, 7
      %v1241 = vsub.s32 0, %v1240
      %v1242 = vrot.slane %v1237, %v1241
      %v1248 = vunpack.c.l.b16 %v1233
      %v1249 = vunpack.c.l.b16 %v1234
      %v1250 = vunpack.c.l.b16 %v1235
      %v1251 = vunpack.c.l.b16 %v1236
      %v1252 = vpack.c.b16 %v1249, %v1248
      %v1253 = vpack.c.b16 %v1251, %v1250
      %v1257 = vsel %vm503, %v1232, 0
      %1259 = vmatprep.subr.bf16.mxu0 0
      %1260 = vmatpush1.bf16.msra.mxu0 0
      %1261 = vmatprep.subr.bf16.mxu0 0
      %1262 = vmatpush1.bf16.msra.mxu0 0
      %1263 = vmatprep.subr.bf16.mxu0 0
      %1264 = vmatpush1.bf16.msra.mxu0 0
      %1265 = vmatprep.subr.bf16.mxu0 0
      %1266 = vmatpush1.bf16.msra.mxu0 0
      %1267 = vmatprep.subr.bf16.mxu0 0
      %1268 = vmatpush1.bf16.msra.mxu0 0
      %1269 = vmatprep.subr.bf16.mxu0 0
      %1270 = vmatpush1.bf16.msra.mxu0 0
      %1271 = vmatprep.subr.bf16.mxu0 0
      %1272 = vmatpush1.bf16.msra.mxu0 %v1253
      %1273 = vmatprep.subr.bf16.mxu0 0
      %1274 = vmatpush1.bf16.msra.mxu0 %v1252
      %1275 = vmatprep.subr.bf16.mxu0 0
      %1276 = vmatpush2.bf16.msra.mxu0 0
      %1277 = vmatprep.subr.bf16.mxu0 0
      %1278 = vmatpush2.bf16.msra.mxu0 0
      %1279 = vmatprep.subr.bf16.mxu0 0
      %1280 = vmatpush2.bf16.msra.mxu0 0
      %1281 = vmatprep.subr.bf16.mxu0 0
      %1282 = vmatpush2.bf16.msra.mxu0 0
      %1283 = vmatprep.subr.bf16.mxu0 0
      %1284 = vmatpush2.bf16.msra.mxu0 0
      %1285 = vmatprep.subr.bf16.mxu0 0
      %1286 = vmatpush2.bf16.msra.mxu0 0
      %1287 = vmatprep.subr.bf16.mxu0 0
      %1288 = vmatpush2.bf16.msra.mxu0 0
      %1289 = vmatprep.subr.bf16.mxu0 0
      %1290 = vmatpush2.bf16.msra.mxu0 0
      %1291 = vmatprep.mubr.bf16.mxu0 0
      %1292 = vmatmul.mubr.bf16.gmra.mxu0 %v1257
      %v1293 = vpop.f32.mrf.mxu0
      %v1294 = vadd.f32 %v1242, %v1293
      %v1295 = vpop.f32.mrf.mxu0
      %v1296 = vpop.f32.mrf.mxu0
      %v1297 = vpop.f32.mrf.mxu0
      %1298 = vdwg.mxu0
      %v1299 = vmul.f32 %v1294, 0.5
      %v1300 = vmul.f32 %v1294, 0.044715
      %v1301 = vmul.f32 %v1300, %v1294
      %v1302 = vmul.f32 %v1301, %v1294
      %v1303 = vadd.f32 %v1294, %v1302
      %v1304 = vmul.f32 %v1303, 0.7978846
      %v1305 = vtanh.pop %v1304
      %v1306 = vadd.f32 %v1305, 1.0
      %v1307 = vmul.f32 %v1299, %v1306
      %v1308 = vpack.c.bf16 %v1307, %v1307
      %v1309 = vld [vmem:[%s10] sm:$0xf]
      %v1310 = vld [vmem:[%s10 + $0x4] sm:$0xf]
      %v1311 = vld [vmem:[%s10 + $0x8] sm:$0xf]
      %v1312 = vld [vmem:[%s10 + $0xc] sm:$0xf]
      %v1313 = vld [vmem:[%s10 + $0x10] sm:$0xf]
      %v1314 = vld [vmem:[%s10 + $0x14] sm:$0xf]
      %v1315 = vld [vmem:[%s10 + $0x18] sm:$0xf]
      %v1316 = vld [vmem:[%s10 + $0x1c] sm:$0xf]
      %v1317 = vld [vmem:[%s11] sm:$0x1]
      %v1319 = vlaneseq
      %v1320 = vshrl.u32 %v1319, 7
      %v1321 = vsub.s32 0, %v1320
      %v1322 = vrot.slane %v1317, %v1321
      %v1332 = vunpack.c.l.b16 %v1309
      %v1333 = vunpack.c.l.b16 %v1310
      %v1334 = vunpack.c.l.b16 %v1311
      %v1335 = vunpack.c.l.b16 %v1312
      %v1336 = vunpack.c.l.b16 %v1313
      %v1337 = vunpack.c.l.b16 %v1314
      %v1338 = vunpack.c.l.b16 %v1315
      %v1339 = vunpack.c.l.b16 %v1316
      %v1340 = vpack.c.b16 %v1333, %v1332
      %v1341 = vpack.c.b16 %v1335, %v1334
      %v1342 = vpack.c.b16 %v1337, %v1336
      %v1343 = vpack.c.b16 %v1339, %v1338
      %vm1348 = vcmask 523264
      %v1350 = vsel %vm1348, %v1308, 0
      %1352 = vmatprep.subr.bf16.mxu0 0
      %1353 = vmatpush1.bf16.msra.mxu0 0
      %1354 = vmatprep.subr.bf16.mxu0 0
      %1355 = vmatpush1.bf16.msra.mxu0 0
      %1356 = vmatprep.subr.bf16.mxu0 0
      %1357 = vmatpush1.bf16.msra.mxu0 0
      %1358 = vmatprep.subr.bf16.mxu0 0
      %1359 = vmatpush1.bf16.msra.mxu0 0
      %1360 = vmatprep.subr.bf16.mxu0 0
      %1361 = vmatpush1.bf16.msra.mxu0 %v1343
      %1362 = vmatprep.subr.bf16.mxu0 0
      %1363 = vmatpush1.bf16.msra.mxu0 %v1342
      %1364 = vmatprep.subr.bf16.mxu0 0
      %1365 = vmatpush1.bf16.msra.mxu0 %v1341
      %1366 = vmatprep.subr.bf16.mxu0 0
      %1367 = vmatpush1.bf16.msra.mxu0 %v1340
      %1368 = vmatprep.subr.bf16.mxu0 0
      %1369 = vmatpush2.bf16.msra.mxu0 0
      %1370 = vmatprep.subr.bf16.mxu0 0
      %1371 = vmatpush2.bf16.msra.mxu0 0
      %1372 = vmatprep.subr.bf16.mxu0 0
      %1373 = vmatpush2.bf16.msra.mxu0 0
      %1374 = vmatprep.subr.bf16.mxu0 0
      %1375 = vmatpush2.bf16.msra.mxu0 0
      %1376 = vmatprep.subr.bf16.mxu0 0
      %1377 = vmatpush2.bf16.msra.mxu0 0
      %1378 = vmatprep.subr.bf16.mxu0 0
      %1379 = vmatpush2.bf16.msra.mxu0 0
      %1380 = vmatprep.subr.bf16.mxu0 0
      %1381 = vmatpush2.bf16.msra.mxu0 0
      %1382 = vmatprep.subr.bf16.mxu0 0
      %1383 = vmatpush2.bf16.msra.mxu0 0
      %1384 = vmatprep.mubr.bf16.mxu0 0
      %1385 = vmatmul.mubr.bf16.gmra.mxu0 %v1350
      %v1386 = vpop.f32.mrf.mxu0
      %v1387 = vadd.f32 %v1322, %v1386
      %v1388 = vpop.f32.mrf.mxu0
      %v1389 = vpop.f32.mrf.mxu0
      %v1390 = vpop.f32.mrf.mxu0
      %1391 = vdwg.mxu0
      %v1392 = vadd.f32 %v1387, %v1231
      %v1393 = vld [vmem:[%s12] sm:$0x1]
      %v1394 = vld [vmem:[%s13] sm:$0x1]
      %v1395 = vsel %vm503, %v1392, 0.0
      %1396 = vadd.xlane.f32.xlu0 %v1395
      %v1397 = vpop.xlane.xlu0 %1396
      %v1398 = vmul.f32 %v1397, %v1207
      %v1399 = vsub.f32 %v1392, %v1398
      %v1400 = vmul.f32 %v1399, %v1399
      %v1401 = vsel %vm503, %v1400, 0.0
      %1402 = vadd.xlane.f32.xlu0 %v1401
      %v1403 = vpop.xlane.xlu0 %1402
      %v1404 = vmul.f32 %v1403, %v1207
      %v1405 = vadd.f32 %v1404, 1e-12
      %v1406 = vrsqrt.pop %v1405
      %v1407 = vmul.f32 %v1399, %v1406
      %v1409 = vlaneseq
      %v1410 = vshrl.u32 %v1409, 7
      %v1411 = vsub.s32 0, %v1410
      %v1412 = vrot.slane %v1393, %v1411
      %v1414 = vmul.f32 %v1407, %v1412
      %v1416 = vlaneseq
      %v1417 = vshrl.u32 %v1416, 7
      %v1418 = vsub.s32 0, %v1417
      %v1419 = vrot.slane %v1394, %v1418
      %v1421 = vadd.f32 %v1414, %v1419
      %v1422 = vpack.c.bf16 %v1421, %v1421
      %vm1423 = vcmask 257024
      %1424 = vst.msk [vmem:[%s476] sm:$0xf] %vm1423, %v1422
      %p1425 = scmp.lt.s32.totalorder %s25, 1
      %s1426 = scalar_select %p1425, %s25, 1
      %s1427 = smul.addr %s1426, 4
      %s1428 = scalar_lea.vmem %s14, %s1427
      // Predicated region
      $region77: #{bert_classifier_forward.4} parent=75 // pred_check
        %p1429 = pneg %p347
      $region78: #{bert_classifier_forward.4} parent=75 // pred_check_branch
        %1431 = sbr.rel (%p1429) target = $region80
      $region79: #{bert_classifier_forward.4} parent=75 // pred_region
        _
      $region80: #{bert_classifier_forward.4} parent=75 // pred_fallthru
        _
    $region76: #{bert_classifier_forward.4} parent=5 // pred_fallthru
      _
    %p1432 = scmp.le.s32.totalorder 2, %s20
    // Predicated region
    $region81: #{bert_classifier_forward.4} parent=5 // pred_check
      %p1433 = pneg %p1432
    $region82: #{bert_classifier_forward.4} parent=5 // pred_check_branch
      %1435 = sbr.rel (%p1433) target = $region84
    $region83: #{bert_classifier_forward.4} parent=5 // pred_region
      %s1436 = ssub.s32 %s20, 2
      // Predicated region
      $region85: #{bert_classifier_forward.4} parent=83 // pred_check
        %p1437 = pneg %p353
      $region86: #{bert_classifier_forward.4} parent=83 // pred_check_branch
        %1439 = sbr.rel (%p1437) target = $region88
      $region87: #{bert_classifier_forward.4} parent=83 // pred_region
        %p1440 = scmp.lt.s32.totalorder %s26, 1
        %s1441 = scalar_select %p1440, %s26, 1
        %s1442 = smul.addr %s1441, 4
        %s1443 = scalar_lea.vmem %s14, %s1442
      $region88: #{bert_classifier_forward.4} parent=83 // pred_fallthru
        _
    $region84: #{bert_classifier_forward.4} parent=5 // pred_fallthru
      _
  $region6: #{bert_classifier_forward.4} parent=0 // loop_footer
    %s24 = sadd.s32 1, %s20
  $region7: #{bert_classifier_forward.4} parent=0 // loop_footer_branch
    %19 = sbr.rel target = $region3
  $region8: #{bert_classifier_forward.4} parent=0 // loop_exit
    _

</llo_original>
